<compile_context>
chip_gen: v7x
topology: tpu7x:2x2x1
jax: 0.10.0
libtpu: 0.0.40
codegen_flags: <defaults>
</compile_context>

<pallas_src>
import functools

import jax
import jax.numpy as jnp
from jax.experimental import pallas as pl
from jax.experimental.pallas import tpu as pltpu

EPS = 1e-5
_VMEM = pl.BlockSpec(memory_space=pltpu.MemorySpace.VMEM)


# ----------------------------------------------------------------------------
# Fused conv3x3(+bias) -> BatchNorm(train) -> ReLU -> maxpool(2,2) stage kernel
# ----------------------------------------------------------------------------
def _stage_kernel(p_ref, w_ref, b_ref, g_ref, be_ref, o_ref, *, inv_n):
    """p:(4,K,M) window-slot-major im2col patches; w:(C,K); b/g/be:(C,1); o:(C,M)."""
    w = w_ref[...]                                                  # (C, K)
    bias = b_ref[...]                                               # (C, 1)
    # Conv as 4 MXU matmuls (one per 2x2-pool window slot), f32 accumulation.
    ys = [jnp.dot(w, p_ref[s], preferred_element_type=jnp.float32) + bias
          for s in range(4)]                                        # 4 x (C, M)
    # One-pass BN statistics over (N, H, W) == all 4 slots x all M columns.
    tot = (ys[0] + ys[1]) + (ys[2] + ys[3])
    sq = (ys[0] * ys[0] + ys[1] * ys[1]) + (ys[2] * ys[2] + ys[3] * ys[3])
    mean = jnp.sum(tot, axis=1, keepdims=True) * inv_n              # (C, 1)
    var = jnp.sum(sq, axis=1, keepdims=True) * inv_n - mean * mean  # biased batch var
    var = jnp.maximum(var, 0.0)
    scale = g_ref[...] * jax.lax.rsqrt(var + EPS)                   # (C, 1)
    shift = be_ref[...] - mean * scale
    zs = [jnp.maximum(y * scale + shift, 0.0) for y in ys]          # BN affine + ReLU
    # 2x2 max-pool == elementwise max over the 4 window slots (VPU only, no XLU).
    o_ref[...] = jnp.maximum(jnp.maximum(zs[0], zs[1]), jnp.maximum(zs[2], zs[3]))


def _im2col_pool_groups(x_cbhw):
    """(Cin,B,H,W) -> (4, 9*Cin, B*(H//2)*(W//2)) patches, 2x2-pool-window-slot major.

    Feature (K) order is (cin, ky, kx), matching torch weight.reshape(Cout, Cin*9).
    Column order is (b, h2, w2); slot = dy*2 + dx.
    """
    Cin, B, H, W = x_cbhw.shape
    H2, W2 = H // 2, W // 2
    xp = jnp.pad(x_cbhw, ((0, 0), (0, 0), (1, 1), (1, 1)))
    sl = [xp[:, :, ky:ky + H, kx:kx + W] for ky in range(3) for kx in range(3)]
    p = jnp.stack(sl, axis=1)                                       # (Cin, 9, B, H, W)
    p = p.reshape(9 * Cin, B, H2, 2, W2, 2)
    p = p.transpose(3, 5, 0, 1, 2, 4)                               # (dy, dx, K, B, H2, W2)
    return p.reshape(4, 9 * Cin, B * H2 * W2)


def conv_bn_relu_pool_stage(x_cbhw, w_conv, b_conv, gamma, beta):
    """Conv2d(3x3, pad=1) -> BN -> ReLU -> MaxPool(2,2); channel-major in/out."""
    Cin, B, H, W = x_cbhw.shape
    Cout = w_conv.shape[0]
    H2, W2 = H // 2, W // 2
    M = B * H2 * W2
    K = 9 * Cin

    pat = _im2col_pool_groups(x_cbhw)                               # (4, K, M)
    wmat = w_conv.reshape(Cout, K)                                  # torch (Cout,Cin,3,3)

    cost = pl.CostEstimate(
        flops=2 * 4 * Cout * K * M + 12 * 4 * Cout * M,
        transcendentals=Cout,
        bytes_accessed=4 * (4 * K * M + Cout * K + 3 * Cout + Cout * M),
    )
    out = pl.pallas_call(
        functools.partial(_stage_kernel, inv_n=1.0 / float(4 * M)),
        out_shape=jax.ShapeDtypeStruct((Cout, M), jnp.float32),
        in_specs=[_VMEM] * 5,
        out_specs=_VMEM,
        cost_estimate=cost,
    )(pat, wmat, b_conv.reshape(Cout, 1), gamma.reshape(Cout, 1), beta.reshape(Cout, 1))
    return out.reshape(Cout, B, H2, W2)                             # channel-major for next stage


# ----------------------------------------------------------------------------
# Fused FC head: fc1 -> ReLU -> fc2 -> ReLU -> fc3 in a single pallas_call
# ----------------------------------------------------------------------------
def _mlp_kernel(x_ref, w1_ref, b1_ref, w2_ref, b2_ref, w3_ref, b3_ref, o_ref):
    h = jnp.dot(x_ref[...], w1_ref[...], preferred_element_type=jnp.float32) + b1_ref[...]
    h = jnp.maximum(h, 0.0)
    h = jnp.dot(h, w2_ref[...], preferred_element_type=jnp.float32) + b2_ref[...]
    h = jnp.maximum(h, 0.0)
    o_ref[...] = jnp.dot(h, w3_ref[...], preferred_element_type=jnp.float32) + b3_ref[...]


def mlp_head(feats, p):
    B, Din = feats.shape
    D1, D2, D3 = p["fc1_wt"].shape[1], p["fc2_wt"].shape[1], p["fc3_wt"].shape[1]
    cost = pl.CostEstimate(
        flops=2 * B * (Din * D1 + D1 * D2 + D2 * D3),
        transcendentals=0,
        bytes_accessed=4 * (B * Din + Din * D1 + D1 * D2 + D2 * D3 + D1 + D2 + D3 + B * D3),
    )
    return pl.pallas_call(
        _mlp_kernel,
        out_shape=jax.ShapeDtypeStruct((B, D3), jnp.float32),
        in_specs=[_VMEM] * 7,
        out_specs=_VMEM,
        cost_estimate=cost,
    )(feats, p["fc1_wt"], p["fc1_b"], p["fc2_wt"], p["fc2_b"], p["fc3_wt"], p["fc3_b"])


# ----------------------------------------------------------------------------
# Parameters (deterministic synthetic init matching the torch module's shapes;
# FC weights stored pre-transposed to (in, out) once, outside the jit)
# ----------------------------------------------------------------------------
def init_params(key):
    ks = jax.random.split(key, 12)
    p = {}
    p["w1"] = jax.random.normal(ks[0], (16, 3, 3, 3), jnp.float32) * 0.1
    p["b1"] = jax.random.normal(ks[1], (16,), jnp.float32) * 0.01
    p["w2"] = jax.random.normal(ks[2], (32, 16, 3, 3), jnp.float32) * 0.05
    p["b2"] = jax.random.normal(ks[3], (32,), jnp.float32) * 0.01
    p["w3"] = jax.random.normal(ks[4], (64, 32, 3, 3), jnp.float32) * 0.05
    p["b3"] = jax.random.normal(ks[5], (64,), jnp.float32) * 0.01
    # BatchNorm affine params (gamma=1, beta=0 like a fresh nn.BatchNorm2d)
    p["g1"], p["be1"] = jnp.ones((16,), jnp.float32), jnp.zeros((16,), jnp.float32)
    p["g2"], p["be2"] = jnp.ones((32,), jnp.float32), jnp.zeros((32,), jnp.float32)
    p["g3"], p["be3"] = jnp.ones((64,), jnp.float32), jnp.zeros((64,), jnp.float32)
    # FC: torch layout is (out, in); store the transpose (in, out) + (1, out) bias.
    p["fc1_wt"] = (jax.random.normal(ks[6], (120, 64 * 4 * 4), jnp.float32) * 0.02).T
    p["fc1_b"] = (jax.random.normal(ks[7], (120,), jnp.float32) * 0.01).reshape(1, 120)
    p["fc2_wt"] = (jax.random.normal(ks[8], (84, 120), jnp.float32) * 0.05).T
    p["fc2_b"] = (jax.random.normal(ks[9], (84,), jnp.float32) * 0.01).reshape(1, 84)
    p["fc3_wt"] = (jax.random.normal(ks[10], (10, 84), jnp.float32) * 0.05).T
    p["fc3_b"] = (jax.random.normal(ks[11], (10,), jnp.float32) * 0.01).reshape(1, 10)
    return p


# ----------------------------------------------------------------------------
# Full forward pass (4 pallas_calls total: 3 fused conv stages + 1 fused MLP)
# ----------------------------------------------------------------------------
@jax.jit
def batchnorm_net_forward(x_nchw, params):
    # NCHW (torch) -> channel-major (C, B, H, W): channels on the matmul row axis,
    # pixels on the 128-lane axis inside the stage kernels.
    x = jnp.transpose(x_nchw, (1, 0, 2, 3)).astype(jnp.float32)     # (3,  B, 32, 32)
    x = conv_bn_relu_pool_stage(x, params["w1"], params["b1"], params["g1"], params["be1"])  # (16, B, 16, 16)
    x = conv_bn_relu_pool_stage(x, params["w2"], params["b2"], params["g2"], params["be2"])  # (32, B,  8,  8)
    x = conv_bn_relu_pool_stage(x, params["w3"], params["b3"], params["g3"], params["be3"])  # (64, B,  4,  4)
    B = x.shape[1]
    # (C,B,H,W) -> (B, C*H*W) matches torch.flatten(x, 1) on NCHW.
    feats = jnp.transpose(x, (1, 0, 2, 3)).reshape(B, 64 * 4 * 4)   # (B, 1024)
    return mlp_head(feats, params)                                  # (B, 10)


if __name__ == "__main__":
    key = jax.random.PRNGKey(0)
    k_x, k_p = jax.random.split(key)
    # 32x32 spatial so that three 2x2 pools give 4x4 before fc1 (64*4*4).
    x = jax.random.normal(k_x, (2, 3, 32, 32), dtype=jnp.float32)
    params = init_params(k_p)

    out = batchnorm_net_forward(x, params)
    out = jax.block_until_ready(out)
    assert out.shape == (2, 10), out.shape
    assert bool(jnp.all(jnp.isfinite(out)))
    print("KERNEL_OK")
</pallas_src>

<mosaic_0001>
module attributes {stable_mosaic.version = 11 : i64} {
  func.func @_stage_kernel(%arg0: memref<4x27x512xf32, #tpu.memory_space<vmem>>, %arg1: memref<16x27xf32, #tpu.memory_space<vmem>>, %arg2: memref<16x1xf32, #tpu.memory_space<vmem>>, %arg3: memref<16x1xf32, #tpu.memory_space<vmem>>, %arg4: memref<16x1xf32, #tpu.memory_space<vmem>>, %arg5: memref<16x512xf32, #tpu.memory_space<vmem>>) attributes {dimension_semantics = [], scalar_prefetch = 0 : i64, scratch_operands = 0 : i64, tpu.core_type = #tpu.core_type<tc>} {
    %c0 = arith.constant 0 : index
    %c0_0 = arith.constant 0 : index
    %0 = vector.load %arg1[%c0, %c0_0] : memref<16x27xf32, #tpu.memory_space<vmem>>, vector<16x27xf32>
    %c0_1 = arith.constant 0 : index
    %c0_2 = arith.constant 0 : index
    %1 = vector.load %arg2[%c0_1, %c0_2] : memref<16x1xf32, #tpu.memory_space<vmem>>, vector<16x1xf32>
    %c0_3 = arith.constant 0 : index
    %c0_4 = arith.constant 0 : index
    %c0_5 = arith.constant 0 : index
    %2 = vector.load %arg0[%c0_3, %c0_4, %c0_5] : memref<4x27x512xf32, #tpu.memory_space<vmem>>, vector<1x27x512xf32>
    %3 = vector.shape_cast %2 : vector<1x27x512xf32> to vector<27x512xf32>
    %cst = arith.constant dense<0.000000e+00> : vector<16x512xf32>
    %4 = tpu.matmul %0, %3, %cst {dimension_numbers = #tpu.dot_dimension_numbers<[1], [0], [0], [1], [0, 0, 1, 1], [], []>} : vector<16x27xf32>, vector<27x512xf32>, vector<16x512xf32> -> vector<16x512xf32>
    %5 = vector.broadcast %1 : vector<16x1xf32> to vector<16x512xf32>
    %6 = arith.addf %4, %5 : vector<16x512xf32>
    %c1 = arith.constant 1 : index
    %c0_6 = arith.constant 0 : index
    %c0_7 = arith.constant 0 : index
    %7 = vector.load %arg0[%c1, %c0_6, %c0_7] : memref<4x27x512xf32, #tpu.memory_space<vmem>>, vector<1x27x512xf32>
    %8 = vector.shape_cast %7 : vector<1x27x512xf32> to vector<27x512xf32>
    %cst_8 = arith.constant dense<0.000000e+00> : vector<16x512xf32>
    %9 = tpu.matmul %0, %8, %cst_8 {dimension_numbers = #tpu.dot_dimension_numbers<[1], [0], [0], [1], [0, 0, 1, 1], [], []>} : vector<16x27xf32>, vector<27x512xf32>, vector<16x512xf32> -> vector<16x512xf32>
    %10 = vector.broadcast %1 : vector<16x1xf32> to vector<16x512xf32>
    %11 = arith.addf %9, %10 : vector<16x512xf32>
    %c2 = arith.constant 2 : index
    %c0_9 = arith.constant 0 : index
    %c0_10 = arith.constant 0 : index
    %12 = vector.load %arg0[%c2, %c0_9, %c0_10] : memref<4x27x512xf32, #tpu.memory_space<vmem>>, vector<1x27x512xf32>
    %13 = vector.shape_cast %12 : vector<1x27x512xf32> to vector<27x512xf32>
    %cst_11 = arith.constant dense<0.000000e+00> : vector<16x512xf32>
    %14 = tpu.matmul %0, %13, %cst_11 {dimension_numbers = #tpu.dot_dimension_numbers<[1], [0], [0], [1], [0, 0, 1, 1], [], []>} : vector<16x27xf32>, vector<27x512xf32>, vector<16x512xf32> -> vector<16x512xf32>
    %15 = vector.broadcast %1 : vector<16x1xf32> to vector<16x512xf32>
    %16 = arith.addf %14, %15 : vector<16x512xf32>
    %c3 = arith.constant 3 : index
    %c0_12 = arith.constant 0 : index
    %c0_13 = arith.constant 0 : index
    %17 = vector.load %arg0[%c3, %c0_12, %c0_13] : memref<4x27x512xf32, #tpu.memory_space<vmem>>, vector<1x27x512xf32>
    %18 = vector.shape_cast %17 : vector<1x27x512xf32> to vector<27x512xf32>
    %cst_14 = arith.constant dense<0.000000e+00> : vector<16x512xf32>
    %19 = tpu.matmul %0, %18, %cst_14 {dimension_numbers = #tpu.dot_dimension_numbers<[1], [0], [0], [1], [0, 0, 1, 1], [], []>} : vector<16x27xf32>, vector<27x512xf32>, vector<16x512xf32> -> vector<16x512xf32>
    %20 = vector.broadcast %1 : vector<16x1xf32> to vector<16x512xf32>
    %21 = arith.addf %19, %20 : vector<16x512xf32>
    %22 = arith.addf %6, %11 : vector<16x512xf32>
    %23 = arith.addf %16, %21 : vector<16x512xf32>
    %24 = arith.addf %22, %23 : vector<16x512xf32>
    %25 = arith.mulf %6, %6 : vector<16x512xf32>
    %26 = arith.mulf %11, %11 : vector<16x512xf32>
    %27 = arith.addf %25, %26 : vector<16x512xf32>
    %28 = arith.mulf %16, %16 : vector<16x512xf32>
    %29 = arith.mulf %21, %21 : vector<16x512xf32>
    %30 = arith.addf %28, %29 : vector<16x512xf32>
    %31 = arith.addf %27, %30 : vector<16x512xf32>
    %cst_15 = arith.constant dense<0.000000e+00> : vector<16xf32>
    %32 = vector.multi_reduction <add>, %24, %cst_15 [1] : vector<16x512xf32> to vector<16xf32>
    %33 = vector.shape_cast %32 : vector<16xf32> to vector<16x1xf32>
    %cst_16 = arith.constant 4.8828125E-4 : f32
    %34 = vector.broadcast %cst_16 : f32 to vector<16x1xf32>
    %35 = arith.mulf %33, %34 : vector<16x1xf32>
    %cst_17 = arith.constant dense<0.000000e+00> : vector<16xf32>
    %36 = vector.multi_reduction <add>, %31, %cst_17 [1] : vector<16x512xf32> to vector<16xf32>
    %37 = vector.shape_cast %36 : vector<16xf32> to vector<16x1xf32>
    %cst_18 = arith.constant 4.8828125E-4 : f32
    %38 = vector.broadcast %cst_18 : f32 to vector<16x1xf32>
    %39 = arith.mulf %37, %38 : vector<16x1xf32>
    %40 = arith.mulf %35, %35 : vector<16x1xf32>
    %41 = arith.subf %39, %40 : vector<16x1xf32>
    %cst_19 = arith.constant 0.000000e+00 : f32
    %42 = vector.broadcast %cst_19 : f32 to vector<16x1xf32>
    %43 = arith.maximumf %41, %42 : vector<16x1xf32>
    %c0_20 = arith.constant 0 : index
    %c0_21 = arith.constant 0 : index
    %44 = vector.load %arg3[%c0_20, %c0_21] : memref<16x1xf32, #tpu.memory_space<vmem>>, vector<16x1xf32>
    %cst_22 = arith.constant 9.99999974E-6 : f32
    %45 = vector.broadcast %cst_22 : f32 to vector<16x1xf32>
    %46 = arith.addf %43, %45 : vector<16x1xf32>
    %47 = math.rsqrt %46 : vector<16x1xf32>
    %48 = arith.mulf %44, %47 : vector<16x1xf32>
    %c0_23 = arith.constant 0 : index
    %c0_24 = arith.constant 0 : index
    %49 = vector.load %arg4[%c0_23, %c0_24] : memref<16x1xf32, #tpu.memory_space<vmem>>, vector<16x1xf32>
    %50 = arith.mulf %35, %48 : vector<16x1xf32>
    %51 = arith.subf %49, %50 : vector<16x1xf32>
    %52 = vector.broadcast %48 : vector<16x1xf32> to vector<16x512xf32>
    %53 = arith.mulf %6, %52 : vector<16x512xf32>
    %54 = vector.broadcast %51 : vector<16x1xf32> to vector<16x512xf32>
    %55 = arith.addf %53, %54 : vector<16x512xf32>
    %cst_25 = arith.constant 0.000000e+00 : f32
    %56 = vector.broadcast %cst_25 : f32 to vector<16x512xf32>
    %57 = arith.maximumf %55, %56 : vector<16x512xf32>
    %58 = vector.broadcast %48 : vector<16x1xf32> to vector<16x512xf32>
    %59 = arith.mulf %11, %58 : vector<16x512xf32>
    %60 = vector.broadcast %51 : vector<16x1xf32> to vector<16x512xf32>
    %61 = arith.addf %59, %60 : vector<16x512xf32>
    %cst_26 = arith.constant 0.000000e+00 : f32
    %62 = vector.broadcast %cst_26 : f32 to vector<16x512xf32>
    %63 = arith.maximumf %61, %62 : vector<16x512xf32>
    %64 = vector.broadcast %48 : vector<16x1xf32> to vector<16x512xf32>
    %65 = arith.mulf %16, %64 : vector<16x512xf32>
    %66 = vector.broadcast %51 : vector<16x1xf32> to vector<16x512xf32>
    %67 = arith.addf %65, %66 : vector<16x512xf32>
    %cst_27 = arith.constant 0.000000e+00 : f32
    %68 = vector.broadcast %cst_27 : f32 to vector<16x512xf32>
    %69 = arith.maximumf %67, %68 : vector<16x512xf32>
    %70 = vector.broadcast %48 : vector<16x1xf32> to vector<16x512xf32>
    %71 = arith.mulf %21, %70 : vector<16x512xf32>
    %72 = vector.broadcast %51 : vector<16x1xf32> to vector<16x512xf32>
    %73 = arith.addf %71, %72 : vector<16x512xf32>
    %cst_28 = arith.constant 0.000000e+00 : f32
    %74 = vector.broadcast %cst_28 : f32 to vector<16x512xf32>
    %75 = arith.maximumf %73, %74 : vector<16x512xf32>
    %76 = arith.maximumf %57, %63 : vector<16x512xf32>
    %77 = arith.maximumf %69, %75 : vector<16x512xf32>
    %78 = arith.maximumf %76, %77 : vector<16x512xf32>
    %c0_29 = arith.constant 0 : index
    %c0_30 = arith.constant 0 : index
    %79 = vector.load %arg5[%c0_29, %c0_30] : memref<16x512xf32, #tpu.memory_space<vmem>>, vector<16x512xf32>
    tpu.vector_store %arg5[%c0_29, %c0_30], %78 {strides = array<i32>} : memref<16x512xf32, #tpu.memory_space<vmem>>, vector<16x512xf32>,
    return
  }
}

module attributes {stable_mosaic.version = 11 : i64} {
  func.func @_stage_kernel(%arg0: memref<4x144x128xf32, #tpu.memory_space<vmem>>, %arg1: memref<32x144xf32, #tpu.memory_space<vmem>>, %arg2: memref<32x1xf32, #tpu.memory_space<vmem>>, %arg3: memref<32x1xf32, #tpu.memory_space<vmem>>, %arg4: memref<32x1xf32, #tpu.memory_space<vmem>>, %arg5: memref<32x128xf32, #tpu.memory_space<vmem>>) attributes {dimension_semantics = [], scalar_prefetch = 0 : i64, scratch_operands = 0 : i64, tpu.core_type = #tpu.core_type<tc>} {
    %c0 = arith.constant 0 : index
    %c0_0 = arith.constant 0 : index
    %0 = vector.load %arg1[%c0, %c0_0] : memref<32x144xf32, #tpu.memory_space<vmem>>, vector<32x144xf32>
    %c0_1 = arith.constant 0 : index
    %c0_2 = arith.constant 0 : index
    %1 = vector.load %arg2[%c0_1, %c0_2] : memref<32x1xf32, #tpu.memory_space<vmem>>, vector<32x1xf32>
    %c0_3 = arith.constant 0 : index
    %c0_4 = arith.constant 0 : index
    %c0_5 = arith.constant 0 : index
    %2 = vector.load %arg0[%c0_3, %c0_4, %c0_5] : memref<4x144x128xf32, #tpu.memory_space<vmem>>, vector<1x144x128xf32>
    %3 = vector.shape_cast %2 : vector<1x144x128xf32> to vector<144x128xf32>
    %cst = arith.constant dense<0.000000e+00> : vector<32x128xf32>
    %4 = tpu.matmul %0, %3, %cst {dimension_numbers = #tpu.dot_dimension_numbers<[1], [0], [0], [1], [0, 0, 1, 1], [], []>} : vector<32x144xf32>, vector<144x128xf32>, vector<32x128xf32> -> vector<32x128xf32>
    %5 = vector.broadcast %1 : vector<32x1xf32> to vector<32x128xf32>
    %6 = arith.addf %4, %5 : vector<32x128xf32>
    %c1 = arith.constant 1 : index
    %c0_6 = arith.constant 0 : index
    %c0_7 = arith.constant 0 : index
    %7 = vector.load %arg0[%c1, %c0_6, %c0_7] : memref<4x144x128xf32, #tpu.memory_space<vmem>>, vector<1x144x128xf32>
    %8 = vector.shape_cast %7 : vector<1x144x128xf32> to vector<144x128xf32>
    %cst_8 = arith.constant dense<0.000000e+00> : vector<32x128xf32>
    %9 = tpu.matmul %0, %8, %cst_8 {dimension_numbers = #tpu.dot_dimension_numbers<[1], [0], [0], [1], [0, 0, 1, 1], [], []>} : vector<32x144xf32>, vector<144x128xf32>, vector<32x128xf32> -> vector<32x128xf32>
    %10 = vector.broadcast %1 : vector<32x1xf32> to vector<32x128xf32>
    %11 = arith.addf %9, %10 : vector<32x128xf32>
    %c2 = arith.constant 2 : index
    %c0_9 = arith.constant 0 : index
    %c0_10 = arith.constant 0 : index
    %12 = vector.load %arg0[%c2, %c0_9, %c0_10] : memref<4x144x128xf32, #tpu.memory_space<vmem>>, vector<1x144x128xf32>
    %13 = vector.shape_cast %12 : vector<1x144x128xf32> to vector<144x128xf32>
    %cst_11 = arith.constant dense<0.000000e+00> : vector<32x128xf32>
    %14 = tpu.matmul %0, %13, %cst_11 {dimension_numbers = #tpu.dot_dimension_numbers<[1], [0], [0], [1], [0, 0, 1, 1], [], []>} : vector<32x144xf32>, vector<144x128xf32>, vector<32x128xf32> -> vector<32x128xf32>
    %15 = vector.broadcast %1 : vector<32x1xf32> to vector<32x128xf32>
    %16 = arith.addf %14, %15 : vector<32x128xf32>
    %c3 = arith.constant 3 : index
    %c0_12 = arith.constant 0 : index
    %c0_13 = arith.constant 0 : index
    %17 = vector.load %arg0[%c3, %c0_12, %c0_13] : memref<4x144x128xf32, #tpu.memory_space<vmem>>, vector<1x144x128xf32>
    %18 = vector.shape_cast %17 : vector<1x144x128xf32> to vector<144x128xf32>
    %cst_14 = arith.constant dense<0.000000e+00> : vector<32x128xf32>
    %19 = tpu.matmul %0, %18, %cst_14 {dimension_numbers = #tpu.dot_dimension_numbers<[1], [0], [0], [1], [0, 0, 1, 1], [], []>} : vector<32x144xf32>, vector<144x128xf32>, vector<32x128xf32> -> vector<32x128xf32>
    %20 = vector.broadcast %1 : vector<32x1xf32> to vector<32x128xf32>
    %21 = arith.addf %19, %20 : vector<32x128xf32>
    %22 = arith.addf %6, %11 : vector<32x128xf32>
    %23 = arith.addf %16, %21 : vector<32x128xf32>
    %24 = arith.addf %22, %23 : vector<32x128xf32>
    %25 = arith.mulf %6, %6 : vector<32x128xf32>
    %26 = arith.mulf %11, %11 : vector<32x128xf32>
    %27 = arith.addf %25, %26 : vector<32x128xf32>
    %28 = arith.mulf %16, %16 : vector<32x128xf32>
    %29 = arith.mulf %21, %21 : vector<32x128xf32>
    %30 = arith.addf %28, %29 : vector<32x128xf32>
    %31 = arith.addf %27, %30 : vector<32x128xf32>
    %cst_15 = arith.constant dense<0.000000e+00> : vector<32xf32>
    %32 = vector.multi_reduction <add>, %24, %cst_15 [1] : vector<32x128xf32> to vector<32xf32>
    %33 = vector.shape_cast %32 : vector<32xf32> to vector<32x1xf32>
    %cst_16 = arith.constant 0.001953125 : f32
    %34 = vector.broadcast %cst_16 : f32 to vector<32x1xf32>
    %35 = arith.mulf %33, %34 : vector<32x1xf32>
    %cst_17 = arith.constant dense<0.000000e+00> : vector<32xf32>
    %36 = vector.multi_reduction <add>, %31, %cst_17 [1] : vector<32x128xf32> to vector<32xf32>
    %37 = vector.shape_cast %36 : vector<32xf32> to vector<32x1xf32>
    %cst_18 = arith.constant 0.001953125 : f32
    %38 = vector.broadcast %cst_18 : f32 to vector<32x1xf32>
    %39 = arith.mulf %37, %38 : vector<32x1xf32>
    %40 = arith.mulf %35, %35 : vector<32x1xf32>
    %41 = arith.subf %39, %40 : vector<32x1xf32>
    %cst_19 = arith.constant 0.000000e+00 : f32
    %42 = vector.broadcast %cst_19 : f32 to vector<32x1xf32>
    %43 = arith.maximumf %41, %42 : vector<32x1xf32>
    %c0_20 = arith.constant 0 : index
    %c0_21 = arith.constant 0 : index
    %44 = vector.load %arg3[%c0_20, %c0_21] : memref<32x1xf32, #tpu.memory_space<vmem>>, vector<32x1xf32>
    %cst_22 = arith.constant 9.99999974E-6 : f32
    %45 = vector.broadcast %cst_22 : f32 to vector<32x1xf32>
    %46 = arith.addf %43, %45 : vector<32x1xf32>
    %47 = math.rsqrt %46 : vector<32x1xf32>
    %48 = arith.mulf %44, %47 : vector<32x1xf32>
    %c0_23 = arith.constant 0 : index
    %c0_24 = arith.constant 0 : index
    %49 = vector.load %arg4[%c0_23, %c0_24] : memref<32x1xf32, #tpu.memory_space<vmem>>, vector<32x1xf32>
    %50 = arith.mulf %35, %48 : vector<32x1xf32>
    %51 = arith.subf %49, %50 : vector<32x1xf32>
    %52 = vector.broadcast %48 : vector<32x1xf32> to vector<32x128xf32>
    %53 = arith.mulf %6, %52 : vector<32x128xf32>
    %54 = vector.broadcast %51 : vector<32x1xf32> to vector<32x128xf32>
    %55 = arith.addf %53, %54 : vector<32x128xf32>
    %cst_25 = arith.constant 0.000000e+00 : f32
    %56 = vector.broadcast %cst_25 : f32 to vector<32x128xf32>
    %57 = arith.maximumf %55, %56 : vector<32x128xf32>
    %58 = vector.broadcast %48 : vector<32x1xf32> to vector<32x128xf32>
    %59 = arith.mulf %11, %58 : vector<32x128xf32>
    %60 = vector.broadcast %51 : vector<32x1xf32> to vector<32x128xf32>
    %61 = arith.addf %59, %60 : vector<32x128xf32>
    %cst_26 = arith.constant 0.000000e+00 : f32
    %62 = vector.broadcast %cst_26 : f32 to vector<32x128xf32>
    %63 = arith.maximumf %61, %62 : vector<32x128xf32>
    %64 = vector.broadcast %48 : vector<32x1xf32> to vector<32x128xf32>
    %65 = arith.mulf %16, %64 : vector<32x128xf32>
    %66 = vector.broadcast %51 : vector<32x1xf32> to vector<32x128xf32>
    %67 = arith.addf %65, %66 : vector<32x128xf32>
    %cst_27 = arith.constant 0.000000e+00 : f32
    %68 = vector.broadcast %cst_27 : f32 to vector<32x128xf32>
    %69 = arith.maximumf %67, %68 : vector<32x128xf32>
    %70 = vector.broadcast %48 : vector<32x1xf32> to vector<32x128xf32>
    %71 = arith.mulf %21, %70 : vector<32x128xf32>
    %72 = vector.broadcast %51 : vector<32x1xf32> to vector<32x128xf32>
    %73 = arith.addf %71, %72 : vector<32x128xf32>
    %cst_28 = arith.constant 0.000000e+00 : f32
    %74 = vector.broadcast %cst_28 : f32 to vector<32x128xf32>
    %75 = arith.maximumf %73, %74 : vector<32x128xf32>
    %76 = arith.maximumf %57, %63 : vector<32x128xf32>
    %77 = arith.maximumf %69, %75 : vector<32x128xf32>
    %78 = arith.maximumf %76, %77 : vector<32x128xf32>
    %c0_29 = arith.constant 0 : index
    %c0_30 = arith.constant 0 : index
    %79 = vector.load %arg5[%c0_29, %c0_30] : memref<32x128xf32, #tpu.memory_space<vmem>>, vector<32x128xf32>
    tpu.vector_store %arg5[%c0_29, %c0_30], %78 {strides = array<i32>} : memref<32x128xf32, #tpu.memory_space<vmem>>, vector<32x128xf32>,
    return
  }
}

module attributes {stable_mosaic.version = 11 : i64} {
  func.func @_stage_kernel(%arg0: memref<4x288x32xf32, #tpu.memory_space<vmem>>, %arg1: memref<64x288xf32, #tpu.memory_space<vmem>>, %arg2: memref<64x1xf32, #tpu.memory_space<vmem>>, %arg3: memref<64x1xf32, #tpu.memory_space<vmem>>, %arg4: memref<64x1xf32, #tpu.memory_space<vmem>>, %arg5: memref<64x32xf32, #tpu.memory_space<vmem>>) attributes {dimension_semantics = [], scalar_prefetch = 0 : i64, scratch_operands = 0 : i64, tpu.core_type = #tpu.core_type<tc>} {
    %c0 = arith.constant 0 : index
    %c0_0 = arith.constant 0 : index
    %0 = vector.load %arg1[%c0, %c0_0] : memref<64x288xf32, #tpu.memory_space<vmem>>, vector<64x288xf32>
    %c0_1 = arith.constant 0 : index
    %c0_2 = arith.constant 0 : index
    %1 = vector.load %arg2[%c0_1, %c0_2] : memref<64x1xf32, #tpu.memory_space<vmem>>, vector<64x1xf32>
    %c0_3 = arith.constant 0 : index
    %c0_4 = arith.constant 0 : index
    %c0_5 = arith.constant 0 : index
    %2 = vector.load %arg0[%c0_3, %c0_4, %c0_5] : memref<4x288x32xf32, #tpu.memory_space<vmem>>, vector<1x288x32xf32>
    %3 = vector.shape_cast %2 : vector<1x288x32xf32> to vector<288x32xf32>
    %cst = arith.constant dense<0.000000e+00> : vector<64x32xf32>
    %4 = tpu.matmul %0, %3, %cst {dimension_numbers = #tpu.dot_dimension_numbers<[1], [0], [0], [1], [0, 0, 1, 1], [], []>} : vector<64x288xf32>, vector<288x32xf32>, vector<64x32xf32> -> vector<64x32xf32>
    %5 = vector.broadcast %1 : vector<64x1xf32> to vector<64x32xf32>
    %6 = arith.addf %4, %5 : vector<64x32xf32>
    %c1 = arith.constant 1 : index
    %c0_6 = arith.constant 0 : index
    %c0_7 = arith.constant 0 : index
    %7 = vector.load %arg0[%c1, %c0_6, %c0_7] : memref<4x288x32xf32, #tpu.memory_space<vmem>>, vector<1x288x32xf32>
    %8 = vector.shape_cast %7 : vector<1x288x32xf32> to vector<288x32xf32>
    %cst_8 = arith.constant dense<0.000000e+00> : vector<64x32xf32>
    %9 = tpu.matmul %0, %8, %cst_8 {dimension_numbers = #tpu.dot_dimension_numbers<[1], [0], [0], [1], [0, 0, 1, 1], [], []>} : vector<64x288xf32>, vector<288x32xf32>, vector<64x32xf32> -> vector<64x32xf32>
    %10 = vector.broadcast %1 : vector<64x1xf32> to vector<64x32xf32>
    %11 = arith.addf %9, %10 : vector<64x32xf32>
    %c2 = arith.constant 2 : index
    %c0_9 = arith.constant 0 : index
    %c0_10 = arith.constant 0 : index
    %12 = vector.load %arg0[%c2, %c0_9, %c0_10] : memref<4x288x32xf32, #tpu.memory_space<vmem>>, vector<1x288x32xf32>
    %13 = vector.shape_cast %12 : vector<1x288x32xf32> to vector<288x32xf32>
    %cst_11 = arith.constant dense<0.000000e+00> : vector<64x32xf32>
    %14 = tpu.matmul %0, %13, %cst_11 {dimension_numbers = #tpu.dot_dimension_numbers<[1], [0], [0], [1], [0, 0, 1, 1], [], []>} : vector<64x288xf32>, vector<288x32xf32>, vector<64x32xf32> -> vector<64x32xf32>
    %15 = vector.broadcast %1 : vector<64x1xf32> to vector<64x32xf32>
    %16 = arith.addf %14, %15 : vector<64x32xf32>
    %c3 = arith.constant 3 : index
    %c0_12 = arith.constant 0 : index
    %c0_13 = arith.constant 0 : index
    %17 = vector.load %arg0[%c3, %c0_12, %c0_13] : memref<4x288x32xf32, #tpu.memory_space<vmem>>, vector<1x288x32xf32>
    %18 = vector.shape_cast %17 : vector<1x288x32xf32> to vector<288x32xf32>
    %cst_14 = arith.constant dense<0.000000e+00> : vector<64x32xf32>
    %19 = tpu.matmul %0, %18, %cst_14 {dimension_numbers = #tpu.dot_dimension_numbers<[1], [0], [0], [1], [0, 0, 1, 1], [], []>} : vector<64x288xf32>, vector<288x32xf32>, vector<64x32xf32> -> vector<64x32xf32>
    %20 = vector.broadcast %1 : vector<64x1xf32> to vector<64x32xf32>
    %21 = arith.addf %19, %20 : vector<64x32xf32>
    %22 = arith.addf %6, %11 : vector<64x32xf32>
    %23 = arith.addf %16, %21 : vector<64x32xf32>
    %24 = arith.addf %22, %23 : vector<64x32xf32>
    %25 = arith.mulf %6, %6 : vector<64x32xf32>
    %26 = arith.mulf %11, %11 : vector<64x32xf32>
    %27 = arith.addf %25, %26 : vector<64x32xf32>
    %28 = arith.mulf %16, %16 : vector<64x32xf32>
    %29 = arith.mulf %21, %21 : vector<64x32xf32>
    %30 = arith.addf %28, %29 : vector<64x32xf32>
    %31 = arith.addf %27, %30 : vector<64x32xf32>
    %cst_15 = arith.constant dense<0.000000e+00> : vector<64xf32>
    %32 = vector.multi_reduction <add>, %24, %cst_15 [1] : vector<64x32xf32> to vector<64xf32>
    %33 = vector.shape_cast %32 : vector<64xf32> to vector<64x1xf32>
    %cst_16 = arith.constant 7.812500e-03 : f32
    %34 = vector.broadcast %cst_16 : f32 to vector<64x1xf32>
    %35 = arith.mulf %33, %34 : vector<64x1xf32>
    %cst_17 = arith.constant dense<0.000000e+00> : vector<64xf32>
    %36 = vector.multi_reduction <add>, %31, %cst_17 [1] : vector<64x32xf32> to vector<64xf32>
    %37 = vector.shape_cast %36 : vector<64xf32> to vector<64x1xf32>
    %cst_18 = arith.constant 7.812500e-03 : f32
    %38 = vector.broadcast %cst_18 : f32 to vector<64x1xf32>
    %39 = arith.mulf %37, %38 : vector<64x1xf32>
    %40 = arith.mulf %35, %35 : vector<64x1xf32>
    %41 = arith.subf %39, %40 : vector<64x1xf32>
    %cst_19 = arith.constant 0.000000e+00 : f32
    %42 = vector.broadcast %cst_19 : f32 to vector<64x1xf32>
    %43 = arith.maximumf %41, %42 : vector<64x1xf32>
    %c0_20 = arith.constant 0 : index
    %c0_21 = arith.constant 0 : index
    %44 = vector.load %arg3[%c0_20, %c0_21] : memref<64x1xf32, #tpu.memory_space<vmem>>, vector<64x1xf32>
    %cst_22 = arith.constant 9.99999974E-6 : f32
    %45 = vector.broadcast %cst_22 : f32 to vector<64x1xf32>
    %46 = arith.addf %43, %45 : vector<64x1xf32>
    %47 = math.rsqrt %46 : vector<64x1xf32>
    %48 = arith.mulf %44, %47 : vector<64x1xf32>
    %c0_23 = arith.constant 0 : index
    %c0_24 = arith.constant 0 : index
    %49 = vector.load %arg4[%c0_23, %c0_24] : memref<64x1xf32, #tpu.memory_space<vmem>>, vector<64x1xf32>
    %50 = arith.mulf %35, %48 : vector<64x1xf32>
    %51 = arith.subf %49, %50 : vector<64x1xf32>
    %52 = vector.broadcast %48 : vector<64x1xf32> to vector<64x32xf32>
    %53 = arith.mulf %6, %52 : vector<64x32xf32>
    %54 = vector.broadcast %51 : vector<64x1xf32> to vector<64x32xf32>
    %55 = arith.addf %53, %54 : vector<64x32xf32>
    %cst_25 = arith.constant 0.000000e+00 : f32
    %56 = vector.broadcast %cst_25 : f32 to vector<64x32xf32>
    %57 = arith.maximumf %55, %56 : vector<64x32xf32>
    %58 = vector.broadcast %48 : vector<64x1xf32> to vector<64x32xf32>
    %59 = arith.mulf %11, %58 : vector<64x32xf32>
    %60 = vector.broadcast %51 : vector<64x1xf32> to vector<64x32xf32>
    %61 = arith.addf %59, %60 : vector<64x32xf32>
    %cst_26 = arith.constant 0.000000e+00 : f32
    %62 = vector.broadcast %cst_26 : f32 to vector<64x32xf32>
    %63 = arith.maximumf %61, %62 : vector<64x32xf32>
    %64 = vector.broadcast %48 : vector<64x1xf32> to vector<64x32xf32>
    %65 = arith.mulf %16, %64 : vector<64x32xf32>
    %66 = vector.broadcast %51 : vector<64x1xf32> to vector<64x32xf32>
    %67 = arith.addf %65, %66 : vector<64x32xf32>
    %cst_27 = arith.constant 0.000000e+00 : f32
    %68 = vector.broadcast %cst_27 : f32 to vector<64x32xf32>
    %69 = arith.maximumf %67, %68 : vector<64x32xf32>
    %70 = vector.broadcast %48 : vector<64x1xf32> to vector<64x32xf32>
    %71 = arith.mulf %21, %70 : vector<64x32xf32>
    %72 = vector.broadcast %51 : vector<64x1xf32> to vector<64x32xf32>
    %73 = arith.addf %71, %72 : vector<64x32xf32>
    %cst_28 = arith.constant 0.000000e+00 : f32
    %74 = vector.broadcast %cst_28 : f32 to vector<64x32xf32>
    %75 = arith.maximumf %73, %74 : vector<64x32xf32>
    %76 = arith.maximumf %57, %63 : vector<64x32xf32>
    %77 = arith.maximumf %69, %75 : vector<64x32xf32>
    %78 = arith.maximumf %76, %77 : vector<64x32xf32>
    %c0_29 = arith.constant 0 : index
    %c0_30 = arith.constant 0 : index
    %79 = vector.load %arg5[%c0_29, %c0_30] : memref<64x32xf32, #tpu.memory_space<vmem>>, vector<64x32xf32>
    tpu.vector_store %arg5[%c0_29, %c0_30], %78 {strides = array<i32>} : memref<64x32xf32, #tpu.memory_space<vmem>>, vector<64x32xf32>,
    return
  }
}

module attributes {stable_mosaic.version = 11 : i64} {
  func.func @_mlp_kernel(%arg0: memref<2x1024xf32, #tpu.memory_space<vmem>>, %arg1: memref<1024x120xf32, #tpu.memory_space<vmem>>, %arg2: memref<1x120xf32, #tpu.memory_space<vmem>>, %arg3: memref<120x84xf32, #tpu.memory_space<vmem>>, %arg4: memref<1x84xf32, #tpu.memory_space<vmem>>, %arg5: memref<84x10xf32, #tpu.memory_space<vmem>>, %arg6: memref<1x10xf32, #tpu.memory_space<vmem>>, %arg7: memref<2x10xf32, #tpu.memory_space<vmem>>) attributes {dimension_semantics = [], scalar_prefetch = 0 : i64, scratch_operands = 0 : i64, tpu.core_type = #tpu.core_type<tc>} {
    %c0 = arith.constant 0 : index
    %c0_0 = arith.constant 0 : index
    %0 = vector.load %arg0[%c0, %c0_0] : memref<2x1024xf32, #tpu.memory_space<vmem>>, vector<2x1024xf32>
    %c0_1 = arith.constant 0 : index
    %c0_2 = arith.constant 0 : index
    %1 = vector.load %arg1[%c0_1, %c0_2] : memref<1024x120xf32, #tpu.memory_space<vmem>>, vector<1024x120xf32>
    %cst = arith.constant dense<0.000000e+00> : vector<2x120xf32>
    %2 = tpu.matmul %0, %1, %cst {dimension_numbers = #tpu.dot_dimension_numbers<[1], [0], [0], [1], [0, 0, 1, 1], [], []>} : vector<2x1024xf32>, vector<1024x120xf32>, vector<2x120xf32> -> vector<2x120xf32>
    %c0_3 = arith.constant 0 : index
    %c0_4 = arith.constant 0 : index
    %3 = vector.load %arg2[%c0_3, %c0_4] : memref<1x120xf32, #tpu.memory_space<vmem>>, vector<1x120xf32>
    %4 = vector.broadcast %3 : vector<1x120xf32> to vector<2x120xf32>
    %5 = arith.addf %2, %4 : vector<2x120xf32>
    %cst_5 = arith.constant 0.000000e+00 : f32
    %6 = vector.broadcast %cst_5 : f32 to vector<2x120xf32>
    %7 = arith.maximumf %5, %6 : vector<2x120xf32>
    %c0_6 = arith.constant 0 : index
    %c0_7 = arith.constant 0 : index
    %8 = vector.load %arg3[%c0_6, %c0_7] : memref<120x84xf32, #tpu.memory_space<vmem>>, vector<120x84xf32>
    %cst_8 = arith.constant dense<0.000000e+00> : vector<2x84xf32>
    %9 = tpu.matmul %7, %8, %cst_8 {dimension_numbers = #tpu.dot_dimension_numbers<[1], [0], [0], [1], [0, 0, 1, 1], [], []>} : vector<2x120xf32>, vector<120x84xf32>, vector<2x84xf32> -> vector<2x84xf32>
    %c0_9 = arith.constant 0 : index
    %c0_10 = arith.constant 0 : index
    %10 = vector.load %arg4[%c0_9, %c0_10] : memref<1x84xf32, #tpu.memory_space<vmem>>, vector<1x84xf32>
    %11 = vector.broadcast %10 : vector<1x84xf32> to vector<2x84xf32>
    %12 = arith.addf %9, %11 : vector<2x84xf32>
    %cst_11 = arith.constant 0.000000e+00 : f32
    %13 = vector.broadcast %cst_11 : f32 to vector<2x84xf32>
    %14 = arith.maximumf %12, %13 : vector<2x84xf32>
    %c0_12 = arith.constant 0 : index
    %c0_13 = arith.constant 0 : index
    %15 = vector.load %arg5[%c0_12, %c0_13] : memref<84x10xf32, #tpu.memory_space<vmem>>, vector<84x10xf32>
    %cst_14 = arith.constant dense<0.000000e+00> : vector<2x10xf32>
    %16 = tpu.matmul %14, %15, %cst_14 {dimension_numbers = #tpu.dot_dimension_numbers<[1], [0], [0], [1], [0, 0, 1, 1], [], []>} : vector<2x84xf32>, vector<84x10xf32>, vector<2x10xf32> -> vector<2x10xf32>
    %c0_15 = arith.constant 0 : index
    %c0_16 = arith.constant 0 : index
    %17 = vector.load %arg6[%c0_15, %c0_16] : memref<1x10xf32, #tpu.memory_space<vmem>>, vector<1x10xf32>
    %18 = vector.broadcast %17 : vector<1x10xf32> to vector<2x10xf32>
    %19 = arith.addf %16, %18 : vector<2x10xf32>
    %c0_17 = arith.constant 0 : index
    %c0_18 = arith.constant 0 : index
    %20 = vector.load %arg7[%c0_17, %c0_18] : memref<2x10xf32, #tpu.memory_space<vmem>>, vector<2x10xf32>
    tpu.vector_store %arg7[%c0_17, %c0_18], %19 {strides = array<i32>} : memref<2x10xf32, #tpu.memory_space<vmem>>, vector<2x10xf32>,
    return
  }
}

</mosaic_0001>

<llo_original>
// kernel: batchnorm_net_forward.4
$region0: #{batchnorm_net_forward.4}
  #allocation0 [shape = 'u32[]', space=smem, size = 0x4, offset = 0x4, fixed_abs, tag = 'smem constant byte address 0x4 - core index']
  #allocation1 [shape = 'u32[144,128]{1,0:T(1,128)}', space=vmem, size = 0x12000, scoped, tag = 'internal scratch']
  %s0 = inlined_call_operand.vmem [shape: f32[4,27,512], index: 0, kind: input, shape index: {}]
  %s1 = inlined_call_operand.vmem [shape: f32[16,27], index: 1, kind: input, shape index: {}]
  %s2 = inlined_call_operand.vmem [shape: f32[16,1], index: 2, kind: input, shape index: {}]
  %s3 = inlined_call_operand.vmem [shape: f32[16,1], index: 3, kind: input, shape index: {}]
  %s4 = inlined_call_operand.vmem [shape: f32[16,1], index: 4, kind: input, shape index: {}]
  %s5 = inlined_call_operand.vmem [shape: f32[16,512], index: 5, kind: output, shape index: {}]
  %s6 = sld [smem:[#allocation0]]
  $region30: #{batchnorm_net_forward.4} parent=0
    _
  %s8 = ssub.s32 1, %s6
  %s9 = scalar_select 0, %s8, %s6
  // Predicated region
  $region2: #{batchnorm_net_forward.4} parent=0 // pred_check
    _
  $region3: #{batchnorm_net_forward.4} parent=0 // pred_check_branch
    %11 = sbr.rel (0) target = $region5
  $region4: #{batchnorm_net_forward.4} parent=0 // pred_region
    _
  $region5: #{batchnorm_net_forward.4} parent=0 // pred_fallthru
    _
  // Predicated region
  $region6: #{batchnorm_net_forward.4} parent=0 // pred_check
    _
  $region7: #{batchnorm_net_forward.4} parent=0 // pred_check_branch
    %13 = sbr.rel (0) target = $region9
  $region8: #{batchnorm_net_forward.4} parent=0 // pred_region
    _
  $region9: #{batchnorm_net_forward.4} parent=0 // pred_fallthru
    _
  // Predicated region
  $region10: #{batchnorm_net_forward.4} parent=0 // pred_check
    _
  $region11: #{batchnorm_net_forward.4} parent=0 // pred_check_branch
    %15 = sbr.rel (0) target = $region13
  $region12: #{batchnorm_net_forward.4} parent=0 // pred_region
    _
  $region13: #{batchnorm_net_forward.4} parent=0 // pred_fallthru
    _
  // Predicated region
  $region14: #{batchnorm_net_forward.4} parent=0 // pred_check
    _
  $region15: #{batchnorm_net_forward.4} parent=0 // pred_check_branch
    %17 = sbr.rel (0) target = $region17
  $region16: #{batchnorm_net_forward.4} parent=0 // pred_region
    _
  $region17: #{batchnorm_net_forward.4} parent=0 // pred_fallthru
    _
  // Predicated region
  $region18: #{batchnorm_net_forward.4} parent=0 // pred_check
    _
  $region19: #{batchnorm_net_forward.4} parent=0 // pred_check_branch
    %19 = sbr.rel (0) target = $region21
  $region20: #{batchnorm_net_forward.4} parent=0 // pred_region
    _
  $region21: #{batchnorm_net_forward.4} parent=0 // pred_fallthru
    _
  %v20 = vld [vmem:[%s1] sm:$0xff]
  %v21 = vld [vmem:[%s1 + $0x8] sm:$0xff]
  %v22 = vld [vmem:[%s2] sm:$0xff]
  %v23 = vld [vmem:[%s2 + $0x8] sm:$0xff]
  %v24 = vld [vmem:[%s0] sm:$0xff]
  %v25 = vld [vmem:[%s0 + $0x8] sm:$0xff]
  %v26 = vld [vmem:[%s0 + $0x10] sm:$0xff]
  %v27 = vld [vmem:[%s0 + $0x18] sm:$0xff]
  %v28 = vld [vmem:[%s0 + $0x20] sm:$0xff]
  %v29 = vld [vmem:[%s0 + $0x28] sm:$0xff]
  %v30 = vld [vmem:[%s0 + $0x30] sm:$0xff]
  %v31 = vld [vmem:[%s0 + $0x38] sm:$0xff]
  %v32 = vld [vmem:[%s0 + $0x40] sm:$0xff]
  %v33 = vld [vmem:[%s0 + $0x48] sm:$0xff]
  %v34 = vld [vmem:[%s0 + $0x50] sm:$0xff]
  %v35 = vld [vmem:[%s0 + $0x58] sm:$0xff]
  %v36 = vld [vmem:[%s0 + $0x60] sm:$0x7]
  %v37 = vld [vmem:[%s0 + $0x68] sm:$0x7]
  %v38 = vld [vmem:[%s0 + $0x70] sm:$0x7]
  %v39 = vld [vmem:[%s0 + $0x78] sm:$0x7]
  %41 = vset.pattern.permute.xlu0 0
  %42 = vperm.xlu0 %41, %v22
  %v43 = vpop.permute.xlu0 %42
  %46 = vset.pattern.permute.xlu0 0
  %47 = vperm.xlu0 %46, %v23
  %v48 = vpop.permute.xlu0 %47
  %vm50 = vcmask 220160
  %v52 = vsel %vm50, %v20, 0
  %v55 = vsel %vm50, %v21, 0
  %vm57 = vcmask 1042432
  %v59 = vsel %vm57, %v36, 0
  %v62 = vsel %vm57, %v37, 0
  %v65 = vsel %vm57, %v38, 0
  %v68 = vsel %vm57, %v39, 0
  %70 = vmatprep.subr.mxu0 %v25
  %71 = vmatpush1.msra.mxu0 %v24
  %72 = vmatprep.subr.mxu0 %v29
  %73 = vmatpush1.msra.mxu0 %v28
  %74 = vmatprep.subr.mxu0 %v33
  %75 = vmatpush1.msra.mxu0 %v32
  %76 = vmatprep.subr.mxu0 %v62
  %77 = vmatpush1.msra.mxu0 %v59
  %78 = vmatprep.subr.mxu0 0.0
  %79 = vmatpush1.msra.mxu0 0.0
  %80 = vmatprep.subr.mxu0 0.0
  %81 = vmatpush1.msra.mxu0 0.0
  %82 = vmatprep.subr.mxu0 0.0
  %83 = vmatpush1.msra.mxu0 0.0
  %84 = vmatprep.subr.mxu0 0.0
  %85 = vmatpush1.msra.mxu0 0.0
  %86 = vmatprep.subr.mxu0 0.0
  %87 = vmatpush1.msra.mxu0 0.0
  %88 = vmatprep.subr.mxu0 0.0
  %89 = vmatpush1.msra.mxu0 0.0
  %90 = vmatprep.subr.mxu0 0.0
  %91 = vmatpush1.msra.mxu0 0.0
  %92 = vmatprep.subr.mxu0 0.0
  %93 = vmatpush1.msra.mxu0 0.0
  %94 = vmatprep.subr.mxu0 0.0
  %95 = vmatpush1.msra.mxu0 0.0
  %96 = vmatprep.subr.mxu0 0.0
  %97 = vmatpush1.msra.mxu0 0.0
  %98 = vmatprep.subr.mxu0 0.0
  %99 = vmatpush1.msra.mxu0 0.0
  %100 = vmatprep.subr.mxu0 0.0
  %101 = vmatpush1.msra.mxu0 0.0
  %102 = vmatprep.subr.mxu0 0.0
  %103 = vmatpush1.msra.mxu0 0.0
  %104 = vmatprep.subr.mxu0 0.0
  %105 = vmatpush1.msra.mxu0 0.0
  %106 = vmatprep.subr.mxu0 0.0
  %107 = vmatpush1.msra.mxu0 0.0
  %108 = vmatprep.subr.mxu0 0.0
  %109 = vmatpush1.msra.mxu0 0.0
  %110 = vmatprep.subr.mxu0 0.0
  %111 = vmatpush1.msra.mxu0 0.0
  %112 = vmatprep.subr.mxu0 0.0
  %113 = vmatpush1.msra.mxu0 0.0
  %114 = vmatprep.subr.mxu0 0.0
  %115 = vmatpush1.msra.mxu0 0.0
  %116 = vmatprep.subr.mxu0 0.0
  %117 = vmatpush1.msra.mxu0 0.0
  %118 = vmatprep.subr.mxu0 0.0
  %119 = vmatpush1.msra.mxu0 0.0
  %120 = vmatprep.subr.mxu0 0.0
  %121 = vmatpush1.msra.mxu0 0.0
  %122 = vmatprep.subr.mxu0 0.0
  %123 = vmatpush1.msra.mxu0 0.0
  %124 = vmatprep.subr.mxu0 0.0
  %125 = vmatpush1.msra.mxu0 0.0
  %126 = vmatprep.subr.mxu0 0.0
  %127 = vmatpush1.msra.mxu0 0.0
  %128 = vmatprep.subr.mxu0 0.0
  %129 = vmatpush1.msra.mxu0 0.0
  %130 = vmatprep.subr.mxu0 0.0
  %131 = vmatpush1.msra.mxu0 0.0
  %132 = vmatprep.subr.mxu0 0.0
  %133 = vmatpush1.msra.mxu0 0.0
  %134 = vmatprep.mubr.f32.mxu0 0.0
  %135 = vmatmul.mubr.f32.gmra.mrb[0].mxu0 %v52
  %v136 = vpop.f32.mrb[0].mxu0
  %v137 = vadd.f32 %v43, %v136
  %v138 = vpop.f32.mrb[0].mxu0
  %v139 = vadd.f32 %v43, %v138
  %140 = vmatprep.mubr.f32.mxu0 0.0
  %141 = vmatmul.mubr.f32.gmra.mrb[0].mxu0 %v55
  %v142 = vpop.f32.mrb[0].mxu0
  %v143 = vadd.f32 %v48, %v142
  %v144 = vpop.f32.mrb[0].mxu0
  %v145 = vadd.f32 %v48, %v144
  %146 = vdwg.mxu0
  %147 = vmatprep.subr.mxu0 %v27
  %148 = vmatpush1.msra.mxu0 %v26
  %149 = vmatprep.subr.mxu0 %v31
  %150 = vmatpush1.msra.mxu0 %v30
  %151 = vmatprep.subr.mxu0 %v35
  %152 = vmatpush1.msra.mxu0 %v34
  %153 = vmatprep.subr.mxu0 %v68
  %154 = vmatpush1.msra.mxu0 %v65
  %155 = vmatprep.subr.mxu0 0.0
  %156 = vmatpush1.msra.mxu0 0.0
  %157 = vmatprep.subr.mxu0 0.0
  %158 = vmatpush1.msra.mxu0 0.0
  %159 = vmatprep.subr.mxu0 0.0
  %160 = vmatpush1.msra.mxu0 0.0
  %161 = vmatprep.subr.mxu0 0.0
  %162 = vmatpush1.msra.mxu0 0.0
  %163 = vmatprep.subr.mxu0 0.0
  %164 = vmatpush1.msra.mxu0 0.0
  %165 = vmatprep.subr.mxu0 0.0
  %166 = vmatpush1.msra.mxu0 0.0
  %167 = vmatprep.subr.mxu0 0.0
  %168 = vmatpush1.msra.mxu0 0.0
  %169 = vmatprep.subr.mxu0 0.0
  %170 = vmatpush1.msra.mxu0 0.0
  %171 = vmatprep.subr.mxu0 0.0
  %172 = vmatpush1.msra.mxu0 0.0
  %173 = vmatprep.subr.mxu0 0.0
  %174 = vmatpush1.msra.mxu0 0.0
  %175 = vmatprep.subr.mxu0 0.0
  %176 = vmatpush1.msra.mxu0 0.0
  %177 = vmatprep.subr.mxu0 0.0
  %178 = vmatpush1.msra.mxu0 0.0
  %179 = vmatprep.subr.mxu0 0.0
  %180 = vmatpush1.msra.mxu0 0.0
  %181 = vmatprep.subr.mxu0 0.0
  %182 = vmatpush1.msra.mxu0 0.0
  %183 = vmatprep.subr.mxu0 0.0
  %184 = vmatpush1.msra.mxu0 0.0
  %185 = vmatprep.subr.mxu0 0.0
  %186 = vmatpush1.msra.mxu0 0.0
  %187 = vmatprep.subr.mxu0 0.0
  %188 = vmatpush1.msra.mxu0 0.0
  %189 = vmatprep.subr.mxu0 0.0
  %190 = vmatpush1.msra.mxu0 0.0
  %191 = vmatprep.subr.mxu0 0.0
  %192 = vmatpush1.msra.mxu0 0.0
  %193 = vmatprep.subr.mxu0 0.0
  %194 = vmatpush1.msra.mxu0 0.0
  %195 = vmatprep.subr.mxu0 0.0
  %196 = vmatpush1.msra.mxu0 0.0
  %197 = vmatprep.subr.mxu0 0.0
  %198 = vmatpush1.msra.mxu0 0.0
  %199 = vmatprep.subr.mxu0 0.0
  %200 = vmatpush1.msra.mxu0 0.0
  %201 = vmatprep.subr.mxu0 0.0
  %202 = vmatpush1.msra.mxu0 0.0
  %203 = vmatprep.subr.mxu0 0.0
  %204 = vmatpush1.msra.mxu0 0.0
  %205 = vmatprep.subr.mxu0 0.0
  %206 = vmatpush1.msra.mxu0 0.0
  %207 = vmatprep.subr.mxu0 0.0
  %208 = vmatpush1.msra.mxu0 0.0
  %209 = vmatprep.subr.mxu0 0.0
  %210 = vmatpush1.msra.mxu0 0.0
  %211 = vmatprep.mubr.f32.mxu0 0.0
  %212 = vmatmul.mubr.f32.gmra.mrb[0].mxu0 %v52
  %v213 = vpop.f32.mrb[0].mxu0
  %v214 = vadd.f32 %v43, %v213
  %v215 = vpop.f32.mrb[0].mxu0
  %v216 = vadd.f32 %v43, %v215
  %217 = vmatprep.mubr.f32.mxu0 0.0
  %218 = vmatmul.mubr.f32.gmra.mrb[0].mxu0 %v55
  %v219 = vpop.f32.mrb[0].mxu0
  %v220 = vadd.f32 %v48, %v219
  %v221 = vpop.f32.mrb[0].mxu0
  %v222 = vadd.f32 %v48, %v221
  %223 = vdwg.mxu0
  %s224 = scalar_lea.vmem %s0, 128
  %v225 = vld [vmem:[%s224] sm:$0xff]
  %v226 = vld [vmem:[%s224 + $0x8] sm:$0xff]
  %v227 = vld [vmem:[%s224 + $0x10] sm:$0xff]
  %v228 = vld [vmem:[%s224 + $0x18] sm:$0xff]
  %v229 = vld [vmem:[%s224 + $0x20] sm:$0xff]
  %v230 = vld [vmem:[%s224 + $0x28] sm:$0xff]
  %v231 = vld [vmem:[%s224 + $0x30] sm:$0xff]
  %v232 = vld [vmem:[%s224 + $0x38] sm:$0xff]
  %v233 = vld [vmem:[%s224 + $0x40] sm:$0xff]
  %v234 = vld [vmem:[%s224 + $0x48] sm:$0xff]
  %v235 = vld [vmem:[%s224 + $0x50] sm:$0xff]
  %v236 = vld [vmem:[%s224 + $0x58] sm:$0xff]
  %v237 = vld [vmem:[%s224 + $0x60] sm:$0x7]
  %v238 = vld [vmem:[%s224 + $0x68] sm:$0x7]
  %v239 = vld [vmem:[%s224 + $0x70] sm:$0x7]
  %v240 = vld [vmem:[%s224 + $0x78] sm:$0x7]
  %v242 = vsel %vm57, %v237, 0
  %v245 = vsel %vm57, %v238, 0
  %v248 = vsel %vm57, %v239, 0
  %v251 = vsel %vm57, %v240, 0
  %253 = vmatprep.subr.mxu0 %v226
  %254 = vmatpush1.msra.mxu0 %v225
  %255 = vmatprep.subr.mxu0 %v230
  %256 = vmatpush1.msra.mxu0 %v229
  %257 = vmatprep.subr.mxu0 %v234
  %258 = vmatpush1.msra.mxu0 %v233
  %259 = vmatprep.subr.mxu0 %v245
  %260 = vmatpush1.msra.mxu0 %v242
  %261 = vmatprep.subr.mxu0 0.0
  %262 = vmatpush1.msra.mxu0 0.0
  %263 = vmatprep.subr.mxu0 0.0
  %264 = vmatpush1.msra.mxu0 0.0
  %265 = vmatprep.subr.mxu0 0.0
  %266 = vmatpush1.msra.mxu0 0.0
  %267 = vmatprep.subr.mxu0 0.0
  %268 = vmatpush1.msra.mxu0 0.0
  %269 = vmatprep.subr.mxu0 0.0
  %270 = vmatpush1.msra.mxu0 0.0
  %271 = vmatprep.subr.mxu0 0.0
  %272 = vmatpush1.msra.mxu0 0.0
  %273 = vmatprep.subr.mxu0 0.0
  %274 = vmatpush1.msra.mxu0 0.0
  %275 = vmatprep.subr.mxu0 0.0
  %276 = vmatpush1.msra.mxu0 0.0
  %277 = vmatprep.subr.mxu0 0.0
  %278 = vmatpush1.msra.mxu0 0.0
  %279 = vmatprep.subr.mxu0 0.0
  %280 = vmatpush1.msra.mxu0 0.0
  %281 = vmatprep.subr.mxu0 0.0
  %282 = vmatpush1.msra.mxu0 0.0
  %283 = vmatprep.subr.mxu0 0.0
  %284 = vmatpush1.msra.mxu0 0.0
  %285 = vmatprep.subr.mxu0 0.0
  %286 = vmatpush1.msra.mxu0 0.0
  %287 = vmatprep.subr.mxu0 0.0
  %288 = vmatpush1.msra.mxu0 0.0
  %289 = vmatprep.subr.mxu0 0.0
  %290 = vmatpush1.msra.mxu0 0.0
  %291 = vmatprep.subr.mxu0 0.0
  %292 = vmatpush1.msra.mxu0 0.0
  %293 = vmatprep.subr.mxu0 0.0
  %294 = vmatpush1.msra.mxu0 0.0
  %295 = vmatprep.subr.mxu0 0.0
  %296 = vmatpush1.msra.mxu0 0.0
  %297 = vmatprep.subr.mxu0 0.0
  %298 = vmatpush1.msra.mxu0 0.0
  %299 = vmatprep.subr.mxu0 0.0
  %300 = vmatpush1.msra.mxu0 0.0
  %301 = vmatprep.subr.mxu0 0.0
  %302 = vmatpush1.msra.mxu0 0.0
  %303 = vmatprep.subr.mxu0 0.0
  %304 = vmatpush1.msra.mxu0 0.0
  %305 = vmatprep.subr.mxu0 0.0
  %306 = vmatpush1.msra.mxu0 0.0
  %307 = vmatprep.subr.mxu0 0.0
  %308 = vmatpush1.msra.mxu0 0.0
  %309 = vmatprep.subr.mxu0 0.0
  %310 = vmatpush1.msra.mxu0 0.0
  %311 = vmatprep.subr.mxu0 0.0
  %312 = vmatpush1.msra.mxu0 0.0
  %313 = vmatprep.subr.mxu0 0.0
  %314 = vmatpush1.msra.mxu0 0.0
  %315 = vmatprep.subr.mxu0 0.0
  %316 = vmatpush1.msra.mxu0 0.0
  %317 = vmatprep.mubr.f32.mxu0 0.0
  %318 = vmatmul.mubr.f32.gmra.mrb[0].mxu0 %v52
  %v319 = vpop.f32.mrb[0].mxu0
  %v320 = vadd.f32 %v43, %v319
  %v321 = vpop.f32.mrb[0].mxu0
  %v322 = vadd.f32 %v43, %v321
  %323 = vmatprep.mubr.f32.mxu0 0.0
  %324 = vmatmul.mubr.f32.gmra.mrb[0].mxu0 %v55
  %v325 = vpop.f32.mrb[0].mxu0
  %v326 = vadd.f32 %v48, %v325
  %v327 = vpop.f32.mrb[0].mxu0
  %v328 = vadd.f32 %v48, %v327
  %329 = vdwg.mxu0
  %330 = vmatprep.subr.mxu0 %v228
  %331 = vmatpush1.msra.mxu0 %v227
  %332 = vmatprep.subr.mxu0 %v232
  %333 = vmatpush1.msra.mxu0 %v231
  %334 = vmatprep.subr.mxu0 %v236
  %335 = vmatpush1.msra.mxu0 %v235
  %336 = vmatprep.subr.mxu0 %v251
  %337 = vmatpush1.msra.mxu0 %v248
  %338 = vmatprep.subr.mxu0 0.0
  %339 = vmatpush1.msra.mxu0 0.0
  %340 = vmatprep.subr.mxu0 0.0
  %341 = vmatpush1.msra.mxu0 0.0
  %342 = vmatprep.subr.mxu0 0.0
  %343 = vmatpush1.msra.mxu0 0.0
  %344 = vmatprep.subr.mxu0 0.0
  %345 = vmatpush1.msra.mxu0 0.0
  %346 = vmatprep.subr.mxu0 0.0
  %347 = vmatpush1.msra.mxu0 0.0
  %348 = vmatprep.subr.mxu0 0.0
  %349 = vmatpush1.msra.mxu0 0.0
  %350 = vmatprep.subr.mxu0 0.0
  %351 = vmatpush1.msra.mxu0 0.0
  %352 = vmatprep.subr.mxu0 0.0
  %353 = vmatpush1.msra.mxu0 0.0
  %354 = vmatprep.subr.mxu0 0.0
  %355 = vmatpush1.msra.mxu0 0.0
  %356 = vmatprep.subr.mxu0 0.0
  %357 = vmatpush1.msra.mxu0 0.0
  %358 = vmatprep.subr.mxu0 0.0
  %359 = vmatpush1.msra.mxu0 0.0
  %360 = vmatprep.subr.mxu0 0.0
  %361 = vmatpush1.msra.mxu0 0.0
  %362 = vmatprep.subr.mxu0 0.0
  %363 = vmatpush1.msra.mxu0 0.0
  %364 = vmatprep.subr.mxu0 0.0
  %365 = vmatpush1.msra.mxu0 0.0
  %366 = vmatprep.subr.mxu0 0.0
  %367 = vmatpush1.msra.mxu0 0.0
  %368 = vmatprep.subr.mxu0 0.0
  %369 = vmatpush1.msra.mxu0 0.0
  %370 = vmatprep.subr.mxu0 0.0
  %371 = vmatpush1.msra.mxu0 0.0
  %372 = vmatprep.subr.mxu0 0.0
  %373 = vmatpush1.msra.mxu0 0.0
  %374 = vmatprep.subr.mxu0 0.0
  %375 = vmatpush1.msra.mxu0 0.0
  %376 = vmatprep.subr.mxu0 0.0
  %377 = vmatpush1.msra.mxu0 0.0
  %378 = vmatprep.subr.mxu0 0.0
  %379 = vmatpush1.msra.mxu0 0.0
  %380 = vmatprep.subr.mxu0 0.0
  %381 = vmatpush1.msra.mxu0 0.0
  %382 = vmatprep.subr.mxu0 0.0
  %383 = vmatpush1.msra.mxu0 0.0
  %384 = vmatprep.subr.mxu0 0.0
  %385 = vmatpush1.msra.mxu0 0.0
  %386 = vmatprep.subr.mxu0 0.0
  %387 = vmatpush1.msra.mxu0 0.0
  %388 = vmatprep.subr.mxu0 0.0
  %389 = vmatpush1.msra.mxu0 0.0
  %390 = vmatprep.subr.mxu0 0.0
  %391 = vmatpush1.msra.mxu0 0.0
  %392 = vmatprep.subr.mxu0 0.0
  %393 = vmatpush1.msra.mxu0 0.0
  %394 = vmatprep.mubr.f32.mxu0 0.0
  %395 = vmatmul.mubr.f32.gmra.mrb[0].mxu0 %v52
  %v396 = vpop.f32.mrb[0].mxu0
  %v397 = vadd.f32 %v43, %v396
  %v398 = vpop.f32.mrb[0].mxu0
  %v399 = vadd.f32 %v43, %v398
  %400 = vmatprep.mubr.f32.mxu0 0.0
  %401 = vmatmul.mubr.f32.gmra.mrb[0].mxu0 %v55
  %v402 = vpop.f32.mrb[0].mxu0
  %v403 = vadd.f32 %v48, %v402
  %v404 = vpop.f32.mrb[0].mxu0
  %v405 = vadd.f32 %v48, %v404
  %406 = vdwg.mxu0
  %s407 = scalar_lea.vmem %s0, 256
  %v408 = vld [vmem:[%s407] sm:$0xff]
  %v409 = vld [vmem:[%s407 + $0x8] sm:$0xff]
  %v410 = vld [vmem:[%s407 + $0x10] sm:$0xff]
  %v411 = vld [vmem:[%s407 + $0x18] sm:$0xff]
  %v412 = vld [vmem:[%s407 + $0x20] sm:$0xff]
  %v413 = vld [vmem:[%s407 + $0x28] sm:$0xff]
  %v414 = vld [vmem:[%s407 + $0x30] sm:$0xff]
  %v415 = vld [vmem:[%s407 + $0x38] sm:$0xff]
  %v416 = vld [vmem:[%s407 + $0x40] sm:$0xff]
  %v417 = vld [vmem:[%s407 + $0x48] sm:$0xff]
  %v418 = vld [vmem:[%s407 + $0x50] sm:$0xff]
  %v419 = vld [vmem:[%s407 + $0x58] sm:$0xff]
  %v420 = vld [vmem:[%s407 + $0x60] sm:$0x7]
  %v421 = vld [vmem:[%s407 + $0x68] sm:$0x7]
  %v422 = vld [vmem:[%s407 + $0x70] sm:$0x7]
  %v423 = vld [vmem:[%s407 + $0x78] sm:$0x7]
  %v425 = vsel %vm57, %v420, 0
  %v428 = vsel %vm57, %v421, 0
  %v431 = vsel %vm57, %v422, 0
  %v434 = vsel %vm57, %v423, 0
  %436 = vmatprep.subr.mxu0 %v409
  %437 = vmatpush1.msra.mxu0 %v408
  %438 = vmatprep.subr.mxu0 %v413
  %439 = vmatpush1.msra.mxu0 %v412
  %440 = vmatprep.subr.mxu0 %v417
  %441 = vmatpush1.msra.mxu0 %v416
  %442 = vmatprep.subr.mxu0 %v428
  %443 = vmatpush1.msra.mxu0 %v425
  %444 = vmatprep.subr.mxu0 0.0
  %445 = vmatpush1.msra.mxu0 0.0
  %446 = vmatprep.subr.mxu0 0.0
  %447 = vmatpush1.msra.mxu0 0.0
  %448 = vmatprep.subr.mxu0 0.0
  %449 = vmatpush1.msra.mxu0 0.0
  %450 = vmatprep.subr.mxu0 0.0
  %451 = vmatpush1.msra.mxu0 0.0
  %452 = vmatprep.subr.mxu0 0.0
  %453 = vmatpush1.msra.mxu0 0.0
  %454 = vmatprep.subr.mxu0 0.0
  %455 = vmatpush1.msra.mxu0 0.0
  %456 = vmatprep.subr.mxu0 0.0
  %457 = vmatpush1.msra.mxu0 0.0
  %458 = vmatprep.subr.mxu0 0.0
  %459 = vmatpush1.msra.mxu0 0.0
  %460 = vmatprep.subr.mxu0 0.0
  %461 = vmatpush1.msra.mxu0 0.0
  %462 = vmatprep.subr.mxu0 0.0
  %463 = vmatpush1.msra.mxu0 0.0
  %464 = vmatprep.subr.mxu0 0.0
  %465 = vmatpush1.msra.mxu0 0.0
  %466 = vmatprep.subr.mxu0 0.0
  %467 = vmatpush1.msra.mxu0 0.0
  %468 = vmatprep.subr.mxu0 0.0
  %469 = vmatpush1.msra.mxu0 0.0
  %470 = vmatprep.subr.mxu0 0.0
  %471 = vmatpush1.msra.mxu0 0.0
  %472 = vmatprep.subr.mxu0 0.0
  %473 = vmatpush1.msra.mxu0 0.0
  %474 = vmatprep.subr.mxu0 0.0
  %475 = vmatpush1.msra.mxu0 0.0
  %476 = vmatprep.subr.mxu0 0.0
  %477 = vmatpush1.msra.mxu0 0.0
  %478 = vmatprep.subr.mxu0 0.0
  %479 = vmatpush1.msra.mxu0 0.0
  %480 = vmatprep.subr.mxu0 0.0
  %481 = vmatpush1.msra.mxu0 0.0
  %482 = vmatprep.subr.mxu0 0.0
  %483 = vmatpush1.msra.mxu0 0.0
  %484 = vmatprep.subr.mxu0 0.0
  %485 = vmatpush1.msra.mxu0 0.0
  %486 = vmatprep.subr.mxu0 0.0
  %487 = vmatpush1.msra.mxu0 0.0
  %488 = vmatprep.subr.mxu0 0.0
  %489 = vmatpush1.msra.mxu0 0.0
  %490 = vmatprep.subr.mxu0 0.0
  %491 = vmatpush1.msra.mxu0 0.0
  %492 = vmatprep.subr.mxu0 0.0
  %493 = vmatpush1.msra.mxu0 0.0
  %494 = vmatprep.subr.mxu0 0.0
  %495 = vmatpush1.msra.mxu0 0.0
  %496 = vmatprep.subr.mxu0 0.0
  %497 = vmatpush1.msra.mxu0 0.0
  %498 = vmatprep.subr.mxu0 0.0
  %499 = vmatpush1.msra.mxu0 0.0
  %500 = vmatprep.mubr.f32.mxu0 0.0
  %501 = vmatmul.mubr.f32.gmra.mrb[0].mxu0 %v52
  %v502 = vpop.f32.mrb[0].mxu0
  %v503 = vadd.f32 %v43, %v502
  %v504 = vpop.f32.mrb[0].mxu0
  %v505 = vadd.f32 %v43, %v504
  %506 = vmatprep.mubr.f32.mxu0 0.0
  %507 = vmatmul.mubr.f32.gmra.mrb[0].mxu0 %v55
  %v508 = vpop.f32.mrb[0].mxu0
  %v509 = vadd.f32 %v48, %v508
  %v510 = vpop.f32.mrb[0].mxu0
  %v511 = vadd.f32 %v48, %v510
  %512 = vdwg.mxu0
  %513 = vmatprep.subr.mxu0 %v411
  %514 = vmatpush1.msra.mxu0 %v410
  %515 = vmatprep.subr.mxu0 %v415
  %516 = vmatpush1.msra.mxu0 %v414
  %517 = vmatprep.subr.mxu0 %v419
  %518 = vmatpush1.msra.mxu0 %v418
  %519 = vmatprep.subr.mxu0 %v434
  %520 = vmatpush1.msra.mxu0 %v431
  %521 = vmatprep.subr.mxu0 0.0
  %522 = vmatpush1.msra.mxu0 0.0
  %523 = vmatprep.subr.mxu0 0.0
  %524 = vmatpush1.msra.mxu0 0.0
  %525 = vmatprep.subr.mxu0 0.0
  %526 = vmatpush1.msra.mxu0 0.0
  %527 = vmatprep.subr.mxu0 0.0
  %528 = vmatpush1.msra.mxu0 0.0
  %529 = vmatprep.subr.mxu0 0.0
  %530 = vmatpush1.msra.mxu0 0.0
  %531 = vmatprep.subr.mxu0 0.0
  %532 = vmatpush1.msra.mxu0 0.0
  %533 = vmatprep.subr.mxu0 0.0
  %534 = vmatpush1.msra.mxu0 0.0
  %535 = vmatprep.subr.mxu0 0.0
  %536 = vmatpush1.msra.mxu0 0.0
  %537 = vmatprep.subr.mxu0 0.0
  %538 = vmatpush1.msra.mxu0 0.0
  %539 = vmatprep.subr.mxu0 0.0
  %540 = vmatpush1.msra.mxu0 0.0
  %541 = vmatprep.subr.mxu0 0.0
  %542 = vmatpush1.msra.mxu0 0.0
  %543 = vmatprep.subr.mxu0 0.0
  %544 = vmatpush1.msra.mxu0 0.0
  %545 = vmatprep.subr.mxu0 0.0
  %546 = vmatpush1.msra.mxu0 0.0
  %547 = vmatprep.subr.mxu0 0.0
  %548 = vmatpush1.msra.mxu0 0.0
  %549 = vmatprep.subr.mxu0 0.0
  %550 = vmatpush1.msra.mxu0 0.0
  %551 = vmatprep.subr.mxu0 0.0
  %552 = vmatpush1.msra.mxu0 0.0
  %553 = vmatprep.subr.mxu0 0.0
  %554 = vmatpush1.msra.mxu0 0.0
  %555 = vmatprep.subr.mxu0 0.0
  %556 = vmatpush1.msra.mxu0 0.0
  %557 = vmatprep.subr.mxu0 0.0
  %558 = vmatpush1.msra.mxu0 0.0
  %559 = vmatprep.subr.mxu0 0.0
  %560 = vmatpush1.msra.mxu0 0.0
  %561 = vmatprep.subr.mxu0 0.0
  %562 = vmatpush1.msra.mxu0 0.0
  %563 = vmatprep.subr.mxu0 0.0
  %564 = vmatpush1.msra.mxu0 0.0
  %565 = vmatprep.subr.mxu0 0.0
  %566 = vmatpush1.msra.mxu0 0.0
  %567 = vmatprep.subr.mxu0 0.0
  %568 = vmatpush1.msra.mxu0 0.0
  %569 = vmatprep.subr.mxu0 0.0
  %570 = vmatpush1.msra.mxu0 0.0
  %571 = vmatprep.subr.mxu0 0.0
  %572 = vmatpush1.msra.mxu0 0.0
  %573 = vmatprep.subr.mxu0 0.0
  %574 = vmatpush1.msra.mxu0 0.0
  %575 = vmatprep.subr.mxu0 0.0
  %576 = vmatpush1.msra.mxu0 0.0
  %577 = vmatprep.mubr.f32.mxu0 0.0
  %578 = vmatmul.mubr.f32.gmra.mrb[0].mxu0 %v52
  %v579 = vpop.f32.mrb[0].mxu0
  %v580 = vadd.f32 %v43, %v579
  %v581 = vpop.f32.mrb[0].mxu0
  %v582 = vadd.f32 %v43, %v581
  %583 = vmatprep.mubr.f32.mxu0 0.0
  %584 = vmatmul.mubr.f32.gmra.mrb[0].mxu0 %v55
  %v585 = vpop.f32.mrb[0].mxu0
  %v586 = vadd.f32 %v48, %v585
  %v587 = vpop.f32.mrb[0].mxu0
  %v588 = vadd.f32 %v48, %v587
  %589 = vdwg.mxu0
  %s590 = scalar_lea.vmem %s0, 384
  %v591 = vld [vmem:[%s590] sm:$0xff]
  %v592 = vld [vmem:[%s590 + $0x8] sm:$0xff]
  %v593 = vld [vmem:[%s590 + $0x10] sm:$0xff]
  %v594 = vld [vmem:[%s590 + $0x18] sm:$0xff]
  %v595 = vld [vmem:[%s590 + $0x20] sm:$0xff]
  %v596 = vld [vmem:[%s590 + $0x28] sm:$0xff]
  %v597 = vld [vmem:[%s590 + $0x30] sm:$0xff]
  %v598 = vld [vmem:[%s590 + $0x38] sm:$0xff]
  %v599 = vld [vmem:[%s590 + $0x40] sm:$0xff]
  %v600 = vld [vmem:[%s590 + $0x48] sm:$0xff]
  %v601 = vld [vmem:[%s590 + $0x50] sm:$0xff]
  %v602 = vld [vmem:[%s590 + $0x58] sm:$0xff]
  %v603 = vld [vmem:[%s590 + $0x60] sm:$0x7]
  %v604 = vld [vmem:[%s590 + $0x68] sm:$0x7]
  %v605 = vld [vmem:[%s590 + $0x70] sm:$0x7]
  %v606 = vld [vmem:[%s590 + $0x78] sm:$0x7]
  %v608 = vsel %vm57, %v603, 0
  %v611 = vsel %vm57, %v604, 0
  %v614 = vsel %vm57, %v605, 0
  %v617 = vsel %vm57, %v606, 0
  %619 = vmatprep.subr.mxu0 %v592
  %620 = vmatpush1.msra.mxu0 %v591
  %621 = vmatprep.subr.mxu0 %v596
  %622 = vmatpush1.msra.mxu0 %v595
  %623 = vmatprep.subr.mxu0 %v600
  %624 = vmatpush1.msra.mxu0 %v599
  %625 = vmatprep.subr.mxu0 %v611
  %626 = vmatpush1.msra.mxu0 %v608
  %627 = vmatprep.subr.mxu0 0.0
  %628 = vmatpush1.msra.mxu0 0.0
  %629 = vmatprep.subr.mxu0 0.0
  %630 = vmatpush1.msra.mxu0 0.0
  %631 = vmatprep.subr.mxu0 0.0
  %632 = vmatpush1.msra.mxu0 0.0
  %633 = vmatprep.subr.mxu0 0.0
  %634 = vmatpush1.msra.mxu0 0.0
  %635 = vmatprep.subr.mxu0 0.0
  %636 = vmatpush1.msra.mxu0 0.0
  %637 = vmatprep.subr.mxu0 0.0
  %638 = vmatpush1.msra.mxu0 0.0
  %639 = vmatprep.subr.mxu0 0.0
  %640 = vmatpush1.msra.mxu0 0.0
  %641 = vmatprep.subr.mxu0 0.0
  %642 = vmatpush1.msra.mxu0 0.0
  %643 = vmatprep.subr.mxu0 0.0
  %644 = vmatpush1.msra.mxu0 0.0
  %645 = vmatprep.subr.mxu0 0.0
  %646 = vmatpush1.msra.mxu0 0.0
  %647 = vmatprep.subr.mxu0 0.0
  %648 = vmatpush1.msra.mxu0 0.0
  %649 = vmatprep.subr.mxu0 0.0
  %650 = vmatpush1.msra.mxu0 0.0
  %651 = vmatprep.subr.mxu0 0.0
  %652 = vmatpush1.msra.mxu0 0.0
  %653 = vmatprep.subr.mxu0 0.0
  %654 = vmatpush1.msra.mxu0 0.0
  %655 = vmatprep.subr.mxu0 0.0
  %656 = vmatpush1.msra.mxu0 0.0
  %657 = vmatprep.subr.mxu0 0.0
  %658 = vmatpush1.msra.mxu0 0.0
  %659 = vmatprep.subr.mxu0 0.0
  %660 = vmatpush1.msra.mxu0 0.0
  %661 = vmatprep.subr.mxu0 0.0
  %662 = vmatpush1.msra.mxu0 0.0
  %663 = vmatprep.subr.mxu0 0.0
  %664 = vmatpush1.msra.mxu0 0.0
  %665 = vmatprep.subr.mxu0 0.0
  %666 = vmatpush1.msra.mxu0 0.0
  %667 = vmatprep.subr.mxu0 0.0
  %668 = vmatpush1.msra.mxu0 0.0
  %669 = vmatprep.subr.mxu0 0.0
  %670 = vmatpush1.msra.mxu0 0.0
  %671 = vmatprep.subr.mxu0 0.0
  %672 = vmatpush1.msra.mxu0 0.0
  %673 = vmatprep.subr.mxu0 0.0
  %674 = vmatpush1.msra.mxu0 0.0
  %675 = vmatprep.subr.mxu0 0.0
  %676 = vmatpush1.msra.mxu0 0.0
  %677 = vmatprep.subr.mxu0 0.0
  %678 = vmatpush1.msra.mxu0 0.0
  %679 = vmatprep.subr.mxu0 0.0
  %680 = vmatpush1.msra.mxu0 0.0
  %681 = vmatprep.subr.mxu0 0.0
  %682 = vmatpush1.msra.mxu0 0.0
  %683 = vmatprep.mubr.f32.mxu0 0.0
  %684 = vmatmul.mubr.f32.gmra.mrb[0].mxu0 %v52
  %v685 = vpop.f32.mrb[0].mxu0
  %v686 = vadd.f32 %v43, %v685
  %v687 = vpop.f32.mrb[0].mxu0
  %v688 = vadd.f32 %v43, %v687
  %689 = vmatprep.mubr.f32.mxu0 0.0
  %690 = vmatmul.mubr.f32.gmra.mrb[0].mxu0 %v55
  %v691 = vpop.f32.mrb[0].mxu0
  %v692 = vadd.f32 %v48, %v691
  %v693 = vpop.f32.mrb[0].mxu0
  %v694 = vadd.f32 %v48, %v693
  %695 = vdwg.mxu0
  %696 = vmatprep.subr.mxu0 %v594
  %697 = vmatpush1.msra.mxu0 %v593
  %698 = vmatprep.subr.mxu0 %v598
  %699 = vmatpush1.msra.mxu0 %v597
  %700 = vmatprep.subr.mxu0 %v602
  %701 = vmatpush1.msra.mxu0 %v601
  %702 = vmatprep.subr.mxu0 %v617
  %703 = vmatpush1.msra.mxu0 %v614
  %704 = vmatprep.subr.mxu0 0.0
  %705 = vmatpush1.msra.mxu0 0.0
  %706 = vmatprep.subr.mxu0 0.0
  %707 = vmatpush1.msra.mxu0 0.0
  %708 = vmatprep.subr.mxu0 0.0
  %709 = vmatpush1.msra.mxu0 0.0
  %710 = vmatprep.subr.mxu0 0.0
  %711 = vmatpush1.msra.mxu0 0.0
  %712 = vmatprep.subr.mxu0 0.0
  %713 = vmatpush1.msra.mxu0 0.0
  %714 = vmatprep.subr.mxu0 0.0
  %715 = vmatpush1.msra.mxu0 0.0
  %716 = vmatprep.subr.mxu0 0.0
  %717 = vmatpush1.msra.mxu0 0.0
  %718 = vmatprep.subr.mxu0 0.0
  %719 = vmatpush1.msra.mxu0 0.0
  %720 = vmatprep.subr.mxu0 0.0
  %721 = vmatpush1.msra.mxu0 0.0
  %722 = vmatprep.subr.mxu0 0.0
  %723 = vmatpush1.msra.mxu0 0.0
  %724 = vmatprep.subr.mxu0 0.0
  %725 = vmatpush1.msra.mxu0 0.0
  %726 = vmatprep.subr.mxu0 0.0
  %727 = vmatpush1.msra.mxu0 0.0
  %728 = vmatprep.subr.mxu0 0.0
  %729 = vmatpush1.msra.mxu0 0.0
  %730 = vmatprep.subr.mxu0 0.0
  %731 = vmatpush1.msra.mxu0 0.0
  %732 = vmatprep.subr.mxu0 0.0
  %733 = vmatpush1.msra.mxu0 0.0
  %734 = vmatprep.subr.mxu0 0.0
  %735 = vmatpush1.msra.mxu0 0.0
  %736 = vmatprep.subr.mxu0 0.0
  %737 = vmatpush1.msra.mxu0 0.0
  %738 = vmatprep.subr.mxu0 0.0
  %739 = vmatpush1.msra.mxu0 0.0
  %740 = vmatprep.subr.mxu0 0.0
  %741 = vmatpush1.msra.mxu0 0.0
  %742 = vmatprep.subr.mxu0 0.0
  %743 = vmatpush1.msra.mxu0 0.0
  %744 = vmatprep.subr.mxu0 0.0
  %745 = vmatpush1.msra.mxu0 0.0
  %746 = vmatprep.subr.mxu0 0.0
  %747 = vmatpush1.msra.mxu0 0.0
  %748 = vmatprep.subr.mxu0 0.0
  %749 = vmatpush1.msra.mxu0 0.0
  %750 = vmatprep.subr.mxu0 0.0
  %751 = vmatpush1.msra.mxu0 0.0
  %752 = vmatprep.subr.mxu0 0.0
  %753 = vmatpush1.msra.mxu0 0.0
  %754 = vmatprep.subr.mxu0 0.0
  %755 = vmatpush1.msra.mxu0 0.0
  %756 = vmatprep.subr.mxu0 0.0
  %757 = vmatpush1.msra.mxu0 0.0
  %758 = vmatprep.subr.mxu0 0.0
  %759 = vmatpush1.msra.mxu0 0.0
  %760 = vmatprep.mubr.f32.mxu0 0.0
  %761 = vmatmul.mubr.f32.gmra.mrb[0].mxu0 %v52
  %v762 = vpop.f32.mrb[0].mxu0
  %v763 = vadd.f32 %v43, %v762
  %v764 = vpop.f32.mrb[0].mxu0
  %v765 = vadd.f32 %v43, %v764
  %766 = vmatprep.mubr.f32.mxu0 0.0
  %767 = vmatmul.mubr.f32.gmra.mrb[0].mxu0 %v55
  %v768 = vpop.f32.mrb[0].mxu0
  %v769 = vadd.f32 %v48, %v768
  %v770 = vpop.f32.mrb[0].mxu0
  %v771 = vadd.f32 %v48, %v770
  %772 = vdwg.mxu0
  %v773 = vadd.f32 %v137, %v320
  %v774 = vadd.f32 %v139, %v322
  %v775 = vadd.f32 %v214, %v397
  %v776 = vadd.f32 %v216, %v399
  %v777 = vadd.f32 %v143, %v326
  %v778 = vadd.f32 %v145, %v328
  %v779 = vadd.f32 %v220, %v403
  %v780 = vadd.f32 %v222, %v405
  %v781 = vadd.f32 %v503, %v686
  %v782 = vadd.f32 %v505, %v688
  %v783 = vadd.f32 %v580, %v763
  %v784 = vadd.f32 %v582, %v765
  %v785 = vadd.f32 %v509, %v692
  %v786 = vadd.f32 %v511, %v694
  %v787 = vadd.f32 %v586, %v769
  %v788 = vadd.f32 %v588, %v771
  %v789 = vadd.f32 %v773, %v781
  %v790 = vadd.f32 %v774, %v782
  %v791 = vadd.f32 %v775, %v783
  %v792 = vadd.f32 %v776, %v784
  %v793 = vadd.f32 %v777, %v785
  %v794 = vadd.f32 %v778, %v786
  %v795 = vadd.f32 %v779, %v787
  %v796 = vadd.f32 %v780, %v788
  %v797 = vmul.f32 %v137, %v137
  %v798 = vmul.f32 %v139, %v139
  %v799 = vmul.f32 %v214, %v214
  %v800 = vmul.f32 %v216, %v216
  %v801 = vmul.f32 %v143, %v143
  %v802 = vmul.f32 %v145, %v145
  %v803 = vmul.f32 %v220, %v220
  %v804 = vmul.f32 %v222, %v222
  %v805 = vmul.f32 %v320, %v320
  %v806 = vmul.f32 %v322, %v322
  %v807 = vmul.f32 %v397, %v397
  %v808 = vmul.f32 %v399, %v399
  %v809 = vmul.f32 %v326, %v326
  %v810 = vmul.f32 %v328, %v328
  %v811 = vmul.f32 %v403, %v403
  %v812 = vmul.f32 %v405, %v405
  %v813 = vadd.f32 %v797, %v805
  %v814 = vadd.f32 %v798, %v806
  %v815 = vadd.f32 %v799, %v807
  %v816 = vadd.f32 %v800, %v808
  %v817 = vadd.f32 %v801, %v809
  %v818 = vadd.f32 %v802, %v810
  %v819 = vadd.f32 %v803, %v811
  %v820 = vadd.f32 %v804, %v812
  %v821 = vmul.f32 %v503, %v503
  %v822 = vmul.f32 %v505, %v505
  %v823 = vmul.f32 %v580, %v580
  %v824 = vmul.f32 %v582, %v582
  %v825 = vmul.f32 %v509, %v509
  %v826 = vmul.f32 %v511, %v511
  %v827 = vmul.f32 %v586, %v586
  %v828 = vmul.f32 %v588, %v588
  %v829 = vmul.f32 %v686, %v686
  %v830 = vmul.f32 %v688, %v688
  %v831 = vmul.f32 %v763, %v763
  %v832 = vmul.f32 %v765, %v765
  %v833 = vmul.f32 %v692, %v692
  %v834 = vmul.f32 %v694, %v694
  %v835 = vmul.f32 %v769, %v769
  %v836 = vmul.f32 %v771, %v771
  %v837 = vadd.f32 %v821, %v829
  %v838 = vadd.f32 %v822, %v830
  %v839 = vadd.f32 %v823, %v831
  %v840 = vadd.f32 %v824, %v832
  %v841 = vadd.f32 %v825, %v833
  %v842 = vadd.f32 %v826, %v834
  %v843 = vadd.f32 %v827, %v835
  %v844 = vadd.f32 %v828, %v836
  %v845 = vadd.f32 %v813, %v837
  %v846 = vadd.f32 %v814, %v838
  %v847 = vadd.f32 %v815, %v839
  %v848 = vadd.f32 %v816, %v840
  %v849 = vadd.f32 %v817, %v841
  %v850 = vadd.f32 %v818, %v842
  %v851 = vadd.f32 %v819, %v843
  %v852 = vadd.f32 %v820, %v844
  %v853 = vadd.f32 %v789, %v790
  %v854 = vadd.f32 %v853, %v791
  %v855 = vadd.f32 %v854, %v792
  %856 = vadd.xlane.f32.xlu0 %v855
  %v857 = vpop.xlane.xlu0 %856
  %v858 = vadd.f32 %v793, %v794
  %v859 = vadd.f32 %v858, %v795
  %v860 = vadd.f32 %v859, %v796
  %861 = vadd.xlane.f32.xlu0 %v860
  %v862 = vpop.xlane.xlu0 %861
  %v863 = vmul.f32 %v857, 0.00048828125
  %v864 = vmul.f32 %v862, 0.00048828125
  %v865 = vadd.f32 %v845, %v846
  %v866 = vadd.f32 %v865, %v847
  %v867 = vadd.f32 %v866, %v848
  %868 = vadd.xlane.f32.xlu0 %v867
  %v869 = vpop.xlane.xlu0 %868
  %v870 = vadd.f32 %v849, %v850
  %v871 = vadd.f32 %v870, %v851
  %v872 = vadd.f32 %v871, %v852
  %873 = vadd.xlane.f32.xlu0 %v872
  %v874 = vpop.xlane.xlu0 %873
  %v875 = vmul.f32 %v869, 0.00048828125
  %v876 = vmul.f32 %v874, 0.00048828125
  %v877 = vmul.f32 %v863, %v863
  %v878 = vmul.f32 %v864, %v864
  %v879 = vsub.f32 %v875, %v877
  %v880 = vsub.f32 %v876, %v878
  %v881 = vmax.f32 %v879, 0.0
  %v882 = vmax.f32 %v880, 0.0
  %v883 = vld [vmem:[%s3] sm:$0xff]
  %v884 = vld [vmem:[%s3 + $0x8] sm:$0xff]
  %v885 = vadd.f32 %v881, 1e-05
  %v886 = vadd.f32 %v882, 1e-05
  %v887 = vrsqrt.pop %v885
  %v888 = vrsqrt.pop %v886
  %v889 = vmul.f32 %v883, %v887
  %v890 = vmul.f32 %v884, %v888
  %v891 = vld [vmem:[%s4] sm:$0xff]
  %v892 = vld [vmem:[%s4 + $0x8] sm:$0xff]
  %v893 = vmul.f32 %v863, %v889
  %v894 = vmul.f32 %v864, %v890
  %v895 = vsub.f32 %v891, %v893
  %v896 = vsub.f32 %v892, %v894
  %898 = vset.pattern.permute.xlu0 0
  %899 = vperm.xlu0 %898, %v889
  %v900 = vpop.permute.xlu0 %899
  %903 = vset.pattern.permute.xlu0 0
  %904 = vperm.xlu0 %903, %v890
  %v905 = vpop.permute.xlu0 %904
  %v907 = vmul.f32 %v137, %v900
  %v908 = vmul.f32 %v139, %v900
  %v909 = vmul.f32 %v214, %v900
  %v910 = vmul.f32 %v216, %v900
  %v911 = vmul.f32 %v143, %v905
  %v912 = vmul.f32 %v145, %v905
  %v913 = vmul.f32 %v220, %v905
  %v914 = vmul.f32 %v222, %v905
  %916 = vset.pattern.permute.xlu0 0
  %917 = vperm.xlu0 %916, %v895
  %v918 = vpop.permute.xlu0 %917
  %921 = vset.pattern.permute.xlu0 0
  %922 = vperm.xlu0 %921, %v896
  %v923 = vpop.permute.xlu0 %922
  %v925 = vadd.f32 %v907, %v918
  %v926 = vadd.f32 %v908, %v918
  %v927 = vadd.f32 %v909, %v918
  %v928 = vadd.f32 %v910, %v918
  %v929 = vadd.f32 %v911, %v923
  %v930 = vadd.f32 %v912, %v923
  %v931 = vadd.f32 %v913, %v923
  %v932 = vadd.f32 %v914, %v923
  %v933 = vmax.f32 %v925, 0.0
  %v934 = vmax.f32 %v926, 0.0
  %v935 = vmax.f32 %v927, 0.0
  %v936 = vmax.f32 %v928, 0.0
  %v937 = vmax.f32 %v929, 0.0
  %v938 = vmax.f32 %v930, 0.0
  %v939 = vmax.f32 %v931, 0.0
  %v940 = vmax.f32 %v932, 0.0
  %v941 = vmul.f32 %v320, %v900
  %v942 = vmul.f32 %v322, %v900
  %v943 = vmul.f32 %v397, %v900
  %v944 = vmul.f32 %v399, %v900
  %v945 = vmul.f32 %v326, %v905
  %v946 = vmul.f32 %v328, %v905
  %v947 = vmul.f32 %v403, %v905
  %v948 = vmul.f32 %v405, %v905
  %v949 = vadd.f32 %v941, %v918
  %v950 = vadd.f32 %v942, %v918
  %v951 = vadd.f32 %v943, %v918
  %v952 = vadd.f32 %v944, %v918
  %v953 = vadd.f32 %v945, %v923
  %v954 = vadd.f32 %v946, %v923
  %v955 = vadd.f32 %v947, %v923
  %v956 = vadd.f32 %v948, %v923
  %v957 = vmax.f32 %v949, 0.0
  %v958 = vmax.f32 %v950, 0.0
  %v959 = vmax.f32 %v951, 0.0
  %v960 = vmax.f32 %v952, 0.0
  %v961 = vmax.f32 %v953, 0.0
  %v962 = vmax.f32 %v954, 0.0
  %v963 = vmax.f32 %v955, 0.0
  %v964 = vmax.f32 %v956, 0.0
  %v965 = vmul.f32 %v503, %v900
  %v966 = vmul.f32 %v505, %v900
  %v967 = vmul.f32 %v580, %v900
  %v968 = vmul.f32 %v582, %v900
  %v969 = vmul.f32 %v509, %v905
  %v970 = vmul.f32 %v511, %v905
  %v971 = vmul.f32 %v586, %v905
  %v972 = vmul.f32 %v588, %v905
  %v973 = vadd.f32 %v965, %v918
  %v974 = vadd.f32 %v966, %v918
  %v975 = vadd.f32 %v967, %v918
  %v976 = vadd.f32 %v968, %v918
  %v977 = vadd.f32 %v969, %v923
  %v978 = vadd.f32 %v970, %v923
  %v979 = vadd.f32 %v971, %v923
  %v980 = vadd.f32 %v972, %v923
  %v981 = vmax.f32 %v973, 0.0
  %v982 = vmax.f32 %v974, 0.0
  %v983 = vmax.f32 %v975, 0.0
  %v984 = vmax.f32 %v976, 0.0
  %v985 = vmax.f32 %v977, 0.0
  %v986 = vmax.f32 %v978, 0.0
  %v987 = vmax.f32 %v979, 0.0
  %v988 = vmax.f32 %v980, 0.0
  %v989 = vmul.f32 %v686, %v900
  %v990 = vmul.f32 %v688, %v900
  %v991 = vmul.f32 %v763, %v900
  %v992 = vmul.f32 %v765, %v900
  %v993 = vmul.f32 %v692, %v905
  %v994 = vmul.f32 %v694, %v905
  %v995 = vmul.f32 %v769, %v905
  %v996 = vmul.f32 %v771, %v905
  %v997 = vadd.f32 %v989, %v918
  %v998 = vadd.f32 %v990, %v918
  %v999 = vadd.f32 %v991, %v918
  %v1000 = vadd.f32 %v992, %v918
  %v1001 = vadd.f32 %v993, %v923
  %v1002 = vadd.f32 %v994, %v923
  %v1003 = vadd.f32 %v995, %v923
  %v1004 = vadd.f32 %v996, %v923
  %v1005 = vmax.f32 %v997, 0.0
  %v1006 = vmax.f32 %v998, 0.0
  %v1007 = vmax.f32 %v999, 0.0
  %v1008 = vmax.f32 %v1000, 0.0
  %v1009 = vmax.f32 %v1001, 0.0
  %v1010 = vmax.f32 %v1002, 0.0
  %v1011 = vmax.f32 %v1003, 0.0
  %v1012 = vmax.f32 %v1004, 0.0
  %v1013 = vmax.f32 %v933, %v957
  %v1014 = vmax.f32 %v934, %v958
  %v1015 = vmax.f32 %v935, %v959
  %v1016 = vmax.f32 %v936, %v960
  %v1017 = vmax.f32 %v937, %v961
  %v1018 = vmax.f32 %v938, %v962
  %v1019 = vmax.f32 %v939, %v963
  %v1020 = vmax.f32 %v940, %v964
  %v1021 = vmax.f32 %v981, %v1005
  %v1022 = vmax.f32 %v982, %v1006
  %v1023 = vmax.f32 %v983, %v1007
  %v1024 = vmax.f32 %v984, %v1008
  %v1025 = vmax.f32 %v985, %v1009
  %v1026 = vmax.f32 %v986, %v1010
  %v1027 = vmax.f32 %v987, %v1011
  %v1028 = vmax.f32 %v988, %v1012
  %v1029 = vmax.f32 %v1013, %v1021
  %v1030 = vmax.f32 %v1014, %v1022
  %v1031 = vmax.f32 %v1015, %v1023
  %v1032 = vmax.f32 %v1016, %v1024
  %v1033 = vmax.f32 %v1017, %v1025
  %v1034 = vmax.f32 %v1018, %v1026
  %v1035 = vmax.f32 %v1019, %v1027
  %v1036 = vmax.f32 %v1020, %v1028
  %1037 = vst [vmem:[%s5] sm:$0xff] %v1029
  %1038 = vst [vmem:[%s5 + $0x8] sm:$0xff] %v1030
  %1039 = vst [vmem:[%s5 + $0x10] sm:$0xff] %v1031
  %1040 = vst [vmem:[%s5 + $0x18] sm:$0xff] %v1032
  %1041 = vst [vmem:[%s5 + $0x20] sm:$0xff] %v1033
  %1042 = vst [vmem:[%s5 + $0x28] sm:$0xff] %v1034
  %1043 = vst [vmem:[%s5 + $0x30] sm:$0xff] %v1035
  %1044 = vst [vmem:[%s5 + $0x38] sm:$0xff] %v1036
  // Predicated region
  $region22: #{batchnorm_net_forward.4} parent=0 // pred_check
    _
  $region23: #{batchnorm_net_forward.4} parent=0 // pred_check_branch
    %1046 = sbr.rel (0) target = $region25
  $region24: #{batchnorm_net_forward.4} parent=0 // pred_region
    _
  $region25: #{batchnorm_net_forward.4} parent=0 // pred_fallthru
    _
  // Predicated region
  $region26: #{batchnorm_net_forward.4} parent=0 // pred_check
    _
  $region27: #{batchnorm_net_forward.4} parent=0 // pred_check_branch
    %1048 = sbr.rel (0) target = $region29
  $region28: #{batchnorm_net_forward.4} parent=0 // pred_region
    _
  $region29: #{batchnorm_net_forward.4} parent=0 // pred_fallthru
    _

// kernel: batchnorm_net_forward.5
$region0: #{batchnorm_net_forward.5}
  #allocation0 [shape = 'u32[]', space=smem, size = 0x4, offset = 0x4, fixed_abs, tag = 'smem constant byte address 0x4 - core index']
  #allocation1 [shape = 'u32[144,128]{1,0:T(1,128)}', space=vmem, size = 0x12000, scoped, tag = 'internal scratch']
  %s0 = inlined_call_operand.vmem [shape: f32[4,144,128], index: 0, kind: input, shape index: {}]
  %s1 = inlined_call_operand.vmem [shape: f32[32,144], index: 1, kind: input, shape index: {}]
  %s2 = inlined_call_operand.vmem [shape: f32[32,1], index: 2, kind: input, shape index: {}]
  %s3 = inlined_call_operand.vmem [shape: f32[32,1], index: 3, kind: input, shape index: {}]
  %s4 = inlined_call_operand.vmem [shape: f32[32,1], index: 4, kind: input, shape index: {}]
  %s5 = inlined_call_operand.vmem [shape: f32[32,128], index: 5, kind: output, shape index: {}]
  %s6 = sld [smem:[#allocation0]]
  $region30: #{batchnorm_net_forward.5} parent=0
    _
  %s8 = ssub.s32 1, %s6
  %s9 = scalar_select 0, %s8, %s6
  // Predicated region
  $region2: #{batchnorm_net_forward.5} parent=0 // pred_check
    _
  $region3: #{batchnorm_net_forward.5} parent=0 // pred_check_branch
    %11 = sbr.rel (0) target = $region5
  $region4: #{batchnorm_net_forward.5} parent=0 // pred_region
    _
  $region5: #{batchnorm_net_forward.5} parent=0 // pred_fallthru
    _
  // Predicated region
  $region6: #{batchnorm_net_forward.5} parent=0 // pred_check
    _
  $region7: #{batchnorm_net_forward.5} parent=0 // pred_check_branch
    %13 = sbr.rel (0) target = $region9
  $region8: #{batchnorm_net_forward.5} parent=0 // pred_region
    _
  $region9: #{batchnorm_net_forward.5} parent=0 // pred_fallthru
    _
  // Predicated region
  $region10: #{batchnorm_net_forward.5} parent=0 // pred_check
    _
  $region11: #{batchnorm_net_forward.5} parent=0 // pred_check_branch
    %15 = sbr.rel (0) target = $region13
  $region12: #{batchnorm_net_forward.5} parent=0 // pred_region
    _
  $region13: #{batchnorm_net_forward.5} parent=0 // pred_fallthru
    _
  // Predicated region
  $region14: #{batchnorm_net_forward.5} parent=0 // pred_check
    _
  $region15: #{batchnorm_net_forward.5} parent=0 // pred_check_branch
    %17 = sbr.rel (0) target = $region17
  $region16: #{batchnorm_net_forward.5} parent=0 // pred_region
    _
  $region17: #{batchnorm_net_forward.5} parent=0 // pred_fallthru
    _
  // Predicated region
  $region18: #{batchnorm_net_forward.5} parent=0 // pred_check
    _
  $region19: #{batchnorm_net_forward.5} parent=0 // pred_check_branch
    %19 = sbr.rel (0) target = $region21
  $region20: #{batchnorm_net_forward.5} parent=0 // pred_region
    _
  $region21: #{batchnorm_net_forward.5} parent=0 // pred_fallthru
    _
  %v20 = vld [vmem:[%s1] sm:$0xff]
  %v21 = vld [vmem:[%s1 + $0x8] sm:$0xff]
  %v22 = vld [vmem:[%s1 + $0x10] sm:$0xff]
  %v23 = vld [vmem:[%s1 + $0x18] sm:$0xff]
  %v24 = vld [vmem:[%s1 + $0x20] sm:$0xff]
  %v25 = vld [vmem:[%s1 + $0x28] sm:$0xff]
  %v26 = vld [vmem:[%s1 + $0x30] sm:$0xff]
  %v27 = vld [vmem:[%s1 + $0x38] sm:$0xff]
  %v28 = vld [vmem:[%s2] sm:$0xff]
  %v29 = vld [vmem:[%s2 + $0x8] sm:$0xff]
  %v30 = vld [vmem:[%s2 + $0x10] sm:$0xff]
  %v31 = vld [vmem:[%s2 + $0x18] sm:$0xff]
  %v32 = vld [vmem:[%s0] sm:$0xff]
  %v33 = vld [vmem:[%s0 + $0x8] sm:$0xff]
  %v34 = vld [vmem:[%s0 + $0x10] sm:$0xff]
  %v35 = vld [vmem:[%s0 + $0x18] sm:$0xff]
  %v36 = vld [vmem:[%s0 + $0x20] sm:$0xff]
  %v37 = vld [vmem:[%s0 + $0x28] sm:$0xff]
  %v38 = vld [vmem:[%s0 + $0x30] sm:$0xff]
  %v39 = vld [vmem:[%s0 + $0x38] sm:$0xff]
  %v40 = vld [vmem:[%s0 + $0x40] sm:$0xff]
  %v41 = vld [vmem:[%s0 + $0x48] sm:$0xff]
  %v42 = vld [vmem:[%s0 + $0x50] sm:$0xff]
  %v43 = vld [vmem:[%s0 + $0x58] sm:$0xff]
  %v44 = vld [vmem:[%s0 + $0x60] sm:$0xff]
  %v45 = vld [vmem:[%s0 + $0x68] sm:$0xff]
  %v46 = vld [vmem:[%s0 + $0x70] sm:$0xff]
  %v47 = vld [vmem:[%s0 + $0x78] sm:$0xff]
  %v48 = vld [vmem:[%s0 + $0x80] sm:$0xff]
  %v49 = vld [vmem:[%s0 + $0x88] sm:$0xff]
  %51 = vset.pattern.permute.xlu0 0
  %52 = vperm.xlu0 %51, %v28
  %v53 = vpop.permute.xlu0 %52
  %56 = vset.pattern.permute.xlu0 0
  %57 = vperm.xlu0 %56, %v29
  %v58 = vpop.permute.xlu0 %57
  %61 = vset.pattern.permute.xlu0 0
  %62 = vperm.xlu0 %61, %v30
  %v63 = vpop.permute.xlu0 %62
  %66 = vset.pattern.permute.xlu0 0
  %67 = vperm.xlu0 %66, %v31
  %v68 = vpop.permute.xlu0 %67
  %vm70 = vcmask 130048
  %v72 = vsel %vm70, %v21, 0
  %v75 = vsel %vm70, %v23, 0
  %v78 = vsel %vm70, %v25, 0
  %v81 = vsel %vm70, %v27, 0
  %83 = vmatprep.subr.mxu0 0.0
  %84 = vmatpush1.msra.mxu0 %v32
  %85 = vmatprep.subr.mxu0 0.0
  %86 = vmatpush1.msra.mxu0 %v33
  %87 = vmatprep.subr.mxu0 0.0
  %88 = vmatpush1.msra.mxu0 %v34
  %89 = vmatprep.subr.mxu0 0.0
  %90 = vmatpush1.msra.mxu0 %v35
  %91 = vmatprep.subr.mxu0 0.0
  %92 = vmatpush1.msra.mxu0 %v36
  %93 = vmatprep.subr.mxu0 0.0
  %94 = vmatpush1.msra.mxu0 %v37
  %95 = vmatprep.subr.mxu0 0.0
  %96 = vmatpush1.msra.mxu0 %v38
  %97 = vmatprep.subr.mxu0 0.0
  %98 = vmatpush1.msra.mxu0 %v39
  %99 = vmatprep.subr.mxu0 0.0
  %100 = vmatpush1.msra.mxu0 %v40
  %101 = vmatprep.subr.mxu0 0.0
  %102 = vmatpush1.msra.mxu0 %v41
  %103 = vmatprep.subr.mxu0 0.0
  %104 = vmatpush1.msra.mxu0 %v42
  %105 = vmatprep.subr.mxu0 0.0
  %106 = vmatpush1.msra.mxu0 %v43
  %107 = vmatprep.subr.mxu0 0.0
  %108 = vmatpush1.msra.mxu0 %v44
  %109 = vmatprep.subr.mxu0 0.0
  %110 = vmatpush1.msra.mxu0 %v45
  %111 = vmatprep.subr.mxu0 0.0
  %112 = vmatpush1.msra.mxu0 %v46
  %113 = vmatprep.subr.mxu0 0.0
  %114 = vmatpush1.msra.mxu0 %v47
  %115 = vmatprep.subr.mxu0 0.0
  %116 = vmatpush1.msra.mxu0 %v48
  %117 = vmatprep.subr.mxu0 0.0
  %118 = vmatpush1.msra.mxu0 %v49
  %119 = vmatprep.subr.mxu0 0.0
  %120 = vmatpush1.msra.mxu0 0.0
  %121 = vmatprep.subr.mxu0 0.0
  %122 = vmatpush1.msra.mxu0 0.0
  %123 = vmatprep.subr.mxu0 0.0
  %124 = vmatpush1.msra.mxu0 0.0
  %125 = vmatprep.subr.mxu0 0.0
  %126 = vmatpush1.msra.mxu0 0.0
  %127 = vmatprep.subr.mxu0 0.0
  %128 = vmatpush1.msra.mxu0 0.0
  %129 = vmatprep.subr.mxu0 0.0
  %130 = vmatpush1.msra.mxu0 0.0
  %131 = vmatprep.subr.mxu0 0.0
  %132 = vmatpush1.msra.mxu0 0.0
  %133 = vmatprep.subr.mxu0 0.0
  %134 = vmatpush1.msra.mxu0 0.0
  %135 = vmatprep.subr.mxu0 0.0
  %136 = vmatpush1.msra.mxu0 0.0
  %137 = vmatprep.subr.mxu0 0.0
  %138 = vmatpush1.msra.mxu0 0.0
  %139 = vmatprep.subr.mxu0 0.0
  %140 = vmatpush1.msra.mxu0 0.0
  %141 = vmatprep.subr.mxu0 0.0
  %142 = vmatpush1.msra.mxu0 0.0
  %143 = vmatprep.subr.mxu0 0.0
  %144 = vmatpush1.msra.mxu0 0.0
  %145 = vmatprep.subr.mxu0 0.0
  %146 = vmatpush1.msra.mxu0 0.0
  %147 = vmatprep.mubr.f32.mxu0 %v72
  %148 = vmatmul.mubr.f32.gmra.mrb[0].mxu0 %v20
  %v149 = vpop.f32.mrb[0].mxu0
  %v150 = vadd.f32 %v53, %v149
  %v151 = vpop.f32.mrb[0].mxu0
  %152 = vmatprep.mubr.f32.mxu0 %v75
  %153 = vmatmul.mubr.f32.gmra.mrb[0].mxu0 %v22
  %v154 = vpop.f32.mrb[0].mxu0
  %v155 = vadd.f32 %v58, %v154
  %v156 = vpop.f32.mrb[0].mxu0
  %157 = vmatprep.mubr.f32.mxu0 %v78
  %158 = vmatmul.mubr.f32.gmra.mrb[0].mxu0 %v24
  %v159 = vpop.f32.mrb[0].mxu0
  %v160 = vadd.f32 %v63, %v159
  %v161 = vpop.f32.mrb[0].mxu0
  %162 = vmatprep.mubr.f32.mxu0 %v81
  %163 = vmatmul.mubr.f32.gmra.mrb[0].mxu0 %v26
  %v164 = vpop.f32.mrb[0].mxu0
  %v165 = vadd.f32 %v68, %v164
  %v166 = vpop.f32.mrb[0].mxu0
  %167 = vdwg.mxu0
  %s168 = scalar_lea.vmem %s0, 144
  %v169 = vld [vmem:[%s168] sm:$0xff]
  %v170 = vld [vmem:[%s168 + $0x8] sm:$0xff]
  %v171 = vld [vmem:[%s168 + $0x10] sm:$0xff]
  %v172 = vld [vmem:[%s168 + $0x18] sm:$0xff]
  %v173 = vld [vmem:[%s168 + $0x20] sm:$0xff]
  %v174 = vld [vmem:[%s168 + $0x28] sm:$0xff]
  %v175 = vld [vmem:[%s168 + $0x30] sm:$0xff]
  %v176 = vld [vmem:[%s168 + $0x38] sm:$0xff]
  %v177 = vld [vmem:[%s168 + $0x40] sm:$0xff]
  %v178 = vld [vmem:[%s168 + $0x48] sm:$0xff]
  %v179 = vld [vmem:[%s168 + $0x50] sm:$0xff]
  %v180 = vld [vmem:[%s168 + $0x58] sm:$0xff]
  %v181 = vld [vmem:[%s168 + $0x60] sm:$0xff]
  %v182 = vld [vmem:[%s168 + $0x68] sm:$0xff]
  %v183 = vld [vmem:[%s168 + $0x70] sm:$0xff]
  %v184 = vld [vmem:[%s168 + $0x78] sm:$0xff]
  %v185 = vld [vmem:[%s168 + $0x80] sm:$0xff]
  %v186 = vld [vmem:[%s168 + $0x88] sm:$0xff]
  %187 = vmatprep.subr.mxu0 0.0
  %188 = vmatpush1.msra.mxu0 %v169
  %189 = vmatprep.subr.mxu0 0.0
  %190 = vmatpush1.msra.mxu0 %v170
  %191 = vmatprep.subr.mxu0 0.0
  %192 = vmatpush1.msra.mxu0 %v171
  %193 = vmatprep.subr.mxu0 0.0
  %194 = vmatpush1.msra.mxu0 %v172
  %195 = vmatprep.subr.mxu0 0.0
  %196 = vmatpush1.msra.mxu0 %v173
  %197 = vmatprep.subr.mxu0 0.0
  %198 = vmatpush1.msra.mxu0 %v174
  %199 = vmatprep.subr.mxu0 0.0
  %200 = vmatpush1.msra.mxu0 %v175
  %201 = vmatprep.subr.mxu0 0.0
  %202 = vmatpush1.msra.mxu0 %v176
  %203 = vmatprep.subr.mxu0 0.0
  %204 = vmatpush1.msra.mxu0 %v177
  %205 = vmatprep.subr.mxu0 0.0
  %206 = vmatpush1.msra.mxu0 %v178
  %207 = vmatprep.subr.mxu0 0.0
  %208 = vmatpush1.msra.mxu0 %v179
  %209 = vmatprep.subr.mxu0 0.0
  %210 = vmatpush1.msra.mxu0 %v180
  %211 = vmatprep.subr.mxu0 0.0
  %212 = vmatpush1.msra.mxu0 %v181
  %213 = vmatprep.subr.mxu0 0.0
  %214 = vmatpush1.msra.mxu0 %v182
  %215 = vmatprep.subr.mxu0 0.0
  %216 = vmatpush1.msra.mxu0 %v183
  %217 = vmatprep.subr.mxu0 0.0
  %218 = vmatpush1.msra.mxu0 %v184
  %219 = vmatprep.subr.mxu0 0.0
  %220 = vmatpush1.msra.mxu0 %v185
  %221 = vmatprep.subr.mxu0 0.0
  %222 = vmatpush1.msra.mxu0 %v186
  %223 = vmatprep.subr.mxu0 0.0
  %224 = vmatpush1.msra.mxu0 0.0
  %225 = vmatprep.subr.mxu0 0.0
  %226 = vmatpush1.msra.mxu0 0.0
  %227 = vmatprep.subr.mxu0 0.0
  %228 = vmatpush1.msra.mxu0 0.0
  %229 = vmatprep.subr.mxu0 0.0
  %230 = vmatpush1.msra.mxu0 0.0
  %231 = vmatprep.subr.mxu0 0.0
  %232 = vmatpush1.msra.mxu0 0.0
  %233 = vmatprep.subr.mxu0 0.0
  %234 = vmatpush1.msra.mxu0 0.0
  %235 = vmatprep.subr.mxu0 0.0
  %236 = vmatpush1.msra.mxu0 0.0
  %237 = vmatprep.subr.mxu0 0.0
  %238 = vmatpush1.msra.mxu0 0.0
  %239 = vmatprep.subr.mxu0 0.0
  %240 = vmatpush1.msra.mxu0 0.0
  %241 = vmatprep.subr.mxu0 0.0
  %242 = vmatpush1.msra.mxu0 0.0
  %243 = vmatprep.subr.mxu0 0.0
  %244 = vmatpush1.msra.mxu0 0.0
  %245 = vmatprep.subr.mxu0 0.0
  %246 = vmatpush1.msra.mxu0 0.0
  %247 = vmatprep.subr.mxu0 0.0
  %248 = vmatpush1.msra.mxu0 0.0
  %249 = vmatprep.subr.mxu0 0.0
  %250 = vmatpush1.msra.mxu0 0.0
  %251 = vmatprep.mubr.f32.mxu0 %v72
  %252 = vmatmul.mubr.f32.gmra.mrb[0].mxu0 %v20
  %v253 = vpop.f32.mrb[0].mxu0
  %v254 = vadd.f32 %v53, %v253
  %v255 = vpop.f32.mrb[0].mxu0
  %256 = vmatprep.mubr.f32.mxu0 %v75
  %257 = vmatmul.mubr.f32.gmra.mrb[0].mxu0 %v22
  %v258 = vpop.f32.mrb[0].mxu0
  %v259 = vadd.f32 %v58, %v258
  %v260 = vpop.f32.mrb[0].mxu0
  %261 = vmatprep.mubr.f32.mxu0 %v78
  %262 = vmatmul.mubr.f32.gmra.mrb[0].mxu0 %v24
  %v263 = vpop.f32.mrb[0].mxu0
  %v264 = vadd.f32 %v63, %v263
  %v265 = vpop.f32.mrb[0].mxu0
  %266 = vmatprep.mubr.f32.mxu0 %v81
  %267 = vmatmul.mubr.f32.gmra.mrb[0].mxu0 %v26
  %v268 = vpop.f32.mrb[0].mxu0
  %v269 = vadd.f32 %v68, %v268
  %v270 = vpop.f32.mrb[0].mxu0
  %271 = vdwg.mxu0
  %s272 = scalar_lea.vmem %s0, 288
  %v273 = vld [vmem:[%s272] sm:$0xff]
  %v274 = vld [vmem:[%s272 + $0x8] sm:$0xff]
  %v275 = vld [vmem:[%s272 + $0x10] sm:$0xff]
  %v276 = vld [vmem:[%s272 + $0x18] sm:$0xff]
  %v277 = vld [vmem:[%s272 + $0x20] sm:$0xff]
  %v278 = vld [vmem:[%s272 + $0x28] sm:$0xff]
  %v279 = vld [vmem:[%s272 + $0x30] sm:$0xff]
  %v280 = vld [vmem:[%s272 + $0x38] sm:$0xff]
  %v281 = vld [vmem:[%s272 + $0x40] sm:$0xff]
  %v282 = vld [vmem:[%s272 + $0x48] sm:$0xff]
  %v283 = vld [vmem:[%s272 + $0x50] sm:$0xff]
  %v284 = vld [vmem:[%s272 + $0x58] sm:$0xff]
  %v285 = vld [vmem:[%s272 + $0x60] sm:$0xff]
  %v286 = vld [vmem:[%s272 + $0x68] sm:$0xff]
  %v287 = vld [vmem:[%s272 + $0x70] sm:$0xff]
  %v288 = vld [vmem:[%s272 + $0x78] sm:$0xff]
  %v289 = vld [vmem:[%s272 + $0x80] sm:$0xff]
  %v290 = vld [vmem:[%s272 + $0x88] sm:$0xff]
  %291 = vmatprep.subr.mxu0 0.0
  %292 = vmatpush1.msra.mxu0 %v273
  %293 = vmatprep.subr.mxu0 0.0
  %294 = vmatpush1.msra.mxu0 %v274
  %295 = vmatprep.subr.mxu0 0.0
  %296 = vmatpush1.msra.mxu0 %v275
  %297 = vmatprep.subr.mxu0 0.0
  %298 = vmatpush1.msra.mxu0 %v276
  %299 = vmatprep.subr.mxu0 0.0
  %300 = vmatpush1.msra.mxu0 %v277
  %301 = vmatprep.subr.mxu0 0.0
  %302 = vmatpush1.msra.mxu0 %v278
  %303 = vmatprep.subr.mxu0 0.0
  %304 = vmatpush1.msra.mxu0 %v279
  %305 = vmatprep.subr.mxu0 0.0
  %306 = vmatpush1.msra.mxu0 %v280
  %307 = vmatprep.subr.mxu0 0.0
  %308 = vmatpush1.msra.mxu0 %v281
  %309 = vmatprep.subr.mxu0 0.0
  %310 = vmatpush1.msra.mxu0 %v282
  %311 = vmatprep.subr.mxu0 0.0
  %312 = vmatpush1.msra.mxu0 %v283
  %313 = vmatprep.subr.mxu0 0.0
  %314 = vmatpush1.msra.mxu0 %v284
  %315 = vmatprep.subr.mxu0 0.0
  %316 = vmatpush1.msra.mxu0 %v285
  %317 = vmatprep.subr.mxu0 0.0
  %318 = vmatpush1.msra.mxu0 %v286
  %319 = vmatprep.subr.mxu0 0.0
  %320 = vmatpush1.msra.mxu0 %v287
  %321 = vmatprep.subr.mxu0 0.0
  %322 = vmatpush1.msra.mxu0 %v288
  %323 = vmatprep.subr.mxu0 0.0
  %324 = vmatpush1.msra.mxu0 %v289
  %325 = vmatprep.subr.mxu0 0.0
  %326 = vmatpush1.msra.mxu0 %v290
  %327 = vmatprep.subr.mxu0 0.0
  %328 = vmatpush1.msra.mxu0 0.0
  %329 = vmatprep.subr.mxu0 0.0
  %330 = vmatpush1.msra.mxu0 0.0
  %331 = vmatprep.subr.mxu0 0.0
  %332 = vmatpush1.msra.mxu0 0.0
  %333 = vmatprep.subr.mxu0 0.0
  %334 = vmatpush1.msra.mxu0 0.0
  %335 = vmatprep.subr.mxu0 0.0
  %336 = vmatpush1.msra.mxu0 0.0
  %337 = vmatprep.subr.mxu0 0.0
  %338 = vmatpush1.msra.mxu0 0.0
  %339 = vmatprep.subr.mxu0 0.0
  %340 = vmatpush1.msra.mxu0 0.0
  %341 = vmatprep.subr.mxu0 0.0
  %342 = vmatpush1.msra.mxu0 0.0
  %343 = vmatprep.subr.mxu0 0.0
  %344 = vmatpush1.msra.mxu0 0.0
  %345 = vmatprep.subr.mxu0 0.0
  %346 = vmatpush1.msra.mxu0 0.0
  %347 = vmatprep.subr.mxu0 0.0
  %348 = vmatpush1.msra.mxu0 0.0
  %349 = vmatprep.subr.mxu0 0.0
  %350 = vmatpush1.msra.mxu0 0.0
  %351 = vmatprep.subr.mxu0 0.0
  %352 = vmatpush1.msra.mxu0 0.0
  %353 = vmatprep.subr.mxu0 0.0
  %354 = vmatpush1.msra.mxu0 0.0
  %355 = vmatprep.mubr.f32.mxu0 %v72
  %356 = vmatmul.mubr.f32.gmra.mrb[0].mxu0 %v20
  %v357 = vpop.f32.mrb[0].mxu0
  %v358 = vadd.f32 %v53, %v357
  %v359 = vpop.f32.mrb[0].mxu0
  %360 = vmatprep.mubr.f32.mxu0 %v75
  %361 = vmatmul.mubr.f32.gmra.mrb[0].mxu0 %v22
  %v362 = vpop.f32.mrb[0].mxu0
  %v363 = vadd.f32 %v58, %v362
  %v364 = vpop.f32.mrb[0].mxu0
  %365 = vmatprep.mubr.f32.mxu0 %v78
  %366 = vmatmul.mubr.f32.gmra.mrb[0].mxu0 %v24
  %v367 = vpop.f32.mrb[0].mxu0
  %v368 = vadd.f32 %v63, %v367
  %v369 = vpop.f32.mrb[0].mxu0
  %370 = vmatprep.mubr.f32.mxu0 %v81
  %371 = vmatmul.mubr.f32.gmra.mrb[0].mxu0 %v26
  %v372 = vpop.f32.mrb[0].mxu0
  %v373 = vadd.f32 %v68, %v372
  %v374 = vpop.f32.mrb[0].mxu0
  %375 = vdwg.mxu0
  %s376 = scalar_lea.vmem %s0, 432
  %v377 = vld [vmem:[%s376] sm:$0xff]
  %v378 = vld [vmem:[%s376 + $0x8] sm:$0xff]
  %v379 = vld [vmem:[%s376 + $0x10] sm:$0xff]
  %v380 = vld [vmem:[%s376 + $0x18] sm:$0xff]
  %v381 = vld [vmem:[%s376 + $0x20] sm:$0xff]
  %v382 = vld [vmem:[%s376 + $0x28] sm:$0xff]
  %v383 = vld [vmem:[%s376 + $0x30] sm:$0xff]
  %v384 = vld [vmem:[%s376 + $0x38] sm:$0xff]
  %v385 = vld [vmem:[%s376 + $0x40] sm:$0xff]
  %v386 = vld [vmem:[%s376 + $0x48] sm:$0xff]
  %v387 = vld [vmem:[%s376 + $0x50] sm:$0xff]
  %v388 = vld [vmem:[%s376 + $0x58] sm:$0xff]
  %v389 = vld [vmem:[%s376 + $0x60] sm:$0xff]
  %v390 = vld [vmem:[%s376 + $0x68] sm:$0xff]
  %v391 = vld [vmem:[%s376 + $0x70] sm:$0xff]
  %v392 = vld [vmem:[%s376 + $0x78] sm:$0xff]
  %v393 = vld [vmem:[%s376 + $0x80] sm:$0xff]
  %v394 = vld [vmem:[%s376 + $0x88] sm:$0xff]
  %395 = vmatprep.subr.mxu0 0.0
  %396 = vmatpush1.msra.mxu0 %v377
  %397 = vmatprep.subr.mxu0 0.0
  %398 = vmatpush1.msra.mxu0 %v378
  %399 = vmatprep.subr.mxu0 0.0
  %400 = vmatpush1.msra.mxu0 %v379
  %401 = vmatprep.subr.mxu0 0.0
  %402 = vmatpush1.msra.mxu0 %v380
  %403 = vmatprep.subr.mxu0 0.0
  %404 = vmatpush1.msra.mxu0 %v381
  %405 = vmatprep.subr.mxu0 0.0
  %406 = vmatpush1.msra.mxu0 %v382
  %407 = vmatprep.subr.mxu0 0.0
  %408 = vmatpush1.msra.mxu0 %v383
  %409 = vmatprep.subr.mxu0 0.0
  %410 = vmatpush1.msra.mxu0 %v384
  %411 = vmatprep.subr.mxu0 0.0
  %412 = vmatpush1.msra.mxu0 %v385
  %413 = vmatprep.subr.mxu0 0.0
  %414 = vmatpush1.msra.mxu0 %v386
  %415 = vmatprep.subr.mxu0 0.0
  %416 = vmatpush1.msra.mxu0 %v387
  %417 = vmatprep.subr.mxu0 0.0
  %418 = vmatpush1.msra.mxu0 %v388
  %419 = vmatprep.subr.mxu0 0.0
  %420 = vmatpush1.msra.mxu0 %v389
  %421 = vmatprep.subr.mxu0 0.0
  %422 = vmatpush1.msra.mxu0 %v390
  %423 = vmatprep.subr.mxu0 0.0
  %424 = vmatpush1.msra.mxu0 %v391
  %425 = vmatprep.subr.mxu0 0.0
  %426 = vmatpush1.msra.mxu0 %v392
  %427 = vmatprep.subr.mxu0 0.0
  %428 = vmatpush1.msra.mxu0 %v393
  %429 = vmatprep.subr.mxu0 0.0
  %430 = vmatpush1.msra.mxu0 %v394
  %431 = vmatprep.subr.mxu0 0.0
  %432 = vmatpush1.msra.mxu0 0.0
  %433 = vmatprep.subr.mxu0 0.0
  %434 = vmatpush1.msra.mxu0 0.0
  %435 = vmatprep.subr.mxu0 0.0
  %436 = vmatpush1.msra.mxu0 0.0
  %437 = vmatprep.subr.mxu0 0.0
  %438 = vmatpush1.msra.mxu0 0.0
  %439 = vmatprep.subr.mxu0 0.0
  %440 = vmatpush1.msra.mxu0 0.0
  %441 = vmatprep.subr.mxu0 0.0
  %442 = vmatpush1.msra.mxu0 0.0
  %443 = vmatprep.subr.mxu0 0.0
  %444 = vmatpush1.msra.mxu0 0.0
  %445 = vmatprep.subr.mxu0 0.0
  %446 = vmatpush1.msra.mxu0 0.0
  %447 = vmatprep.subr.mxu0 0.0
  %448 = vmatpush1.msra.mxu0 0.0
  %449 = vmatprep.subr.mxu0 0.0
  %450 = vmatpush1.msra.mxu0 0.0
  %451 = vmatprep.subr.mxu0 0.0
  %452 = vmatpush1.msra.mxu0 0.0
  %453 = vmatprep.subr.mxu0 0.0
  %454 = vmatpush1.msra.mxu0 0.0
  %455 = vmatprep.subr.mxu0 0.0
  %456 = vmatpush1.msra.mxu0 0.0
  %457 = vmatprep.subr.mxu0 0.0
  %458 = vmatpush1.msra.mxu0 0.0
  %459 = vmatprep.mubr.f32.mxu0 %v72
  %460 = vmatmul.mubr.f32.gmra.mrb[0].mxu0 %v20
  %v461 = vpop.f32.mrb[0].mxu0
  %v462 = vadd.f32 %v53, %v461
  %v463 = vpop.f32.mrb[0].mxu0
  %464 = vmatprep.mubr.f32.mxu0 %v75
  %465 = vmatmul.mubr.f32.gmra.mrb[0].mxu0 %v22
  %v466 = vpop.f32.mrb[0].mxu0
  %v467 = vadd.f32 %v58, %v466
  %v468 = vpop.f32.mrb[0].mxu0
  %469 = vmatprep.mubr.f32.mxu0 %v78
  %470 = vmatmul.mubr.f32.gmra.mrb[0].mxu0 %v24
  %v471 = vpop.f32.mrb[0].mxu0
  %v472 = vadd.f32 %v63, %v471
  %v473 = vpop.f32.mrb[0].mxu0
  %474 = vmatprep.mubr.f32.mxu0 %v81
  %475 = vmatmul.mubr.f32.gmra.mrb[0].mxu0 %v26
  %v476 = vpop.f32.mrb[0].mxu0
  %v477 = vadd.f32 %v68, %v476
  %v478 = vpop.f32.mrb[0].mxu0
  %479 = vdwg.mxu0
  %v480 = vadd.f32 %v150, %v254
  %v481 = vadd.f32 %v155, %v259
  %v482 = vadd.f32 %v160, %v264
  %v483 = vadd.f32 %v165, %v269
  %v484 = vadd.f32 %v358, %v462
  %v485 = vadd.f32 %v363, %v467
  %v486 = vadd.f32 %v368, %v472
  %v487 = vadd.f32 %v373, %v477
  %v488 = vadd.f32 %v480, %v484
  %v489 = vadd.f32 %v481, %v485
  %v490 = vadd.f32 %v482, %v486
  %v491 = vadd.f32 %v483, %v487
  %v492 = vmul.f32 %v150, %v150
  %v493 = vmul.f32 %v155, %v155
  %v494 = vmul.f32 %v160, %v160
  %v495 = vmul.f32 %v165, %v165
  %v496 = vmul.f32 %v254, %v254
  %v497 = vmul.f32 %v259, %v259
  %v498 = vmul.f32 %v264, %v264
  %v499 = vmul.f32 %v269, %v269
  %v500 = vadd.f32 %v492, %v496
  %v501 = vadd.f32 %v493, %v497
  %v502 = vadd.f32 %v494, %v498
  %v503 = vadd.f32 %v495, %v499
  %v504 = vmul.f32 %v358, %v358
  %v505 = vmul.f32 %v363, %v363
  %v506 = vmul.f32 %v368, %v368
  %v507 = vmul.f32 %v373, %v373
  %v508 = vmul.f32 %v462, %v462
  %v509 = vmul.f32 %v467, %v467
  %v510 = vmul.f32 %v472, %v472
  %v511 = vmul.f32 %v477, %v477
  %v512 = vadd.f32 %v504, %v508
  %v513 = vadd.f32 %v505, %v509
  %v514 = vadd.f32 %v506, %v510
  %v515 = vadd.f32 %v507, %v511
  %v516 = vadd.f32 %v500, %v512
  %v517 = vadd.f32 %v501, %v513
  %v518 = vadd.f32 %v502, %v514
  %v519 = vadd.f32 %v503, %v515
  %520 = vadd.xlane.f32.xlu0 %v488
  %v521 = vpop.xlane.xlu0 %520
  %522 = vadd.xlane.f32.xlu0 %v489
  %v523 = vpop.xlane.xlu0 %522
  %524 = vadd.xlane.f32.xlu0 %v490
  %v525 = vpop.xlane.xlu0 %524
  %526 = vadd.xlane.f32.xlu0 %v491
  %v527 = vpop.xlane.xlu0 %526
  %v528 = vmul.f32 %v521, 0.001953125
  %v529 = vmul.f32 %v523, 0.001953125
  %v530 = vmul.f32 %v525, 0.001953125
  %v531 = vmul.f32 %v527, 0.001953125
  %532 = vadd.xlane.f32.xlu0 %v516
  %v533 = vpop.xlane.xlu0 %532
  %534 = vadd.xlane.f32.xlu0 %v517
  %v535 = vpop.xlane.xlu0 %534
  %536 = vadd.xlane.f32.xlu0 %v518
  %v537 = vpop.xlane.xlu0 %536
  %538 = vadd.xlane.f32.xlu0 %v519
  %v539 = vpop.xlane.xlu0 %538
  %v540 = vmul.f32 %v533, 0.001953125
  %v541 = vmul.f32 %v535, 0.001953125
  %v542 = vmul.f32 %v537, 0.001953125
  %v543 = vmul.f32 %v539, 0.001953125
  %v544 = vmul.f32 %v528, %v528
  %v545 = vmul.f32 %v529, %v529
  %v546 = vmul.f32 %v530, %v530
  %v547 = vmul.f32 %v531, %v531
  %v548 = vsub.f32 %v540, %v544
  %v549 = vsub.f32 %v541, %v545
  %v550 = vsub.f32 %v542, %v546
  %v551 = vsub.f32 %v543, %v547
  %v552 = vmax.f32 %v548, 0.0
  %v553 = vmax.f32 %v549, 0.0
  %v554 = vmax.f32 %v550, 0.0
  %v555 = vmax.f32 %v551, 0.0
  %v556 = vld [vmem:[%s3] sm:$0xff]
  %v557 = vld [vmem:[%s3 + $0x8] sm:$0xff]
  %v558 = vld [vmem:[%s3 + $0x10] sm:$0xff]
  %v559 = vld [vmem:[%s3 + $0x18] sm:$0xff]
  %v560 = vadd.f32 %v552, 1e-05
  %v561 = vadd.f32 %v553, 1e-05
  %v562 = vadd.f32 %v554, 1e-05
  %v563 = vadd.f32 %v555, 1e-05
  %v564 = vrsqrt.pop %v560
  %v565 = vrsqrt.pop %v561
  %v566 = vrsqrt.pop %v562
  %v567 = vrsqrt.pop %v563
  %v568 = vmul.f32 %v556, %v564
  %v569 = vmul.f32 %v557, %v565
  %v570 = vmul.f32 %v558, %v566
  %v571 = vmul.f32 %v559, %v567
  %v572 = vld [vmem:[%s4] sm:$0xff]
  %v573 = vld [vmem:[%s4 + $0x8] sm:$0xff]
  %v574 = vld [vmem:[%s4 + $0x10] sm:$0xff]
  %v575 = vld [vmem:[%s4 + $0x18] sm:$0xff]
  %v576 = vmul.f32 %v528, %v568
  %v577 = vmul.f32 %v529, %v569
  %v578 = vmul.f32 %v530, %v570
  %v579 = vmul.f32 %v531, %v571
  %v580 = vsub.f32 %v572, %v576
  %v581 = vsub.f32 %v573, %v577
  %v582 = vsub.f32 %v574, %v578
  %v583 = vsub.f32 %v575, %v579
  %585 = vset.pattern.permute.xlu0 0
  %586 = vperm.xlu0 %585, %v568
  %v587 = vpop.permute.xlu0 %586
  %590 = vset.pattern.permute.xlu0 0
  %591 = vperm.xlu0 %590, %v569
  %v592 = vpop.permute.xlu0 %591
  %595 = vset.pattern.permute.xlu0 0
  %596 = vperm.xlu0 %595, %v570
  %v597 = vpop.permute.xlu0 %596
  %600 = vset.pattern.permute.xlu0 0
  %601 = vperm.xlu0 %600, %v571
  %v602 = vpop.permute.xlu0 %601
  %v604 = vmul.f32 %v150, %v587
  %v605 = vmul.f32 %v155, %v592
  %v606 = vmul.f32 %v160, %v597
  %v607 = vmul.f32 %v165, %v602
  %609 = vset.pattern.permute.xlu0 0
  %610 = vperm.xlu0 %609, %v580
  %v611 = vpop.permute.xlu0 %610
  %614 = vset.pattern.permute.xlu0 0
  %615 = vperm.xlu0 %614, %v581
  %v616 = vpop.permute.xlu0 %615
  %619 = vset.pattern.permute.xlu0 0
  %620 = vperm.xlu0 %619, %v582
  %v621 = vpop.permute.xlu0 %620
  %624 = vset.pattern.permute.xlu0 0
  %625 = vperm.xlu0 %624, %v583
  %v626 = vpop.permute.xlu0 %625
  %v628 = vadd.f32 %v604, %v611
  %v629 = vadd.f32 %v605, %v616
  %v630 = vadd.f32 %v606, %v621
  %v631 = vadd.f32 %v607, %v626
  %v632 = vmax.f32 %v628, 0.0
  %v633 = vmax.f32 %v629, 0.0
  %v634 = vmax.f32 %v630, 0.0
  %v635 = vmax.f32 %v631, 0.0
  %v636 = vmul.f32 %v254, %v587
  %v637 = vmul.f32 %v259, %v592
  %v638 = vmul.f32 %v264, %v597
  %v639 = vmul.f32 %v269, %v602
  %v640 = vadd.f32 %v636, %v611
  %v641 = vadd.f32 %v637, %v616
  %v642 = vadd.f32 %v638, %v621
  %v643 = vadd.f32 %v639, %v626
  %v644 = vmax.f32 %v640, 0.0
  %v645 = vmax.f32 %v641, 0.0
  %v646 = vmax.f32 %v642, 0.0
  %v647 = vmax.f32 %v643, 0.0
  %v648 = vmul.f32 %v358, %v587
  %v649 = vmul.f32 %v363, %v592
  %v650 = vmul.f32 %v368, %v597
  %v651 = vmul.f32 %v373, %v602
  %v652 = vadd.f32 %v648, %v611
  %v653 = vadd.f32 %v649, %v616
  %v654 = vadd.f32 %v650, %v621
  %v655 = vadd.f32 %v651, %v626
  %v656 = vmax.f32 %v652, 0.0
  %v657 = vmax.f32 %v653, 0.0
  %v658 = vmax.f32 %v654, 0.0
  %v659 = vmax.f32 %v655, 0.0
  %v660 = vmul.f32 %v462, %v587
  %v661 = vmul.f32 %v467, %v592
  %v662 = vmul.f32 %v472, %v597
  %v663 = vmul.f32 %v477, %v602
  %v664 = vadd.f32 %v660, %v611
  %v665 = vadd.f32 %v661, %v616
  %v666 = vadd.f32 %v662, %v621
  %v667 = vadd.f32 %v663, %v626
  %v668 = vmax.f32 %v664, 0.0
  %v669 = vmax.f32 %v665, 0.0
  %v670 = vmax.f32 %v666, 0.0
  %v671 = vmax.f32 %v667, 0.0
  %v672 = vmax.f32 %v632, %v644
  %v673 = vmax.f32 %v633, %v645
  %v674 = vmax.f32 %v634, %v646
  %v675 = vmax.f32 %v635, %v647
  %v676 = vmax.f32 %v656, %v668
  %v677 = vmax.f32 %v657, %v669
  %v678 = vmax.f32 %v658, %v670
  %v679 = vmax.f32 %v659, %v671
  %v680 = vmax.f32 %v672, %v676
  %v681 = vmax.f32 %v673, %v677
  %v682 = vmax.f32 %v674, %v678
  %v683 = vmax.f32 %v675, %v679
  %684 = vst [vmem:[%s5] sm:$0xff] %v680
  %685 = vst [vmem:[%s5 + $0x8] sm:$0xff] %v681
  %686 = vst [vmem:[%s5 + $0x10] sm:$0xff] %v682
  %687 = vst [vmem:[%s5 + $0x18] sm:$0xff] %v683
  // Predicated region
  $region22: #{batchnorm_net_forward.5} parent=0 // pred_check
    _
  $region23: #{batchnorm_net_forward.5} parent=0 // pred_check_branch
    %689 = sbr.rel (0) target = $region25
  $region24: #{batchnorm_net_forward.5} parent=0 // pred_region
    _
  $region25: #{batchnorm_net_forward.5} parent=0 // pred_fallthru
    _
  // Predicated region
  $region26: #{batchnorm_net_forward.5} parent=0 // pred_check
    _
  $region27: #{batchnorm_net_forward.5} parent=0 // pred_check_branch
    %691 = sbr.rel (0) target = $region29
  $region28: #{batchnorm_net_forward.5} parent=0 // pred_region
    _
  $region29: #{batchnorm_net_forward.5} parent=0 // pred_fallthru
    _

// kernel: batchnorm_net_forward.6
$region0: #{batchnorm_net_forward.6}
  #allocation0 [shape = 'u32[]', space=smem, size = 0x4, offset = 0x4, fixed_abs, tag = 'smem constant byte address 0x4 - core index']
  #allocation1 [shape = 'u32[144,128]{1,0:T(1,128)}', space=vmem, size = 0x12000, scoped, tag = 'internal scratch']
  %s0 = inlined_call_operand.vmem [shape: f32[4,288,32], index: 0, kind: input, shape index: {}]
  %s1 = inlined_call_operand.vmem [shape: f32[64,288], index: 1, kind: input, shape index: {}]
  %s2 = inlined_call_operand.vmem [shape: f32[64,1], index: 2, kind: input, shape index: {}]
  %s3 = inlined_call_operand.vmem [shape: f32[64,1], index: 3, kind: input, shape index: {}]
  %s4 = inlined_call_operand.vmem [shape: f32[64,1], index: 4, kind: input, shape index: {}]
  %s5 = inlined_call_operand.vmem [shape: f32[64,32], index: 5, kind: output, shape index: {}]
  %s6 = sld [smem:[#allocation0]]
  $region30: #{batchnorm_net_forward.6} parent=0
    _
  %s8 = ssub.s32 1, %s6
  %s9 = scalar_select 0, %s8, %s6
  // Predicated region
  $region2: #{batchnorm_net_forward.6} parent=0 // pred_check
    _
  $region3: #{batchnorm_net_forward.6} parent=0 // pred_check_branch
    %11 = sbr.rel (0) target = $region5
  $region4: #{batchnorm_net_forward.6} parent=0 // pred_region
    _
  $region5: #{batchnorm_net_forward.6} parent=0 // pred_fallthru
    _
  // Predicated region
  $region6: #{batchnorm_net_forward.6} parent=0 // pred_check
    _
  $region7: #{batchnorm_net_forward.6} parent=0 // pred_check_branch
    %13 = sbr.rel (0) target = $region9
  $region8: #{batchnorm_net_forward.6} parent=0 // pred_region
    _
  $region9: #{batchnorm_net_forward.6} parent=0 // pred_fallthru
    _
  // Predicated region
  $region10: #{batchnorm_net_forward.6} parent=0 // pred_check
    _
  $region11: #{batchnorm_net_forward.6} parent=0 // pred_check_branch
    %15 = sbr.rel (0) target = $region13
  $region12: #{batchnorm_net_forward.6} parent=0 // pred_region
    _
  $region13: #{batchnorm_net_forward.6} parent=0 // pred_fallthru
    _
  // Predicated region
  $region14: #{batchnorm_net_forward.6} parent=0 // pred_check
    _
  $region15: #{batchnorm_net_forward.6} parent=0 // pred_check_branch
    %17 = sbr.rel (0) target = $region17
  $region16: #{batchnorm_net_forward.6} parent=0 // pred_region
    _
  $region17: #{batchnorm_net_forward.6} parent=0 // pred_fallthru
    _
  // Predicated region
  $region18: #{batchnorm_net_forward.6} parent=0 // pred_check
    _
  $region19: #{batchnorm_net_forward.6} parent=0 // pred_check_branch
    %19 = sbr.rel (0) target = $region21
  $region20: #{batchnorm_net_forward.6} parent=0 // pred_region
    _
  $region21: #{batchnorm_net_forward.6} parent=0 // pred_fallthru
    _
  %v20 = vld [vmem:[%s1] sm:$0xff]
  %v21 = vld [vmem:[%s1 + $0x8] sm:$0xff]
  %v22 = vld [vmem:[%s1 + $0x10] sm:$0xff]
  %v23 = vld [vmem:[%s1 + $0x18] sm:$0xff]
  %v24 = vld [vmem:[%s1 + $0x20] sm:$0xff]
  %v25 = vld [vmem:[%s1 + $0x28] sm:$0xff]
  %v26 = vld [vmem:[%s1 + $0x30] sm:$0xff]
  %v27 = vld [vmem:[%s1 + $0x38] sm:$0xff]
  %v28 = vld [vmem:[%s1 + $0x40] sm:$0xff]
  %v29 = vld [vmem:[%s1 + $0x48] sm:$0xff]
  %v30 = vld [vmem:[%s1 + $0x50] sm:$0xff]
  %v31 = vld [vmem:[%s1 + $0x58] sm:$0xff]
  %v32 = vld [vmem:[%s1 + $0x60] sm:$0xff]
  %v33 = vld [vmem:[%s1 + $0x68] sm:$0xff]
  %v34 = vld [vmem:[%s1 + $0x70] sm:$0xff]
  %v35 = vld [vmem:[%s1 + $0x78] sm:$0xff]
  %v36 = vld [vmem:[%s1 + $0x80] sm:$0xff]
  %v37 = vld [vmem:[%s1 + $0x88] sm:$0xff]
  %v38 = vld [vmem:[%s1 + $0x90] sm:$0xff]
  %v39 = vld [vmem:[%s1 + $0x98] sm:$0xff]
  %v40 = vld [vmem:[%s1 + $0xa0] sm:$0xff]
  %v41 = vld [vmem:[%s1 + $0xa8] sm:$0xff]
  %v42 = vld [vmem:[%s1 + $0xb0] sm:$0xff]
  %v43 = vld [vmem:[%s1 + $0xb8] sm:$0xff]
  %v44 = vld [vmem:[%s2] sm:$0xff]
  %v45 = vld [vmem:[%s2 + $0x8] sm:$0xff]
  %v46 = vld [vmem:[%s2 + $0x10] sm:$0xff]
  %v47 = vld [vmem:[%s2 + $0x18] sm:$0xff]
  %v48 = vld [vmem:[%s2 + $0x20] sm:$0xff]
  %v49 = vld [vmem:[%s2 + $0x28] sm:$0xff]
  %v50 = vld [vmem:[%s2 + $0x30] sm:$0xff]
  %v51 = vld [vmem:[%s2 + $0x38] sm:$0xff]
  %v52 = vld [vmem:[%s0] sm:$0xff]
  %v53 = vld [vmem:[%s0 + $0x8] sm:$0xff]
  %v54 = vld [vmem:[%s0 + $0x10] sm:$0xff]
  %v55 = vld [vmem:[%s0 + $0x18] sm:$0xff]
  %v56 = vld [vmem:[%s0 + $0x20] sm:$0xff]
  %v57 = vld [vmem:[%s0 + $0x28] sm:$0xff]
  %v58 = vld [vmem:[%s0 + $0x30] sm:$0xff]
  %v59 = vld [vmem:[%s0 + $0x38] sm:$0xff]
  %v60 = vld [vmem:[%s0 + $0x40] sm:$0xff]
  %v61 = vld [vmem:[%s0 + $0x48] sm:$0xff]
  %v62 = vld [vmem:[%s0 + $0x50] sm:$0xff]
  %v63 = vld [vmem:[%s0 + $0x58] sm:$0xff]
  %v64 = vld [vmem:[%s0 + $0x60] sm:$0xff]
  %v65 = vld [vmem:[%s0 + $0x68] sm:$0xff]
  %v66 = vld [vmem:[%s0 + $0x70] sm:$0xff]
  %v67 = vld [vmem:[%s0 + $0x78] sm:$0xff]
  %v68 = vld [vmem:[%s0 + $0x80] sm:$0xff]
  %v69 = vld [vmem:[%s0 + $0x88] sm:$0xff]
  %v70 = vld [vmem:[%s0 + $0x90] sm:$0xff]
  %v71 = vld [vmem:[%s0 + $0x98] sm:$0xff]
  %v72 = vld [vmem:[%s0 + $0xa0] sm:$0xff]
  %v73 = vld [vmem:[%s0 + $0xa8] sm:$0xff]
  %v74 = vld [vmem:[%s0 + $0xb0] sm:$0xff]
  %v75 = vld [vmem:[%s0 + $0xb8] sm:$0xff]
  %v76 = vld [vmem:[%s0 + $0xc0] sm:$0xff]
  %v77 = vld [vmem:[%s0 + $0xc8] sm:$0xff]
  %v78 = vld [vmem:[%s0 + $0xd0] sm:$0xff]
  %v79 = vld [vmem:[%s0 + $0xd8] sm:$0xff]
  %v80 = vld [vmem:[%s0 + $0xe0] sm:$0xff]
  %v81 = vld [vmem:[%s0 + $0xe8] sm:$0xff]
  %v82 = vld [vmem:[%s0 + $0xf0] sm:$0xff]
  %v83 = vld [vmem:[%s0 + $0xf8] sm:$0xff]
  %v84 = vld [vmem:[%s0 + $0x100] sm:$0xff]
  %v85 = vld [vmem:[%s0 + $0x108] sm:$0xff]
  %v86 = vld [vmem:[%s0 + $0x110] sm:$0xff]
  %v87 = vld [vmem:[%s0 + $0x118] sm:$0xff]
  %89 = vset.pattern.permute.xlu0 0
  %90 = vperm.xlu0 %89, %v44
  %v91 = vpop.permute.xlu0 %90
  %94 = vset.pattern.permute.xlu0 0
  %95 = vperm.xlu0 %94, %v45
  %v96 = vpop.permute.xlu0 %95
  %99 = vset.pattern.permute.xlu0 0
  %100 = vperm.xlu0 %99, %v46
  %v101 = vpop.permute.xlu0 %100
  %104 = vset.pattern.permute.xlu0 0
  %105 = vperm.xlu0 %104, %v47
  %v106 = vpop.permute.xlu0 %105
  %109 = vset.pattern.permute.xlu0 0
  %110 = vperm.xlu0 %109, %v48
  %v111 = vpop.permute.xlu0 %110
  %114 = vset.pattern.permute.xlu0 0
  %115 = vperm.xlu0 %114, %v49
  %v116 = vpop.permute.xlu0 %115
  %119 = vset.pattern.permute.xlu0 0
  %120 = vperm.xlu0 %119, %v50
  %v121 = vpop.permute.xlu0 %120
  %124 = vset.pattern.permute.xlu0 0
  %125 = vperm.xlu0 %124, %v51
  %v126 = vpop.permute.xlu0 %125
  %vm128 = vcmask 261120
  %v130 = vsel %vm128, %v22, 0
  %v133 = vsel %vm128, %v25, 0
  %v136 = vsel %vm128, %v28, 0
  %v139 = vsel %vm128, %v31, 0
  %v142 = vsel %vm128, %v34, 0
  %v145 = vsel %vm128, %v37, 0
  %v148 = vsel %vm128, %v40, 0
  %v151 = vsel %vm128, %v43, 0
  %153 = vmatprep.subr.mxu0 0.0
  %154 = vmatpush1.msra.mxu0 %v52
  %155 = vmatprep.subr.mxu0 0.0
  %156 = vmatpush1.msra.mxu0 %v53
  %157 = vmatprep.subr.mxu0 0.0
  %158 = vmatpush1.msra.mxu0 %v54
  %159 = vmatprep.subr.mxu0 0.0
  %160 = vmatpush1.msra.mxu0 %v55
  %161 = vmatprep.subr.mxu0 0.0
  %162 = vmatpush1.msra.mxu0 %v56
  %163 = vmatprep.subr.mxu0 0.0
  %164 = vmatpush1.msra.mxu0 %v57
  %165 = vmatprep.subr.mxu0 0.0
  %166 = vmatpush1.msra.mxu0 %v58
  %167 = vmatprep.subr.mxu0 0.0
  %168 = vmatpush1.msra.mxu0 %v59
  %169 = vmatprep.subr.mxu0 0.0
  %170 = vmatpush1.msra.mxu0 %v60
  %171 = vmatprep.subr.mxu0 0.0
  %172 = vmatpush1.msra.mxu0 %v61
  %173 = vmatprep.subr.mxu0 0.0
  %174 = vmatpush1.msra.mxu0 %v62
  %175 = vmatprep.subr.mxu0 0.0
  %176 = vmatpush1.msra.mxu0 %v63
  %177 = vmatprep.subr.mxu0 0.0
  %178 = vmatpush1.msra.mxu0 %v64
  %179 = vmatprep.subr.mxu0 0.0
  %180 = vmatpush1.msra.mxu0 %v65
  %181 = vmatprep.subr.mxu0 0.0
  %182 = vmatpush1.msra.mxu0 %v66
  %183 = vmatprep.subr.mxu0 0.0
  %184 = vmatpush1.msra.mxu0 %v67
  %185 = vmatprep.subr.mxu0 0.0
  %186 = vmatpush1.msra.mxu0 %v68
  %187 = vmatprep.subr.mxu0 0.0
  %188 = vmatpush1.msra.mxu0 %v69
  %189 = vmatprep.subr.mxu0 0.0
  %190 = vmatpush1.msra.mxu0 %v70
  %191 = vmatprep.subr.mxu0 0.0
  %192 = vmatpush1.msra.mxu0 %v71
  %193 = vmatprep.subr.mxu0 0.0
  %194 = vmatpush1.msra.mxu0 %v72
  %195 = vmatprep.subr.mxu0 0.0
  %196 = vmatpush1.msra.mxu0 %v73
  %197 = vmatprep.subr.mxu0 0.0
  %198 = vmatpush1.msra.mxu0 %v74
  %199 = vmatprep.subr.mxu0 0.0
  %200 = vmatpush1.msra.mxu0 %v75
  %201 = vmatprep.subr.mxu0 0.0
  %202 = vmatpush1.msra.mxu0 %v76
  %203 = vmatprep.subr.mxu0 0.0
  %204 = vmatpush1.msra.mxu0 %v77
  %205 = vmatprep.subr.mxu0 0.0
  %206 = vmatpush1.msra.mxu0 %v78
  %207 = vmatprep.subr.mxu0 0.0
  %208 = vmatpush1.msra.mxu0 %v79
  %209 = vmatprep.subr.mxu0 0.0
  %210 = vmatpush1.msra.mxu0 %v80
  %211 = vmatprep.subr.mxu0 0.0
  %212 = vmatpush1.msra.mxu0 %v81
  %213 = vmatprep.subr.mxu0 0.0
  %214 = vmatpush1.msra.mxu0 %v82
  %215 = vmatprep.subr.mxu0 0.0
  %216 = vmatpush1.msra.mxu0 %v83
  %217 = vmatprep.mubr.f32.mxu0 %v21
  %218 = vmatmul.mubr.f32.gmra.mrb[0].mxu0 %v20
  %v219 = vpop.f32.mrb[0].mxu0
  %v220 = vadd.f32 %v91, %v219
  %v221 = vpop.f32.mrb[0].mxu0
  %222 = vmatprep.mubr.f32.mxu0 %v24
  %223 = vmatmul.mubr.f32.gmra.mrb[0].mxu0 %v23
  %v224 = vpop.f32.mrb[0].mxu0
  %v225 = vadd.f32 %v96, %v224
  %v226 = vpop.f32.mrb[0].mxu0
  %227 = vmatprep.mubr.f32.mxu0 %v27
  %228 = vmatmul.mubr.f32.gmra.mrb[0].mxu0 %v26
  %v229 = vpop.f32.mrb[0].mxu0
  %v230 = vadd.f32 %v101, %v229
  %v231 = vpop.f32.mrb[0].mxu0
  %232 = vmatprep.mubr.f32.mxu0 %v30
  %233 = vmatmul.mubr.f32.gmra.mrb[0].mxu0 %v29
  %v234 = vpop.f32.mrb[0].mxu0
  %v235 = vadd.f32 %v106, %v234
  %v236 = vpop.f32.mrb[0].mxu0
  %237 = vmatprep.mubr.f32.mxu0 %v33
  %238 = vmatmul.mubr.f32.gmra.mrb[0].mxu0 %v32
  %v239 = vpop.f32.mrb[0].mxu0
  %v240 = vadd.f32 %v111, %v239
  %v241 = vpop.f32.mrb[0].mxu0
  %242 = vmatprep.mubr.f32.mxu0 %v36
  %243 = vmatmul.mubr.f32.gmra.mrb[0].mxu0 %v35
  %v244 = vpop.f32.mrb[0].mxu0
  %v245 = vadd.f32 %v116, %v244
  %v246 = vpop.f32.mrb[0].mxu0
  %247 = vmatprep.mubr.f32.mxu0 %v39
  %248 = vmatmul.mubr.f32.gmra.mrb[0].mxu0 %v38
  %v249 = vpop.f32.mrb[0].mxu0
  %v250 = vadd.f32 %v121, %v249
  %v251 = vpop.f32.mrb[0].mxu0
  %252 = vmatprep.mubr.f32.mxu0 %v42
  %253 = vmatmul.mubr.f32.gmra.mrb[0].mxu0 %v41
  %v254 = vpop.f32.mrb[0].mxu0
  %v255 = vadd.f32 %v126, %v254
  %v256 = vpop.f32.mrb[0].mxu0
  %257 = vdwg.mxu0
  %258 = vmatprep.subr.mxu0 0.0
  %259 = vmatpush1.msra.mxu0 %v84
  %260 = vmatprep.subr.mxu0 0.0
  %261 = vmatpush1.msra.mxu0 %v85
  %262 = vmatprep.subr.mxu0 0.0
  %263 = vmatpush1.msra.mxu0 %v86
  %264 = vmatprep.subr.mxu0 0.0
  %265 = vmatpush1.msra.mxu0 %v87
  %266 = vmatprep.subr.mxu0 0.0
  %267 = vmatpush1.msra.mxu0 0.0
  %268 = vmatprep.subr.mxu0 0.0
  %269 = vmatpush1.msra.mxu0 0.0
  %270 = vmatprep.subr.mxu0 0.0
  %271 = vmatpush1.msra.mxu0 0.0
  %272 = vmatprep.subr.mxu0 0.0
  %273 = vmatpush1.msra.mxu0 0.0
  %274 = vmatprep.subr.mxu0 0.0
  %275 = vmatpush1.msra.mxu0 0.0
  %276 = vmatprep.subr.mxu0 0.0
  %277 = vmatpush1.msra.mxu0 0.0
  %278 = vmatprep.subr.mxu0 0.0
  %279 = vmatpush1.msra.mxu0 0.0
  %280 = vmatprep.subr.mxu0 0.0
  %281 = vmatpush1.msra.mxu0 0.0
  %282 = vmatprep.subr.mxu0 0.0
  %283 = vmatpush1.msra.mxu0 0.0
  %284 = vmatprep.subr.mxu0 0.0
  %285 = vmatpush1.msra.mxu0 0.0
  %286 = vmatprep.subr.mxu0 0.0
  %287 = vmatpush1.msra.mxu0 0.0
  %288 = vmatprep.subr.mxu0 0.0
  %289 = vmatpush1.msra.mxu0 0.0
  %290 = vmatprep.subr.mxu0 0.0
  %291 = vmatpush1.msra.mxu0 0.0
  %292 = vmatprep.subr.mxu0 0.0
  %293 = vmatpush1.msra.mxu0 0.0
  %294 = vmatprep.subr.mxu0 0.0
  %295 = vmatpush1.msra.mxu0 0.0
  %296 = vmatprep.subr.mxu0 0.0
  %297 = vmatpush1.msra.mxu0 0.0
  %298 = vmatprep.subr.mxu0 0.0
  %299 = vmatpush1.msra.mxu0 0.0
  %300 = vmatprep.subr.mxu0 0.0
  %301 = vmatpush1.msra.mxu0 0.0
  %302 = vmatprep.subr.mxu0 0.0
  %303 = vmatpush1.msra.mxu0 0.0
  %304 = vmatprep.subr.mxu0 0.0
  %305 = vmatpush1.msra.mxu0 0.0
  %306 = vmatprep.subr.mxu0 0.0
  %307 = vmatpush1.msra.mxu0 0.0
  %308 = vmatprep.subr.mxu0 0.0
  %309 = vmatpush1.msra.mxu0 0.0
  %310 = vmatprep.subr.mxu0 0.0
  %311 = vmatpush1.msra.mxu0 0.0
  %312 = vmatprep.subr.mxu0 0.0
  %313 = vmatpush1.msra.mxu0 0.0
  %314 = vmatprep.subr.mxu0 0.0
  %315 = vmatpush1.msra.mxu0 0.0
  %316 = vmatprep.subr.mxu0 0.0
  %317 = vmatpush1.msra.mxu0 0.0
  %318 = vmatprep.subr.mxu0 0.0
  %319 = vmatpush1.msra.mxu0 0.0
  %320 = vmatprep.subr.mxu0 0.0
  %321 = vmatpush1.msra.mxu0 0.0
  %322 = vmatprep.mubr.f32.mxu0 0.0
  %323 = vmatmul.mubr.f32.gmra.mrb[0].mxu0 %v130
  %v324 = vpop.f32.mrb[0].mxu0
  %v325 = vadd.f32 %v220, %v324
  %v326 = vpop.f32.mrb[0].mxu0
  %327 = vmatprep.mubr.f32.mxu0 0.0
  %328 = vmatmul.mubr.f32.gmra.mrb[0].mxu0 %v133
  %v329 = vpop.f32.mrb[0].mxu0
  %v330 = vadd.f32 %v225, %v329
  %v331 = vpop.f32.mrb[0].mxu0
  %332 = vmatprep.mubr.f32.mxu0 0.0
  %333 = vmatmul.mubr.f32.gmra.mrb[0].mxu0 %v136
  %v334 = vpop.f32.mrb[0].mxu0
  %v335 = vadd.f32 %v230, %v334
  %v336 = vpop.f32.mrb[0].mxu0
  %337 = vmatprep.mubr.f32.mxu0 0.0
  %338 = vmatmul.mubr.f32.gmra.mrb[0].mxu0 %v139
  %v339 = vpop.f32.mrb[0].mxu0
  %v340 = vadd.f32 %v235, %v339
  %v341 = vpop.f32.mrb[0].mxu0
  %342 = vmatprep.mubr.f32.mxu0 0.0
  %343 = vmatmul.mubr.f32.gmra.mrb[0].mxu0 %v142
  %v344 = vpop.f32.mrb[0].mxu0
  %v345 = vadd.f32 %v240, %v344
  %v346 = vpop.f32.mrb[0].mxu0
  %347 = vmatprep.mubr.f32.mxu0 0.0
  %348 = vmatmul.mubr.f32.gmra.mrb[0].mxu0 %v145
  %v349 = vpop.f32.mrb[0].mxu0
  %v350 = vadd.f32 %v245, %v349
  %v351 = vpop.f32.mrb[0].mxu0
  %352 = vmatprep.mubr.f32.mxu0 0.0
  %353 = vmatmul.mubr.f32.gmra.mrb[0].mxu0 %v148
  %v354 = vpop.f32.mrb[0].mxu0
  %v355 = vadd.f32 %v250, %v354
  %v356 = vpop.f32.mrb[0].mxu0
  %357 = vmatprep.mubr.f32.mxu0 0.0
  %358 = vmatmul.mubr.f32.gmra.mrb[0].mxu0 %v151
  %v359 = vpop.f32.mrb[0].mxu0
  %v360 = vadd.f32 %v255, %v359
  %v361 = vpop.f32.mrb[0].mxu0
  %362 = vdwg.mxu0
  %s363 = scalar_lea.vmem %s0, 288
  %v364 = vld [vmem:[%s363] sm:$0xff]
  %v365 = vld [vmem:[%s363 + $0x8] sm:$0xff]
  %v366 = vld [vmem:[%s363 + $0x10] sm:$0xff]
  %v367 = vld [vmem:[%s363 + $0x18] sm:$0xff]
  %v368 = vld [vmem:[%s363 + $0x20] sm:$0xff]
  %v369 = vld [vmem:[%s363 + $0x28] sm:$0xff]
  %v370 = vld [vmem:[%s363 + $0x30] sm:$0xff]
  %v371 = vld [vmem:[%s363 + $0x38] sm:$0xff]
  %v372 = vld [vmem:[%s363 + $0x40] sm:$0xff]
  %v373 = vld [vmem:[%s363 + $0x48] sm:$0xff]
  %v374 = vld [vmem:[%s363 + $0x50] sm:$0xff]
  %v375 = vld [vmem:[%s363 + $0x58] sm:$0xff]
  %v376 = vld [vmem:[%s363 + $0x60] sm:$0xff]
  %v377 = vld [vmem:[%s363 + $0x68] sm:$0xff]
  %v378 = vld [vmem:[%s363 + $0x70] sm:$0xff]
  %v379 = vld [vmem:[%s363 + $0x78] sm:$0xff]
  %v380 = vld [vmem:[%s363 + $0x80] sm:$0xff]
  %v381 = vld [vmem:[%s363 + $0x88] sm:$0xff]
  %v382 = vld [vmem:[%s363 + $0x90] sm:$0xff]
  %v383 = vld [vmem:[%s363 + $0x98] sm:$0xff]
  %v384 = vld [vmem:[%s363 + $0xa0] sm:$0xff]
  %v385 = vld [vmem:[%s363 + $0xa8] sm:$0xff]
  %v386 = vld [vmem:[%s363 + $0xb0] sm:$0xff]
  %v387 = vld [vmem:[%s363 + $0xb8] sm:$0xff]
  %v388 = vld [vmem:[%s363 + $0xc0] sm:$0xff]
  %v389 = vld [vmem:[%s363 + $0xc8] sm:$0xff]
  %v390 = vld [vmem:[%s363 + $0xd0] sm:$0xff]
  %v391 = vld [vmem:[%s363 + $0xd8] sm:$0xff]
  %v392 = vld [vmem:[%s363 + $0xe0] sm:$0xff]
  %v393 = vld [vmem:[%s363 + $0xe8] sm:$0xff]
  %v394 = vld [vmem:[%s363 + $0xf0] sm:$0xff]
  %v395 = vld [vmem:[%s363 + $0xf8] sm:$0xff]
  %v396 = vld [vmem:[%s363 + $0x100] sm:$0xff]
  %v397 = vld [vmem:[%s363 + $0x108] sm:$0xff]
  %v398 = vld [vmem:[%s363 + $0x110] sm:$0xff]
  %v399 = vld [vmem:[%s363 + $0x118] sm:$0xff]
  %400 = vmatprep.subr.mxu0 0.0
  %401 = vmatpush1.msra.mxu0 %v364
  %402 = vmatprep.subr.mxu0 0.0
  %403 = vmatpush1.msra.mxu0 %v365
  %404 = vmatprep.subr.mxu0 0.0
  %405 = vmatpush1.msra.mxu0 %v366
  %406 = vmatprep.subr.mxu0 0.0
  %407 = vmatpush1.msra.mxu0 %v367
  %408 = vmatprep.subr.mxu0 0.0
  %409 = vmatpush1.msra.mxu0 %v368
  %410 = vmatprep.subr.mxu0 0.0
  %411 = vmatpush1.msra.mxu0 %v369
  %412 = vmatprep.subr.mxu0 0.0
  %413 = vmatpush1.msra.mxu0 %v370
  %414 = vmatprep.subr.mxu0 0.0
  %415 = vmatpush1.msra.mxu0 %v371
  %416 = vmatprep.subr.mxu0 0.0
  %417 = vmatpush1.msra.mxu0 %v372
  %418 = vmatprep.subr.mxu0 0.0
  %419 = vmatpush1.msra.mxu0 %v373
  %420 = vmatprep.subr.mxu0 0.0
  %421 = vmatpush1.msra.mxu0 %v374
  %422 = vmatprep.subr.mxu0 0.0
  %423 = vmatpush1.msra.mxu0 %v375
  %424 = vmatprep.subr.mxu0 0.0
  %425 = vmatpush1.msra.mxu0 %v376
  %426 = vmatprep.subr.mxu0 0.0
  %427 = vmatpush1.msra.mxu0 %v377
  %428 = vmatprep.subr.mxu0 0.0
  %429 = vmatpush1.msra.mxu0 %v378
  %430 = vmatprep.subr.mxu0 0.0
  %431 = vmatpush1.msra.mxu0 %v379
  %432 = vmatprep.subr.mxu0 0.0
  %433 = vmatpush1.msra.mxu0 %v380
  %434 = vmatprep.subr.mxu0 0.0
  %435 = vmatpush1.msra.mxu0 %v381
  %436 = vmatprep.subr.mxu0 0.0
  %437 = vmatpush1.msra.mxu0 %v382
  %438 = vmatprep.subr.mxu0 0.0
  %439 = vmatpush1.msra.mxu0 %v383
  %440 = vmatprep.subr.mxu0 0.0
  %441 = vmatpush1.msra.mxu0 %v384
  %442 = vmatprep.subr.mxu0 0.0
  %443 = vmatpush1.msra.mxu0 %v385
  %444 = vmatprep.subr.mxu0 0.0
  %445 = vmatpush1.msra.mxu0 %v386
  %446 = vmatprep.subr.mxu0 0.0
  %447 = vmatpush1.msra.mxu0 %v387
  %448 = vmatprep.subr.mxu0 0.0
  %449 = vmatpush1.msra.mxu0 %v388
  %450 = vmatprep.subr.mxu0 0.0
  %451 = vmatpush1.msra.mxu0 %v389
  %452 = vmatprep.subr.mxu0 0.0
  %453 = vmatpush1.msra.mxu0 %v390
  %454 = vmatprep.subr.mxu0 0.0
  %455 = vmatpush1.msra.mxu0 %v391
  %456 = vmatprep.subr.mxu0 0.0
  %457 = vmatpush1.msra.mxu0 %v392
  %458 = vmatprep.subr.mxu0 0.0
  %459 = vmatpush1.msra.mxu0 %v393
  %460 = vmatprep.subr.mxu0 0.0
  %461 = vmatpush1.msra.mxu0 %v394
  %462 = vmatprep.subr.mxu0 0.0
  %463 = vmatpush1.msra.mxu0 %v395
  %464 = vmatprep.mubr.f32.mxu0 %v21
  %465 = vmatmul.mubr.f32.gmra.mrb[0].mxu0 %v20
  %v466 = vpop.f32.mrb[0].mxu0
  %v467 = vadd.f32 %v91, %v466
  %v468 = vpop.f32.mrb[0].mxu0
  %469 = vmatprep.mubr.f32.mxu0 %v24
  %470 = vmatmul.mubr.f32.gmra.mrb[0].mxu0 %v23
  %v471 = vpop.f32.mrb[0].mxu0
  %v472 = vadd.f32 %v96, %v471
  %v473 = vpop.f32.mrb[0].mxu0
  %474 = vmatprep.mubr.f32.mxu0 %v27
  %475 = vmatmul.mubr.f32.gmra.mrb[0].mxu0 %v26
  %v476 = vpop.f32.mrb[0].mxu0
  %v477 = vadd.f32 %v101, %v476
  %v478 = vpop.f32.mrb[0].mxu0
  %479 = vmatprep.mubr.f32.mxu0 %v30
  %480 = vmatmul.mubr.f32.gmra.mrb[0].mxu0 %v29
  %v481 = vpop.f32.mrb[0].mxu0
  %v482 = vadd.f32 %v106, %v481
  %v483 = vpop.f32.mrb[0].mxu0
  %484 = vmatprep.mubr.f32.mxu0 %v33
  %485 = vmatmul.mubr.f32.gmra.mrb[0].mxu0 %v32
  %v486 = vpop.f32.mrb[0].mxu0
  %v487 = vadd.f32 %v111, %v486
  %v488 = vpop.f32.mrb[0].mxu0
  %489 = vmatprep.mubr.f32.mxu0 %v36
  %490 = vmatmul.mubr.f32.gmra.mrb[0].mxu0 %v35
  %v491 = vpop.f32.mrb[0].mxu0
  %v492 = vadd.f32 %v116, %v491
  %v493 = vpop.f32.mrb[0].mxu0
  %494 = vmatprep.mubr.f32.mxu0 %v39
  %495 = vmatmul.mubr.f32.gmra.mrb[0].mxu0 %v38
  %v496 = vpop.f32.mrb[0].mxu0
  %v497 = vadd.f32 %v121, %v496
  %v498 = vpop.f32.mrb[0].mxu0
  %499 = vmatprep.mubr.f32.mxu0 %v42
  %500 = vmatmul.mubr.f32.gmra.mrb[0].mxu0 %v41
  %v501 = vpop.f32.mrb[0].mxu0
  %v502 = vadd.f32 %v126, %v501
  %v503 = vpop.f32.mrb[0].mxu0
  %504 = vdwg.mxu0
  %505 = vmatprep.subr.mxu0 0.0
  %506 = vmatpush1.msra.mxu0 %v396
  %507 = vmatprep.subr.mxu0 0.0
  %508 = vmatpush1.msra.mxu0 %v397
  %509 = vmatprep.subr.mxu0 0.0
  %510 = vmatpush1.msra.mxu0 %v398
  %511 = vmatprep.subr.mxu0 0.0
  %512 = vmatpush1.msra.mxu0 %v399
  %513 = vmatprep.subr.mxu0 0.0
  %514 = vmatpush1.msra.mxu0 0.0
  %515 = vmatprep.subr.mxu0 0.0
  %516 = vmatpush1.msra.mxu0 0.0
  %517 = vmatprep.subr.mxu0 0.0
  %518 = vmatpush1.msra.mxu0 0.0
  %519 = vmatprep.subr.mxu0 0.0
  %520 = vmatpush1.msra.mxu0 0.0
  %521 = vmatprep.subr.mxu0 0.0
  %522 = vmatpush1.msra.mxu0 0.0
  %523 = vmatprep.subr.mxu0 0.0
  %524 = vmatpush1.msra.mxu0 0.0
  %525 = vmatprep.subr.mxu0 0.0
  %526 = vmatpush1.msra.mxu0 0.0
  %527 = vmatprep.subr.mxu0 0.0
  %528 = vmatpush1.msra.mxu0 0.0
  %529 = vmatprep.subr.mxu0 0.0
  %530 = vmatpush1.msra.mxu0 0.0
  %531 = vmatprep.subr.mxu0 0.0
  %532 = vmatpush1.msra.mxu0 0.0
  %533 = vmatprep.subr.mxu0 0.0
  %534 = vmatpush1.msra.mxu0 0.0
  %535 = vmatprep.subr.mxu0 0.0
  %536 = vmatpush1.msra.mxu0 0.0
  %537 = vmatprep.subr.mxu0 0.0
  %538 = vmatpush1.msra.mxu0 0.0
  %539 = vmatprep.subr.mxu0 0.0
  %540 = vmatpush1.msra.mxu0 0.0
  %541 = vmatprep.subr.mxu0 0.0
  %542 = vmatpush1.msra.mxu0 0.0
  %543 = vmatprep.subr.mxu0 0.0
  %544 = vmatpush1.msra.mxu0 0.0
  %545 = vmatprep.subr.mxu0 0.0
  %546 = vmatpush1.msra.mxu0 0.0
  %547 = vmatprep.subr.mxu0 0.0
  %548 = vmatpush1.msra.mxu0 0.0
  %549 = vmatprep.subr.mxu0 0.0
  %550 = vmatpush1.msra.mxu0 0.0
  %551 = vmatprep.subr.mxu0 0.0
  %552 = vmatpush1.msra.mxu0 0.0
  %553 = vmatprep.subr.mxu0 0.0
  %554 = vmatpush1.msra.mxu0 0.0
  %555 = vmatprep.subr.mxu0 0.0
  %556 = vmatpush1.msra.mxu0 0.0
  %557 = vmatprep.subr.mxu0 0.0
  %558 = vmatpush1.msra.mxu0 0.0
  %559 = vmatprep.subr.mxu0 0.0
  %560 = vmatpush1.msra.mxu0 0.0
  %561 = vmatprep.subr.mxu0 0.0
  %562 = vmatpush1.msra.mxu0 0.0
  %563 = vmatprep.subr.mxu0 0.0
  %564 = vmatpush1.msra.mxu0 0.0
  %565 = vmatprep.subr.mxu0 0.0
  %566 = vmatpush1.msra.mxu0 0.0
  %567 = vmatprep.subr.mxu0 0.0
  %568 = vmatpush1.msra.mxu0 0.0
  %569 = vmatprep.mubr.f32.mxu0 0.0
  %570 = vmatmul.mubr.f32.gmra.mrb[0].mxu0 %v130
  %v571 = vpop.f32.mrb[0].mxu0
  %v572 = vadd.f32 %v467, %v571
  %v573 = vpop.f32.mrb[0].mxu0
  %574 = vmatprep.mubr.f32.mxu0 0.0
  %575 = vmatmul.mubr.f32.gmra.mrb[0].mxu0 %v133
  %v576 = vpop.f32.mrb[0].mxu0
  %v577 = vadd.f32 %v472, %v576
  %v578 = vpop.f32.mrb[0].mxu0
  %579 = vmatprep.mubr.f32.mxu0 0.0
  %580 = vmatmul.mubr.f32.gmra.mrb[0].mxu0 %v136
  %v581 = vpop.f32.mrb[0].mxu0
  %v582 = vadd.f32 %v477, %v581
  %v583 = vpop.f32.mrb[0].mxu0
  %584 = vmatprep.mubr.f32.mxu0 0.0
  %585 = vmatmul.mubr.f32.gmra.mrb[0].mxu0 %v139
  %v586 = vpop.f32.mrb[0].mxu0
  %v587 = vadd.f32 %v482, %v586
  %v588 = vpop.f32.mrb[0].mxu0
  %589 = vmatprep.mubr.f32.mxu0 0.0
  %590 = vmatmul.mubr.f32.gmra.mrb[0].mxu0 %v142
  %v591 = vpop.f32.mrb[0].mxu0
  %v592 = vadd.f32 %v487, %v591
  %v593 = vpop.f32.mrb[0].mxu0
  %594 = vmatprep.mubr.f32.mxu0 0.0
  %595 = vmatmul.mubr.f32.gmra.mrb[0].mxu0 %v145
  %v596 = vpop.f32.mrb[0].mxu0
  %v597 = vadd.f32 %v492, %v596
  %v598 = vpop.f32.mrb[0].mxu0
  %599 = vmatprep.mubr.f32.mxu0 0.0
  %600 = vmatmul.mubr.f32.gmra.mrb[0].mxu0 %v148
  %v601 = vpop.f32.mrb[0].mxu0
  %v602 = vadd.f32 %v497, %v601
  %v603 = vpop.f32.mrb[0].mxu0
  %604 = vmatprep.mubr.f32.mxu0 0.0
  %605 = vmatmul.mubr.f32.gmra.mrb[0].mxu0 %v151
  %v606 = vpop.f32.mrb[0].mxu0
  %v607 = vadd.f32 %v502, %v606
  %v608 = vpop.f32.mrb[0].mxu0
  %609 = vdwg.mxu0
  %s610 = scalar_lea.vmem %s0, 576
  %v611 = vld [vmem:[%s610] sm:$0xff]
  %v612 = vld [vmem:[%s610 + $0x8] sm:$0xff]
  %v613 = vld [vmem:[%s610 + $0x10] sm:$0xff]
  %v614 = vld [vmem:[%s610 + $0x18] sm:$0xff]
  %v615 = vld [vmem:[%s610 + $0x20] sm:$0xff]
  %v616 = vld [vmem:[%s610 + $0x28] sm:$0xff]
  %v617 = vld [vmem:[%s610 + $0x30] sm:$0xff]
  %v618 = vld [vmem:[%s610 + $0x38] sm:$0xff]
  %v619 = vld [vmem:[%s610 + $0x40] sm:$0xff]
  %v620 = vld [vmem:[%s610 + $0x48] sm:$0xff]
  %v621 = vld [vmem:[%s610 + $0x50] sm:$0xff]
  %v622 = vld [vmem:[%s610 + $0x58] sm:$0xff]
  %v623 = vld [vmem:[%s610 + $0x60] sm:$0xff]
  %v624 = vld [vmem:[%s610 + $0x68] sm:$0xff]
  %v625 = vld [vmem:[%s610 + $0x70] sm:$0xff]
  %v626 = vld [vmem:[%s610 + $0x78] sm:$0xff]
  %v627 = vld [vmem:[%s610 + $0x80] sm:$0xff]
  %v628 = vld [vmem:[%s610 + $0x88] sm:$0xff]
  %v629 = vld [vmem:[%s610 + $0x90] sm:$0xff]
  %v630 = vld [vmem:[%s610 + $0x98] sm:$0xff]
  %v631 = vld [vmem:[%s610 + $0xa0] sm:$0xff]
  %v632 = vld [vmem:[%s610 + $0xa8] sm:$0xff]
  %v633 = vld [vmem:[%s610 + $0xb0] sm:$0xff]
  %v634 = vld [vmem:[%s610 + $0xb8] sm:$0xff]
  %v635 = vld [vmem:[%s610 + $0xc0] sm:$0xff]
  %v636 = vld [vmem:[%s610 + $0xc8] sm:$0xff]
  %v637 = vld [vmem:[%s610 + $0xd0] sm:$0xff]
  %v638 = vld [vmem:[%s610 + $0xd8] sm:$0xff]
  %v639 = vld [vmem:[%s610 + $0xe0] sm:$0xff]
  %v640 = vld [vmem:[%s610 + $0xe8] sm:$0xff]
  %v641 = vld [vmem:[%s610 + $0xf0] sm:$0xff]
  %v642 = vld [vmem:[%s610 + $0xf8] sm:$0xff]
  %v643 = vld [vmem:[%s610 + $0x100] sm:$0xff]
  %v644 = vld [vmem:[%s610 + $0x108] sm:$0xff]
  %v645 = vld [vmem:[%s610 + $0x110] sm:$0xff]
  %v646 = vld [vmem:[%s610 + $0x118] sm:$0xff]
  %647 = vmatprep.subr.mxu0 0.0
  %648 = vmatpush1.msra.mxu0 %v611
  %649 = vmatprep.subr.mxu0 0.0
  %650 = vmatpush1.msra.mxu0 %v612
  %651 = vmatprep.subr.mxu0 0.0
  %652 = vmatpush1.msra.mxu0 %v613
  %653 = vmatprep.subr.mxu0 0.0
  %654 = vmatpush1.msra.mxu0 %v614
  %655 = vmatprep.subr.mxu0 0.0
  %656 = vmatpush1.msra.mxu0 %v615
  %657 = vmatprep.subr.mxu0 0.0
  %658 = vmatpush1.msra.mxu0 %v616
  %659 = vmatprep.subr.mxu0 0.0
  %660 = vmatpush1.msra.mxu0 %v617
  %661 = vmatprep.subr.mxu0 0.0
  %662 = vmatpush1.msra.mxu0 %v618
  %663 = vmatprep.subr.mxu0 0.0
  %664 = vmatpush1.msra.mxu0 %v619
  %665 = vmatprep.subr.mxu0 0.0
  %666 = vmatpush1.msra.mxu0 %v620
  %667 = vmatprep.subr.mxu0 0.0
  %668 = vmatpush1.msra.mxu0 %v621
  %669 = vmatprep.subr.mxu0 0.0
  %670 = vmatpush1.msra.mxu0 %v622
  %671 = vmatprep.subr.mxu0 0.0
  %672 = vmatpush1.msra.mxu0 %v623
  %673 = vmatprep.subr.mxu0 0.0
  %674 = vmatpush1.msra.mxu0 %v624
  %675 = vmatprep.subr.mxu0 0.0
  %676 = vmatpush1.msra.mxu0 %v625
  %677 = vmatprep.subr.mxu0 0.0
  %678 = vmatpush1.msra.mxu0 %v626
  %679 = vmatprep.subr.mxu0 0.0
  %680 = vmatpush1.msra.mxu0 %v627
  %681 = vmatprep.subr.mxu0 0.0
  %682 = vmatpush1.msra.mxu0 %v628
  %683 = vmatprep.subr.mxu0 0.0
  %684 = vmatpush1.msra.mxu0 %v629
  %685 = vmatprep.subr.mxu0 0.0
  %686 = vmatpush1.msra.mxu0 %v630
  %687 = vmatprep.subr.mxu0 0.0
  %688 = vmatpush1.msra.mxu0 %v631
  %689 = vmatprep.subr.mxu0 0.0
  %690 = vmatpush1.msra.mxu0 %v632
  %691 = vmatprep.subr.mxu0 0.0
  %692 = vmatpush1.msra.mxu0 %v633
  %693 = vmatprep.subr.mxu0 0.0
  %694 = vmatpush1.msra.mxu0 %v634
  %695 = vmatprep.subr.mxu0 0.0
  %696 = vmatpush1.msra.mxu0 %v635
  %697 = vmatprep.subr.mxu0 0.0
  %698 = vmatpush1.msra.mxu0 %v636
  %699 = vmatprep.subr.mxu0 0.0
  %700 = vmatpush1.msra.mxu0 %v637
  %701 = vmatprep.subr.mxu0 0.0
  %702 = vmatpush1.msra.mxu0 %v638
  %703 = vmatprep.subr.mxu0 0.0
  %704 = vmatpush1.msra.mxu0 %v639
  %705 = vmatprep.subr.mxu0 0.0
  %706 = vmatpush1.msra.mxu0 %v640
  %707 = vmatprep.subr.mxu0 0.0
  %708 = vmatpush1.msra.mxu0 %v641
  %709 = vmatprep.subr.mxu0 0.0
  %710 = vmatpush1.msra.mxu0 %v642
  %711 = vmatprep.mubr.f32.mxu0 %v21
  %712 = vmatmul.mubr.f32.gmra.mrb[0].mxu0 %v20
  %v713 = vpop.f32.mrb[0].mxu0
  %v714 = vadd.f32 %v91, %v713
  %v715 = vpop.f32.mrb[0].mxu0
  %716 = vmatprep.mubr.f32.mxu0 %v24
  %717 = vmatmul.mubr.f32.gmra.mrb[0].mxu0 %v23
  %v718 = vpop.f32.mrb[0].mxu0
  %v719 = vadd.f32 %v96, %v718
  %v720 = vpop.f32.mrb[0].mxu0
  %721 = vmatprep.mubr.f32.mxu0 %v27
  %722 = vmatmul.mubr.f32.gmra.mrb[0].mxu0 %v26
  %v723 = vpop.f32.mrb[0].mxu0
  %v724 = vadd.f32 %v101, %v723
  %v725 = vpop.f32.mrb[0].mxu0
  %726 = vmatprep.mubr.f32.mxu0 %v30
  %727 = vmatmul.mubr.f32.gmra.mrb[0].mxu0 %v29
  %v728 = vpop.f32.mrb[0].mxu0
  %v729 = vadd.f32 %v106, %v728
  %v730 = vpop.f32.mrb[0].mxu0
  %731 = vmatprep.mubr.f32.mxu0 %v33
  %732 = vmatmul.mubr.f32.gmra.mrb[0].mxu0 %v32
  %v733 = vpop.f32.mrb[0].mxu0
  %v734 = vadd.f32 %v111, %v733
  %v735 = vpop.f32.mrb[0].mxu0
  %736 = vmatprep.mubr.f32.mxu0 %v36
  %737 = vmatmul.mubr.f32.gmra.mrb[0].mxu0 %v35
  %v738 = vpop.f32.mrb[0].mxu0
  %v739 = vadd.f32 %v116, %v738
  %v740 = vpop.f32.mrb[0].mxu0
  %741 = vmatprep.mubr.f32.mxu0 %v39
  %742 = vmatmul.mubr.f32.gmra.mrb[0].mxu0 %v38
  %v743 = vpop.f32.mrb[0].mxu0
  %v744 = vadd.f32 %v121, %v743
  %v745 = vpop.f32.mrb[0].mxu0
  %746 = vmatprep.mubr.f32.mxu0 %v42
  %747 = vmatmul.mubr.f32.gmra.mrb[0].mxu0 %v41
  %v748 = vpop.f32.mrb[0].mxu0
  %v749 = vadd.f32 %v126, %v748
  %v750 = vpop.f32.mrb[0].mxu0
  %751 = vdwg.mxu0
  %752 = vmatprep.subr.mxu0 0.0
  %753 = vmatpush1.msra.mxu0 %v643
  %754 = vmatprep.subr.mxu0 0.0
  %755 = vmatpush1.msra.mxu0 %v644
  %756 = vmatprep.subr.mxu0 0.0
  %757 = vmatpush1.msra.mxu0 %v645
  %758 = vmatprep.subr.mxu0 0.0
  %759 = vmatpush1.msra.mxu0 %v646
  %760 = vmatprep.subr.mxu0 0.0
  %761 = vmatpush1.msra.mxu0 0.0
  %762 = vmatprep.subr.mxu0 0.0
  %763 = vmatpush1.msra.mxu0 0.0
  %764 = vmatprep.subr.mxu0 0.0
  %765 = vmatpush1.msra.mxu0 0.0
  %766 = vmatprep.subr.mxu0 0.0
  %767 = vmatpush1.msra.mxu0 0.0
  %768 = vmatprep.subr.mxu0 0.0
  %769 = vmatpush1.msra.mxu0 0.0
  %770 = vmatprep.subr.mxu0 0.0
  %771 = vmatpush1.msra.mxu0 0.0
  %772 = vmatprep.subr.mxu0 0.0
  %773 = vmatpush1.msra.mxu0 0.0
  %774 = vmatprep.subr.mxu0 0.0
  %775 = vmatpush1.msra.mxu0 0.0
  %776 = vmatprep.subr.mxu0 0.0
  %777 = vmatpush1.msra.mxu0 0.0
  %778 = vmatprep.subr.mxu0 0.0
  %779 = vmatpush1.msra.mxu0 0.0
  %780 = vmatprep.subr.mxu0 0.0
  %781 = vmatpush1.msra.mxu0 0.0
  %782 = vmatprep.subr.mxu0 0.0
  %783 = vmatpush1.msra.mxu0 0.0
  %784 = vmatprep.subr.mxu0 0.0
  %785 = vmatpush1.msra.mxu0 0.0
  %786 = vmatprep.subr.mxu0 0.0
  %787 = vmatpush1.msra.mxu0 0.0
  %788 = vmatprep.subr.mxu0 0.0
  %789 = vmatpush1.msra.mxu0 0.0
  %790 = vmatprep.subr.mxu0 0.0
  %791 = vmatpush1.msra.mxu0 0.0
  %792 = vmatprep.subr.mxu0 0.0
  %793 = vmatpush1.msra.mxu0 0.0
  %794 = vmatprep.subr.mxu0 0.0
  %795 = vmatpush1.msra.mxu0 0.0
  %796 = vmatprep.subr.mxu0 0.0
  %797 = vmatpush1.msra.mxu0 0.0
  %798 = vmatprep.subr.mxu0 0.0
  %799 = vmatpush1.msra.mxu0 0.0
  %800 = vmatprep.subr.mxu0 0.0
  %801 = vmatpush1.msra.mxu0 0.0
  %802 = vmatprep.subr.mxu0 0.0
  %803 = vmatpush1.msra.mxu0 0.0
  %804 = vmatprep.subr.mxu0 0.0
  %805 = vmatpush1.msra.mxu0 0.0
  %806 = vmatprep.subr.mxu0 0.0
  %807 = vmatpush1.msra.mxu0 0.0
  %808 = vmatprep.subr.mxu0 0.0
  %809 = vmatpush1.msra.mxu0 0.0
  %810 = vmatprep.subr.mxu0 0.0
  %811 = vmatpush1.msra.mxu0 0.0
  %812 = vmatprep.subr.mxu0 0.0
  %813 = vmatpush1.msra.mxu0 0.0
  %814 = vmatprep.subr.mxu0 0.0
  %815 = vmatpush1.msra.mxu0 0.0
  %816 = vmatprep.mubr.f32.mxu0 0.0
  %817 = vmatmul.mubr.f32.gmra.mrb[0].mxu0 %v130
  %v818 = vpop.f32.mrb[0].mxu0
  %v819 = vadd.f32 %v714, %v818
  %v820 = vpop.f32.mrb[0].mxu0
  %821 = vmatprep.mubr.f32.mxu0 0.0
  %822 = vmatmul.mubr.f32.gmra.mrb[0].mxu0 %v133
  %v823 = vpop.f32.mrb[0].mxu0
  %v824 = vadd.f32 %v719, %v823
  %v825 = vpop.f32.mrb[0].mxu0
  %826 = vmatprep.mubr.f32.mxu0 0.0
  %827 = vmatmul.mubr.f32.gmra.mrb[0].mxu0 %v136
  %v828 = vpop.f32.mrb[0].mxu0
  %v829 = vadd.f32 %v724, %v828
  %v830 = vpop.f32.mrb[0].mxu0
  %831 = vmatprep.mubr.f32.mxu0 0.0
  %832 = vmatmul.mubr.f32.gmra.mrb[0].mxu0 %v139
  %v833 = vpop.f32.mrb[0].mxu0
  %v834 = vadd.f32 %v729, %v833
  %v835 = vpop.f32.mrb[0].mxu0
  %836 = vmatprep.mubr.f32.mxu0 0.0
  %837 = vmatmul.mubr.f32.gmra.mrb[0].mxu0 %v142
  %v838 = vpop.f32.mrb[0].mxu0
  %v839 = vadd.f32 %v734, %v838
  %v840 = vpop.f32.mrb[0].mxu0
  %841 = vmatprep.mubr.f32.mxu0 0.0
  %842 = vmatmul.mubr.f32.gmra.mrb[0].mxu0 %v145
  %v843 = vpop.f32.mrb[0].mxu0
  %v844 = vadd.f32 %v739, %v843
  %v845 = vpop.f32.mrb[0].mxu0
  %846 = vmatprep.mubr.f32.mxu0 0.0
  %847 = vmatmul.mubr.f32.gmra.mrb[0].mxu0 %v148
  %v848 = vpop.f32.mrb[0].mxu0
  %v849 = vadd.f32 %v744, %v848
  %v850 = vpop.f32.mrb[0].mxu0
  %851 = vmatprep.mubr.f32.mxu0 0.0
  %852 = vmatmul.mubr.f32.gmra.mrb[0].mxu0 %v151
  %v853 = vpop.f32.mrb[0].mxu0
  %v854 = vadd.f32 %v749, %v853
  %v855 = vpop.f32.mrb[0].mxu0
  %856 = vdwg.mxu0
  %s857 = scalar_lea.vmem %s0, 864
  %v858 = vld [vmem:[%s857] sm:$0xff]
  %v859 = vld [vmem:[%s857 + $0x8] sm:$0xff]
  %v860 = vld [vmem:[%s857 + $0x10] sm:$0xff]
  %v861 = vld [vmem:[%s857 + $0x18] sm:$0xff]
  %v862 = vld [vmem:[%s857 + $0x20] sm:$0xff]
  %v863 = vld [vmem:[%s857 + $0x28] sm:$0xff]
  %v864 = vld [vmem:[%s857 + $0x30] sm:$0xff]
  %v865 = vld [vmem:[%s857 + $0x38] sm:$0xff]
  %v866 = vld [vmem:[%s857 + $0x40] sm:$0xff]
  %v867 = vld [vmem:[%s857 + $0x48] sm:$0xff]
  %v868 = vld [vmem:[%s857 + $0x50] sm:$0xff]
  %v869 = vld [vmem:[%s857 + $0x58] sm:$0xff]
  %v870 = vld [vmem:[%s857 + $0x60] sm:$0xff]
  %v871 = vld [vmem:[%s857 + $0x68] sm:$0xff]
  %v872 = vld [vmem:[%s857 + $0x70] sm:$0xff]
  %v873 = vld [vmem:[%s857 + $0x78] sm:$0xff]
  %v874 = vld [vmem:[%s857 + $0x80] sm:$0xff]
  %v875 = vld [vmem:[%s857 + $0x88] sm:$0xff]
  %v876 = vld [vmem:[%s857 + $0x90] sm:$0xff]
  %v877 = vld [vmem:[%s857 + $0x98] sm:$0xff]
  %v878 = vld [vmem:[%s857 + $0xa0] sm:$0xff]
  %v879 = vld [vmem:[%s857 + $0xa8] sm:$0xff]
  %v880 = vld [vmem:[%s857 + $0xb0] sm:$0xff]
  %v881 = vld [vmem:[%s857 + $0xb8] sm:$0xff]
  %v882 = vld [vmem:[%s857 + $0xc0] sm:$0xff]
  %v883 = vld [vmem:[%s857 + $0xc8] sm:$0xff]
  %v884 = vld [vmem:[%s857 + $0xd0] sm:$0xff]
  %v885 = vld [vmem:[%s857 + $0xd8] sm:$0xff]
  %v886 = vld [vmem:[%s857 + $0xe0] sm:$0xff]
  %v887 = vld [vmem:[%s857 + $0xe8] sm:$0xff]
  %v888 = vld [vmem:[%s857 + $0xf0] sm:$0xff]
  %v889 = vld [vmem:[%s857 + $0xf8] sm:$0xff]
  %v890 = vld [vmem:[%s857 + $0x100] sm:$0xff]
  %v891 = vld [vmem:[%s857 + $0x108] sm:$0xff]
  %v892 = vld [vmem:[%s857 + $0x110] sm:$0xff]
  %v893 = vld [vmem:[%s857 + $0x118] sm:$0xff]
  %894 = vmatprep.subr.mxu0 0.0
  %895 = vmatpush1.msra.mxu0 %v858
  %896 = vmatprep.subr.mxu0 0.0
  %897 = vmatpush1.msra.mxu0 %v859
  %898 = vmatprep.subr.mxu0 0.0
  %899 = vmatpush1.msra.mxu0 %v860
  %900 = vmatprep.subr.mxu0 0.0
  %901 = vmatpush1.msra.mxu0 %v861
  %902 = vmatprep.subr.mxu0 0.0
  %903 = vmatpush1.msra.mxu0 %v862
  %904 = vmatprep.subr.mxu0 0.0
  %905 = vmatpush1.msra.mxu0 %v863
  %906 = vmatprep.subr.mxu0 0.0
  %907 = vmatpush1.msra.mxu0 %v864
  %908 = vmatprep.subr.mxu0 0.0
  %909 = vmatpush1.msra.mxu0 %v865
  %910 = vmatprep.subr.mxu0 0.0
  %911 = vmatpush1.msra.mxu0 %v866
  %912 = vmatprep.subr.mxu0 0.0
  %913 = vmatpush1.msra.mxu0 %v867
  %914 = vmatprep.subr.mxu0 0.0
  %915 = vmatpush1.msra.mxu0 %v868
  %916 = vmatprep.subr.mxu0 0.0
  %917 = vmatpush1.msra.mxu0 %v869
  %918 = vmatprep.subr.mxu0 0.0
  %919 = vmatpush1.msra.mxu0 %v870
  %920 = vmatprep.subr.mxu0 0.0
  %921 = vmatpush1.msra.mxu0 %v871
  %922 = vmatprep.subr.mxu0 0.0
  %923 = vmatpush1.msra.mxu0 %v872
  %924 = vmatprep.subr.mxu0 0.0
  %925 = vmatpush1.msra.mxu0 %v873
  %926 = vmatprep.subr.mxu0 0.0
  %927 = vmatpush1.msra.mxu0 %v874
  %928 = vmatprep.subr.mxu0 0.0
  %929 = vmatpush1.msra.mxu0 %v875
  %930 = vmatprep.subr.mxu0 0.0
  %931 = vmatpush1.msra.mxu0 %v876
  %932 = vmatprep.subr.mxu0 0.0
  %933 = vmatpush1.msra.mxu0 %v877
  %934 = vmatprep.subr.mxu0 0.0
  %935 = vmatpush1.msra.mxu0 %v878
  %936 = vmatprep.subr.mxu0 0.0
  %937 = vmatpush1.msra.mxu0 %v879
  %938 = vmatprep.subr.mxu0 0.0
  %939 = vmatpush1.msra.mxu0 %v880
  %940 = vmatprep.subr.mxu0 0.0
  %941 = vmatpush1.msra.mxu0 %v881
  %942 = vmatprep.subr.mxu0 0.0
  %943 = vmatpush1.msra.mxu0 %v882
  %944 = vmatprep.subr.mxu0 0.0
  %945 = vmatpush1.msra.mxu0 %v883
  %946 = vmatprep.subr.mxu0 0.0
  %947 = vmatpush1.msra.mxu0 %v884
  %948 = vmatprep.subr.mxu0 0.0
  %949 = vmatpush1.msra.mxu0 %v885
  %950 = vmatprep.subr.mxu0 0.0
  %951 = vmatpush1.msra.mxu0 %v886
  %952 = vmatprep.subr.mxu0 0.0
  %953 = vmatpush1.msra.mxu0 %v887
  %954 = vmatprep.subr.mxu0 0.0
  %955 = vmatpush1.msra.mxu0 %v888
  %956 = vmatprep.subr.mxu0 0.0
  %957 = vmatpush1.msra.mxu0 %v889
  %958 = vmatprep.mubr.f32.mxu0 %v21
  %959 = vmatmul.mubr.f32.gmra.mrb[0].mxu0 %v20
  %v960 = vpop.f32.mrb[0].mxu0
  %v961 = vadd.f32 %v91, %v960
  %v962 = vpop.f32.mrb[0].mxu0
  %963 = vmatprep.mubr.f32.mxu0 %v24
  %964 = vmatmul.mubr.f32.gmra.mrb[0].mxu0 %v23
  %v965 = vpop.f32.mrb[0].mxu0
  %v966 = vadd.f32 %v96, %v965
  %v967 = vpop.f32.mrb[0].mxu0
  %968 = vmatprep.mubr.f32.mxu0 %v27
  %969 = vmatmul.mubr.f32.gmra.mrb[0].mxu0 %v26
  %v970 = vpop.f32.mrb[0].mxu0
  %v971 = vadd.f32 %v101, %v970
  %v972 = vpop.f32.mrb[0].mxu0
  %973 = vmatprep.mubr.f32.mxu0 %v30
  %974 = vmatmul.mubr.f32.gmra.mrb[0].mxu0 %v29
  %v975 = vpop.f32.mrb[0].mxu0
  %v976 = vadd.f32 %v106, %v975
  %v977 = vpop.f32.mrb[0].mxu0
  %978 = vmatprep.mubr.f32.mxu0 %v33
  %979 = vmatmul.mubr.f32.gmra.mrb[0].mxu0 %v32
  %v980 = vpop.f32.mrb[0].mxu0
  %v981 = vadd.f32 %v111, %v980
  %v982 = vpop.f32.mrb[0].mxu0
  %983 = vmatprep.mubr.f32.mxu0 %v36
  %984 = vmatmul.mubr.f32.gmra.mrb[0].mxu0 %v35
  %v985 = vpop.f32.mrb[0].mxu0
  %v986 = vadd.f32 %v116, %v985
  %v987 = vpop.f32.mrb[0].mxu0
  %988 = vmatprep.mubr.f32.mxu0 %v39
  %989 = vmatmul.mubr.f32.gmra.mrb[0].mxu0 %v38
  %v990 = vpop.f32.mrb[0].mxu0
  %v991 = vadd.f32 %v121, %v990
  %v992 = vpop.f32.mrb[0].mxu0
  %993 = vmatprep.mubr.f32.mxu0 %v42
  %994 = vmatmul.mubr.f32.gmra.mrb[0].mxu0 %v41
  %v995 = vpop.f32.mrb[0].mxu0
  %v996 = vadd.f32 %v126, %v995
  %v997 = vpop.f32.mrb[0].mxu0
  %998 = vdwg.mxu0
  %999 = vmatprep.subr.mxu0 0.0
  %1000 = vmatpush1.msra.mxu0 %v890
  %1001 = vmatprep.subr.mxu0 0.0
  %1002 = vmatpush1.msra.mxu0 %v891
  %1003 = vmatprep.subr.mxu0 0.0
  %1004 = vmatpush1.msra.mxu0 %v892
  %1005 = vmatprep.subr.mxu0 0.0
  %1006 = vmatpush1.msra.mxu0 %v893
  %1007 = vmatprep.subr.mxu0 0.0
  %1008 = vmatpush1.msra.mxu0 0.0
  %1009 = vmatprep.subr.mxu0 0.0
  %1010 = vmatpush1.msra.mxu0 0.0
  %1011 = vmatprep.subr.mxu0 0.0
  %1012 = vmatpush1.msra.mxu0 0.0
  %1013 = vmatprep.subr.mxu0 0.0
  %1014 = vmatpush1.msra.mxu0 0.0
  %1015 = vmatprep.subr.mxu0 0.0
  %1016 = vmatpush1.msra.mxu0 0.0
  %1017 = vmatprep.subr.mxu0 0.0
  %1018 = vmatpush1.msra.mxu0 0.0
  %1019 = vmatprep.subr.mxu0 0.0
  %1020 = vmatpush1.msra.mxu0 0.0
  %1021 = vmatprep.subr.mxu0 0.0
  %1022 = vmatpush1.msra.mxu0 0.0
  %1023 = vmatprep.subr.mxu0 0.0
  %1024 = vmatpush1.msra.mxu0 0.0
  %1025 = vmatprep.subr.mxu0 0.0
  %1026 = vmatpush1.msra.mxu0 0.0
  %1027 = vmatprep.subr.mxu0 0.0
  %1028 = vmatpush1.msra.mxu0 0.0
  %1029 = vmatprep.subr.mxu0 0.0
  %1030 = vmatpush1.msra.mxu0 0.0
  %1031 = vmatprep.subr.mxu0 0.0
  %1032 = vmatpush1.msra.mxu0 0.0
  %1033 = vmatprep.subr.mxu0 0.0
  %1034 = vmatpush1.msra.mxu0 0.0
  %1035 = vmatprep.subr.mxu0 0.0
  %1036 = vmatpush1.msra.mxu0 0.0
  %1037 = vmatprep.subr.mxu0 0.0
  %1038 = vmatpush1.msra.mxu0 0.0
  %1039 = vmatprep.subr.mxu0 0.0
  %1040 = vmatpush1.msra.mxu0 0.0
  %1041 = vmatprep.subr.mxu0 0.0
  %1042 = vmatpush1.msra.mxu0 0.0
  %1043 = vmatprep.subr.mxu0 0.0
  %1044 = vmatpush1.msra.mxu0 0.0
  %1045 = vmatprep.subr.mxu0 0.0
  %1046 = vmatpush1.msra.mxu0 0.0
  %1047 = vmatprep.subr.mxu0 0.0
  %1048 = vmatpush1.msra.mxu0 0.0
  %1049 = vmatprep.subr.mxu0 0.0
  %1050 = vmatpush1.msra.mxu0 0.0
  %1051 = vmatprep.subr.mxu0 0.0
  %1052 = vmatpush1.msra.mxu0 0.0
  %1053 = vmatprep.subr.mxu0 0.0
  %1054 = vmatpush1.msra.mxu0 0.0
  %1055 = vmatprep.subr.mxu0 0.0
  %1056 = vmatpush1.msra.mxu0 0.0
  %1057 = vmatprep.subr.mxu0 0.0
  %1058 = vmatpush1.msra.mxu0 0.0
  %1059 = vmatprep.subr.mxu0 0.0
  %1060 = vmatpush1.msra.mxu0 0.0
  %1061 = vmatprep.subr.mxu0 0.0
  %1062 = vmatpush1.msra.mxu0 0.0
  %1063 = vmatprep.mubr.f32.mxu0 0.0
  %1064 = vmatmul.mubr.f32.gmra.mrb[0].mxu0 %v130
  %v1065 = vpop.f32.mrb[0].mxu0
  %v1066 = vadd.f32 %v961, %v1065
  %v1067 = vpop.f32.mrb[0].mxu0
  %1068 = vmatprep.mubr.f32.mxu0 0.0
  %1069 = vmatmul.mubr.f32.gmra.mrb[0].mxu0 %v133
  %v1070 = vpop.f32.mrb[0].mxu0
  %v1071 = vadd.f32 %v966, %v1070
  %v1072 = vpop.f32.mrb[0].mxu0
  %1073 = vmatprep.mubr.f32.mxu0 0.0
  %1074 = vmatmul.mubr.f32.gmra.mrb[0].mxu0 %v136
  %v1075 = vpop.f32.mrb[0].mxu0
  %v1076 = vadd.f32 %v971, %v1075
  %v1077 = vpop.f32.mrb[0].mxu0
  %1078 = vmatprep.mubr.f32.mxu0 0.0
  %1079 = vmatmul.mubr.f32.gmra.mrb[0].mxu0 %v139
  %v1080 = vpop.f32.mrb[0].mxu0
  %v1081 = vadd.f32 %v976, %v1080
  %v1082 = vpop.f32.mrb[0].mxu0
  %1083 = vmatprep.mubr.f32.mxu0 0.0
  %1084 = vmatmul.mubr.f32.gmra.mrb[0].mxu0 %v142
  %v1085 = vpop.f32.mrb[0].mxu0
  %v1086 = vadd.f32 %v981, %v1085
  %v1087 = vpop.f32.mrb[0].mxu0
  %1088 = vmatprep.mubr.f32.mxu0 0.0
  %1089 = vmatmul.mubr.f32.gmra.mrb[0].mxu0 %v145
  %v1090 = vpop.f32.mrb[0].mxu0
  %v1091 = vadd.f32 %v986, %v1090
  %v1092 = vpop.f32.mrb[0].mxu0
  %1093 = vmatprep.mubr.f32.mxu0 0.0
  %1094 = vmatmul.mubr.f32.gmra.mrb[0].mxu0 %v148
  %v1095 = vpop.f32.mrb[0].mxu0
  %v1096 = vadd.f32 %v991, %v1095
  %v1097 = vpop.f32.mrb[0].mxu0
  %1098 = vmatprep.mubr.f32.mxu0 0.0
  %1099 = vmatmul.mubr.f32.gmra.mrb[0].mxu0 %v151
  %v1100 = vpop.f32.mrb[0].mxu0
  %v1101 = vadd.f32 %v996, %v1100
  %v1102 = vpop.f32.mrb[0].mxu0
  %1103 = vdwg.mxu0
  %v1104 = vadd.f32 %v325, %v572
  %v1105 = vadd.f32 %v330, %v577
  %v1106 = vadd.f32 %v335, %v582
  %v1107 = vadd.f32 %v340, %v587
  %v1108 = vadd.f32 %v345, %v592
  %v1109 = vadd.f32 %v350, %v597
  %v1110 = vadd.f32 %v355, %v602
  %v1111 = vadd.f32 %v360, %v607
  %v1112 = vadd.f32 %v819, %v1066
  %v1113 = vadd.f32 %v824, %v1071
  %v1114 = vadd.f32 %v829, %v1076
  %v1115 = vadd.f32 %v834, %v1081
  %v1116 = vadd.f32 %v839, %v1086
  %v1117 = vadd.f32 %v844, %v1091
  %v1118 = vadd.f32 %v849, %v1096
  %v1119 = vadd.f32 %v854, %v1101
  %v1120 = vadd.f32 %v1104, %v1112
  %v1121 = vadd.f32 %v1105, %v1113
  %v1122 = vadd.f32 %v1106, %v1114
  %v1123 = vadd.f32 %v1107, %v1115
  %v1124 = vadd.f32 %v1108, %v1116
  %v1125 = vadd.f32 %v1109, %v1117
  %v1126 = vadd.f32 %v1110, %v1118
  %v1127 = vadd.f32 %v1111, %v1119
  %v1128 = vmul.f32 %v325, %v325
  %v1129 = vmul.f32 %v330, %v330
  %v1130 = vmul.f32 %v335, %v335
  %v1131 = vmul.f32 %v340, %v340
  %v1132 = vmul.f32 %v345, %v345
  %v1133 = vmul.f32 %v350, %v350
  %v1134 = vmul.f32 %v355, %v355
  %v1135 = vmul.f32 %v360, %v360
  %v1136 = vmul.f32 %v572, %v572
  %v1137 = vmul.f32 %v577, %v577
  %v1138 = vmul.f32 %v582, %v582
  %v1139 = vmul.f32 %v587, %v587
  %v1140 = vmul.f32 %v592, %v592
  %v1141 = vmul.f32 %v597, %v597
  %v1142 = vmul.f32 %v602, %v602
  %v1143 = vmul.f32 %v607, %v607
  %v1144 = vadd.f32 %v1128, %v1136
  %v1145 = vadd.f32 %v1129, %v1137
  %v1146 = vadd.f32 %v1130, %v1138
  %v1147 = vadd.f32 %v1131, %v1139
  %v1148 = vadd.f32 %v1132, %v1140
  %v1149 = vadd.f32 %v1133, %v1141
  %v1150 = vadd.f32 %v1134, %v1142
  %v1151 = vadd.f32 %v1135, %v1143
  %v1152 = vmul.f32 %v819, %v819
  %v1153 = vmul.f32 %v824, %v824
  %v1154 = vmul.f32 %v829, %v829
  %v1155 = vmul.f32 %v834, %v834
  %v1156 = vmul.f32 %v839, %v839
  %v1157 = vmul.f32 %v844, %v844
  %v1158 = vmul.f32 %v849, %v849
  %v1159 = vmul.f32 %v854, %v854
  %v1160 = vmul.f32 %v1066, %v1066
  %v1161 = vmul.f32 %v1071, %v1071
  %v1162 = vmul.f32 %v1076, %v1076
  %v1163 = vmul.f32 %v1081, %v1081
  %v1164 = vmul.f32 %v1086, %v1086
  %v1165 = vmul.f32 %v1091, %v1091
  %v1166 = vmul.f32 %v1096, %v1096
  %v1167 = vmul.f32 %v1101, %v1101
  %v1168 = vadd.f32 %v1152, %v1160
  %v1169 = vadd.f32 %v1153, %v1161
  %v1170 = vadd.f32 %v1154, %v1162
  %v1171 = vadd.f32 %v1155, %v1163
  %v1172 = vadd.f32 %v1156, %v1164
  %v1173 = vadd.f32 %v1157, %v1165
  %v1174 = vadd.f32 %v1158, %v1166
  %v1175 = vadd.f32 %v1159, %v1167
  %v1176 = vadd.f32 %v1144, %v1168
  %v1177 = vadd.f32 %v1145, %v1169
  %v1178 = vadd.f32 %v1146, %v1170
  %v1179 = vadd.f32 %v1147, %v1171
  %v1180 = vadd.f32 %v1148, %v1172
  %v1181 = vadd.f32 %v1149, %v1173
  %v1182 = vadd.f32 %v1150, %v1174
  %v1183 = vadd.f32 %v1151, %v1175
  %v1184 = vsel %vm128, %v1120, 0.0
  %1185 = vadd.xlane.f32.xlu0 %v1184
  %v1186 = vpop.xlane.xlu0 %1185
  %v1187 = vsel %vm128, %v1121, 0.0
  %1188 = vadd.xlane.f32.xlu0 %v1187
  %v1189 = vpop.xlane.xlu0 %1188
  %v1190 = vsel %vm128, %v1122, 0.0
  %1191 = vadd.xlane.f32.xlu0 %v1190
  %v1192 = vpop.xlane.xlu0 %1191
  %v1193 = vsel %vm128, %v1123, 0.0
  %1194 = vadd.xlane.f32.xlu0 %v1193
  %v1195 = vpop.xlane.xlu0 %1194
  %v1196 = vsel %vm128, %v1124, 0.0
  %1197 = vadd.xlane.f32.xlu0 %v1196
  %v1198 = vpop.xlane.xlu0 %1197
  %v1199 = vsel %vm128, %v1125, 0.0
  %1200 = vadd.xlane.f32.xlu0 %v1199
  %v1201 = vpop.xlane.xlu0 %1200
  %v1202 = vsel %vm128, %v1126, 0.0
  %1203 = vadd.xlane.f32.xlu0 %v1202
  %v1204 = vpop.xlane.xlu0 %1203
  %v1205 = vsel %vm128, %v1127, 0.0
  %1206 = vadd.xlane.f32.xlu0 %v1205
  %v1207 = vpop.xlane.xlu0 %1206
  %v1208 = vmul.f32 %v1186, 0.0078125
  %v1209 = vmul.f32 %v1189, 0.0078125
  %v1210 = vmul.f32 %v1192, 0.0078125
  %v1211 = vmul.f32 %v1195, 0.0078125
  %v1212 = vmul.f32 %v1198, 0.0078125
  %v1213 = vmul.f32 %v1201, 0.0078125
  %v1214 = vmul.f32 %v1204, 0.0078125
  %v1215 = vmul.f32 %v1207, 0.0078125
  %v1216 = vsel %vm128, %v1176, 0.0
  %1217 = vadd.xlane.f32.xlu0 %v1216
  %v1218 = vpop.xlane.xlu0 %1217
  %v1219 = vsel %vm128, %v1177, 0.0
  %1220 = vadd.xlane.f32.xlu0 %v1219
  %v1221 = vpop.xlane.xlu0 %1220
  %v1222 = vsel %vm128, %v1178, 0.0
  %1223 = vadd.xlane.f32.xlu0 %v1222
  %v1224 = vpop.xlane.xlu0 %1223
  %v1225 = vsel %vm128, %v1179, 0.0
  %1226 = vadd.xlane.f32.xlu0 %v1225
  %v1227 = vpop.xlane.xlu0 %1226
  %v1228 = vsel %vm128, %v1180, 0.0
  %1229 = vadd.xlane.f32.xlu0 %v1228
  %v1230 = vpop.xlane.xlu0 %1229
  %v1231 = vsel %vm128, %v1181, 0.0
  %1232 = vadd.xlane.f32.xlu0 %v1231
  %v1233 = vpop.xlane.xlu0 %1232
  %v1234 = vsel %vm128, %v1182, 0.0
  %1235 = vadd.xlane.f32.xlu0 %v1234
  %v1236 = vpop.xlane.xlu0 %1235
  %v1237 = vsel %vm128, %v1183, 0.0
  %1238 = vadd.xlane.f32.xlu0 %v1237
  %v1239 = vpop.xlane.xlu0 %1238
  %v1240 = vmul.f32 %v1218, 0.0078125
  %v1241 = vmul.f32 %v1221, 0.0078125
  %v1242 = vmul.f32 %v1224, 0.0078125
  %v1243 = vmul.f32 %v1227, 0.0078125
  %v1244 = vmul.f32 %v1230, 0.0078125
  %v1245 = vmul.f32 %v1233, 0.0078125
  %v1246 = vmul.f32 %v1236, 0.0078125
  %v1247 = vmul.f32 %v1239, 0.0078125
  %v1248 = vmul.f32 %v1208, %v1208
  %v1249 = vmul.f32 %v1209, %v1209
  %v1250 = vmul.f32 %v1210, %v1210
  %v1251 = vmul.f32 %v1211, %v1211
  %v1252 = vmul.f32 %v1212, %v1212
  %v1253 = vmul.f32 %v1213, %v1213
  %v1254 = vmul.f32 %v1214, %v1214
  %v1255 = vmul.f32 %v1215, %v1215
  %v1256 = vsub.f32 %v1240, %v1248
  %v1257 = vsub.f32 %v1241, %v1249
  %v1258 = vsub.f32 %v1242, %v1250
  %v1259 = vsub.f32 %v1243, %v1251
  %v1260 = vsub.f32 %v1244, %v1252
  %v1261 = vsub.f32 %v1245, %v1253
  %v1262 = vsub.f32 %v1246, %v1254
  %v1263 = vsub.f32 %v1247, %v1255
  %v1264 = vmax.f32 %v1256, 0.0
  %v1265 = vmax.f32 %v1257, 0.0
  %v1266 = vmax.f32 %v1258, 0.0
  %v1267 = vmax.f32 %v1259, 0.0
  %v1268 = vmax.f32 %v1260, 0.0
  %v1269 = vmax.f32 %v1261, 0.0
  %v1270 = vmax.f32 %v1262, 0.0
  %v1271 = vmax.f32 %v1263, 0.0
  %v1272 = vld [vmem:[%s3] sm:$0xff]
  %v1273 = vld [vmem:[%s3 + $0x8] sm:$0xff]
  %v1274 = vld [vmem:[%s3 + $0x10] sm:$0xff]
  %v1275 = vld [vmem:[%s3 + $0x18] sm:$0xff]
  %v1276 = vld [vmem:[%s3 + $0x20] sm:$0xff]
  %v1277 = vld [vmem:[%s3 + $0x28] sm:$0xff]
  %v1278 = vld [vmem:[%s3 + $0x30] sm:$0xff]
  %v1279 = vld [vmem:[%s3 + $0x38] sm:$0xff]
  %v1280 = vadd.f32 %v1264, 1e-05
  %v1281 = vadd.f32 %v1265, 1e-05
  %v1282 = vadd.f32 %v1266, 1e-05
  %v1283 = vadd.f32 %v1267, 1e-05
  %v1284 = vadd.f32 %v1268, 1e-05
  %v1285 = vadd.f32 %v1269, 1e-05
  %v1286 = vadd.f32 %v1270, 1e-05
  %v1287 = vadd.f32 %v1271, 1e-05
  %v1288 = vrsqrt.pop %v1280
  %v1289 = vrsqrt.pop %v1281
  %v1290 = vrsqrt.pop %v1282
  %v1291 = vrsqrt.pop %v1283
  %v1292 = vrsqrt.pop %v1284
  %v1293 = vrsqrt.pop %v1285
  %v1294 = vrsqrt.pop %v1286
  %v1295 = vrsqrt.pop %v1287
  %v1296 = vmul.f32 %v1272, %v1288
  %v1297 = vmul.f32 %v1273, %v1289
  %v1298 = vmul.f32 %v1274, %v1290
  %v1299 = vmul.f32 %v1275, %v1291
  %v1300 = vmul.f32 %v1276, %v1292
  %v1301 = vmul.f32 %v1277, %v1293
  %v1302 = vmul.f32 %v1278, %v1294
  %v1303 = vmul.f32 %v1279, %v1295
  %v1304 = vld [vmem:[%s4] sm:$0xff]
  %v1305 = vld [vmem:[%s4 + $0x8] sm:$0xff]
  %v1306 = vld [vmem:[%s4 + $0x10] sm:$0xff]
  %v1307 = vld [vmem:[%s4 + $0x18] sm:$0xff]
  %v1308 = vld [vmem:[%s4 + $0x20] sm:$0xff]
  %v1309 = vld [vmem:[%s4 + $0x28] sm:$0xff]
  %v1310 = vld [vmem:[%s4 + $0x30] sm:$0xff]
  %v1311 = vld [vmem:[%s4 + $0x38] sm:$0xff]
  %v1312 = vmul.f32 %v1208, %v1296
  %v1313 = vmul.f32 %v1209, %v1297
  %v1314 = vmul.f32 %v1210, %v1298
  %v1315 = vmul.f32 %v1211, %v1299
  %v1316 = vmul.f32 %v1212, %v1300
  %v1317 = vmul.f32 %v1213, %v1301
  %v1318 = vmul.f32 %v1214, %v1302
  %v1319 = vmul.f32 %v1215, %v1303
  %v1320 = vsub.f32 %v1304, %v1312
  %v1321 = vsub.f32 %v1305, %v1313
  %v1322 = vsub.f32 %v1306, %v1314
  %v1323 = vsub.f32 %v1307, %v1315
  %v1324 = vsub.f32 %v1308, %v1316
  %v1325 = vsub.f32 %v1309, %v1317
  %v1326 = vsub.f32 %v1310, %v1318
  %v1327 = vsub.f32 %v1311, %v1319
  %1329 = vset.pattern.permute.xlu0 0
  %1330 = vperm.xlu0 %1329, %v1296
  %v1331 = vpop.permute.xlu0 %1330
  %1334 = vset.pattern.permute.xlu0 0
  %1335 = vperm.xlu0 %1334, %v1297
  %v1336 = vpop.permute.xlu0 %1335
  %1339 = vset.pattern.permute.xlu0 0
  %1340 = vperm.xlu0 %1339, %v1298
  %v1341 = vpop.permute.xlu0 %1340
  %1344 = vset.pattern.permute.xlu0 0
  %1345 = vperm.xlu0 %1344, %v1299
  %v1346 = vpop.permute.xlu0 %1345
  %1349 = vset.pattern.permute.xlu0 0
  %1350 = vperm.xlu0 %1349, %v1300
  %v1351 = vpop.permute.xlu0 %1350
  %1354 = vset.pattern.permute.xlu0 0
  %1355 = vperm.xlu0 %1354, %v1301
  %v1356 = vpop.permute.xlu0 %1355
  %1359 = vset.pattern.permute.xlu0 0
  %1360 = vperm.xlu0 %1359, %v1302
  %v1361 = vpop.permute.xlu0 %1360
  %1364 = vset.pattern.permute.xlu0 0
  %1365 = vperm.xlu0 %1364, %v1303
  %v1366 = vpop.permute.xlu0 %1365
  %v1368 = vmul.f32 %v325, %v1331
  %v1369 = vmul.f32 %v330, %v1336
  %v1370 = vmul.f32 %v335, %v1341
  %v1371 = vmul.f32 %v340, %v1346
  %v1372 = vmul.f32 %v345, %v1351
  %v1373 = vmul.f32 %v350, %v1356
  %v1374 = vmul.f32 %v355, %v1361
  %v1375 = vmul.f32 %v360, %v1366
  %1377 = vset.pattern.permute.xlu0 0
  %1378 = vperm.xlu0 %1377, %v1320
  %v1379 = vpop.permute.xlu0 %1378
  %1382 = vset.pattern.permute.xlu0 0
  %1383 = vperm.xlu0 %1382, %v1321
  %v1384 = vpop.permute.xlu0 %1383
  %1387 = vset.pattern.permute.xlu0 0
  %1388 = vperm.xlu0 %1387, %v1322
  %v1389 = vpop.permute.xlu0 %1388
  %1392 = vset.pattern.permute.xlu0 0
  %1393 = vperm.xlu0 %1392, %v1323
  %v1394 = vpop.permute.xlu0 %1393
  %1397 = vset.pattern.permute.xlu0 0
  %1398 = vperm.xlu0 %1397, %v1324
  %v1399 = vpop.permute.xlu0 %1398
  %1402 = vset.pattern.permute.xlu0 0
  %1403 = vperm.xlu0 %1402, %v1325
  %v1404 = vpop.permute.xlu0 %1403
  %1407 = vset.pattern.permute.xlu0 0
  %1408 = vperm.xlu0 %1407, %v1326
  %v1409 = vpop.permute.xlu0 %1408
  %1412 = vset.pattern.permute.xlu0 0
  %1413 = vperm.xlu0 %1412, %v1327
  %v1414 = vpop.permute.xlu0 %1413
  %v1416 = vadd.f32 %v1368, %v1379
  %v1417 = vadd.f32 %v1369, %v1384
  %v1418 = vadd.f32 %v1370, %v1389
  %v1419 = vadd.f32 %v1371, %v1394
  %v1420 = vadd.f32 %v1372, %v1399
  %v1421 = vadd.f32 %v1373, %v1404
  %v1422 = vadd.f32 %v1374, %v1409
  %v1423 = vadd.f32 %v1375, %v1414
  %v1424 = vmax.f32 %v1416, 0.0
  %v1425 = vmax.f32 %v1417, 0.0
  %v1426 = vmax.f32 %v1418, 0.0
  %v1427 = vmax.f32 %v1419, 0.0
  %v1428 = vmax.f32 %v1420, 0.0
  %v1429 = vmax.f32 %v1421, 0.0
  %v1430 = vmax.f32 %v1422, 0.0
  %v1431 = vmax.f32 %v1423, 0.0
  %v1432 = vmul.f32 %v572, %v1331
  %v1433 = vmul.f32 %v577, %v1336
  %v1434 = vmul.f32 %v582, %v1341
  %v1435 = vmul.f32 %v587, %v1346
  %v1436 = vmul.f32 %v592, %v1351
  %v1437 = vmul.f32 %v597, %v1356
  %v1438 = vmul.f32 %v602, %v1361
  %v1439 = vmul.f32 %v607, %v1366
  %v1440 = vadd.f32 %v1432, %v1379
  %v1441 = vadd.f32 %v1433, %v1384
  %v1442 = vadd.f32 %v1434, %v1389
  %v1443 = vadd.f32 %v1435, %v1394
  %v1444 = vadd.f32 %v1436, %v1399
  %v1445 = vadd.f32 %v1437, %v1404
  %v1446 = vadd.f32 %v1438, %v1409
  %v1447 = vadd.f32 %v1439, %v1414
  %v1448 = vmax.f32 %v1440, 0.0
  %v1449 = vmax.f32 %v1441, 0.0
  %v1450 = vmax.f32 %v1442, 0.0
  %v1451 = vmax.f32 %v1443, 0.0
  %v1452 = vmax.f32 %v1444, 0.0
  %v1453 = vmax.f32 %v1445, 0.0
  %v1454 = vmax.f32 %v1446, 0.0
  %v1455 = vmax.f32 %v1447, 0.0
  %v1456 = vmul.f32 %v819, %v1331
  %v1457 = vmul.f32 %v824, %v1336
  %v1458 = vmul.f32 %v829, %v1341
  %v1459 = vmul.f32 %v834, %v1346
  %v1460 = vmul.f32 %v839, %v1351
  %v1461 = vmul.f32 %v844, %v1356
  %v1462 = vmul.f32 %v849, %v1361
  %v1463 = vmul.f32 %v854, %v1366
  %v1464 = vadd.f32 %v1456, %v1379
  %v1465 = vadd.f32 %v1457, %v1384
  %v1466 = vadd.f32 %v1458, %v1389
  %v1467 = vadd.f32 %v1459, %v1394
  %v1468 = vadd.f32 %v1460, %v1399
  %v1469 = vadd.f32 %v1461, %v1404
  %v1470 = vadd.f32 %v1462, %v1409
  %v1471 = vadd.f32 %v1463, %v1414
  %v1472 = vmax.f32 %v1464, 0.0
  %v1473 = vmax.f32 %v1465, 0.0
  %v1474 = vmax.f32 %v1466, 0.0
  %v1475 = vmax.f32 %v1467, 0.0
  %v1476 = vmax.f32 %v1468, 0.0
  %v1477 = vmax.f32 %v1469, 0.0
  %v1478 = vmax.f32 %v1470, 0.0
  %v1479 = vmax.f32 %v1471, 0.0
  %v1480 = vmul.f32 %v1066, %v1331
  %v1481 = vmul.f32 %v1071, %v1336
  %v1482 = vmul.f32 %v1076, %v1341
  %v1483 = vmul.f32 %v1081, %v1346
  %v1484 = vmul.f32 %v1086, %v1351
  %v1485 = vmul.f32 %v1091, %v1356
  %v1486 = vmul.f32 %v1096, %v1361
  %v1487 = vmul.f32 %v1101, %v1366
  %v1488 = vadd.f32 %v1480, %v1379
  %v1489 = vadd.f32 %v1481, %v1384
  %v1490 = vadd.f32 %v1482, %v1389
  %v1491 = vadd.f32 %v1483, %v1394
  %v1492 = vadd.f32 %v1484, %v1399
  %v1493 = vadd.f32 %v1485, %v1404
  %v1494 = vadd.f32 %v1486, %v1409
  %v1495 = vadd.f32 %v1487, %v1414
  %v1496 = vmax.f32 %v1488, 0.0
  %v1497 = vmax.f32 %v1489, 0.0
  %v1498 = vmax.f32 %v1490, 0.0
  %v1499 = vmax.f32 %v1491, 0.0
  %v1500 = vmax.f32 %v1492, 0.0
  %v1501 = vmax.f32 %v1493, 0.0
  %v1502 = vmax.f32 %v1494, 0.0
  %v1503 = vmax.f32 %v1495, 0.0
  %v1504 = vmax.f32 %v1424, %v1448
  %v1505 = vmax.f32 %v1425, %v1449
  %v1506 = vmax.f32 %v1426, %v1450
  %v1507 = vmax.f32 %v1427, %v1451
  %v1508 = vmax.f32 %v1428, %v1452
  %v1509 = vmax.f32 %v1429, %v1453
  %v1510 = vmax.f32 %v1430, %v1454
  %v1511 = vmax.f32 %v1431, %v1455
  %v1512 = vmax.f32 %v1472, %v1496
  %v1513 = vmax.f32 %v1473, %v1497
  %v1514 = vmax.f32 %v1474, %v1498
  %v1515 = vmax.f32 %v1475, %v1499
  %v1516 = vmax.f32 %v1476, %v1500
  %v1517 = vmax.f32 %v1477, %v1501
  %v1518 = vmax.f32 %v1478, %v1502
  %v1519 = vmax.f32 %v1479, %v1503
  %v1520 = vmax.f32 %v1504, %v1512
  %v1521 = vmax.f32 %v1505, %v1513
  %v1522 = vmax.f32 %v1506, %v1514
  %v1523 = vmax.f32 %v1507, %v1515
  %v1524 = vmax.f32 %v1508, %v1516
  %v1525 = vmax.f32 %v1509, %v1517
  %v1526 = vmax.f32 %v1510, %v1518
  %v1527 = vmax.f32 %v1511, %v1519
  %1528 = vst.msk [vmem:[%s5] sm:$0xff] %vm128, %v1520
  %1529 = vst.msk [vmem:[%s5 + $0x8] sm:$0xff] %vm128, %v1521
  %1530 = vst.msk [vmem:[%s5 + $0x10] sm:$0xff] %vm128, %v1522
  %1531 = vst.msk [vmem:[%s5 + $0x18] sm:$0xff] %vm128, %v1523
  %1532 = vst.msk [vmem:[%s5 + $0x20] sm:$0xff] %vm128, %v1524
  %1533 = vst.msk [vmem:[%s5 + $0x28] sm:$0xff] %vm128, %v1525
  %1534 = vst.msk [vmem:[%s5 + $0x30] sm:$0xff] %vm128, %v1526
  %1535 = vst.msk [vmem:[%s5 + $0x38] sm:$0xff] %vm128, %v1527
  // Predicated region
  $region22: #{batchnorm_net_forward.6} parent=0 // pred_check
    _
  $region23: #{batchnorm_net_forward.6} parent=0 // pred_check_branch
    %1537 = sbr.rel (0) target = $region25
  $region24: #{batchnorm_net_forward.6} parent=0 // pred_region
    _
  $region25: #{batchnorm_net_forward.6} parent=0 // pred_fallthru
    _
  // Predicated region
  $region26: #{batchnorm_net_forward.6} parent=0 // pred_check
    _
  $region27: #{batchnorm_net_forward.6} parent=0 // pred_check_branch
    %1539 = sbr.rel (0) target = $region29
  $region28: #{batchnorm_net_forward.6} parent=0 // pred_region
    _
  $region29: #{batchnorm_net_forward.6} parent=0 // pred_fallthru
    _

// kernel: batchnorm_net_forward.7
$region0: #{batchnorm_net_forward.7}
  #allocation0 [shape = 'u32[]', space=smem, size = 0x4, offset = 0x4, fixed_abs, tag = 'smem constant byte address 0x4 - core index']
  #allocation1 [shape = 'u32[144,128]{1,0:T(1,128)}', space=vmem, size = 0x12000, scoped, tag = 'internal scratch']
  %s0 = inlined_call_operand.vmem [shape: f32[2,1024], index: 0, kind: input, shape index: {}]
  %s1 = inlined_call_operand.vmem [shape: f32[1024,120], index: 1, kind: input, shape index: {}]
  %s2 = inlined_call_operand.vmem [shape: f32[1,120], index: 2, kind: input, shape index: {}]
  %s3 = inlined_call_operand.vmem [shape: f32[120,84], index: 3, kind: input, shape index: {}]
  %s4 = inlined_call_operand.vmem [shape: f32[1,84], index: 4, kind: input, shape index: {}]
  %s5 = inlined_call_operand.vmem [shape: f32[84,10], index: 5, kind: input, shape index: {}]
  %s6 = inlined_call_operand.vmem [shape: f32[1,10], index: 6, kind: input, shape index: {}]
  %s7 = inlined_call_operand.hbm [shape: f32[2,10], index: 7, kind: output, shape index: {}]
  %s8 = sld [smem:[#allocation0]]
  $region38: #{batchnorm_net_forward.7} parent=0
    _
  %s10 = ssub.s32 1, %s8
  %s11 = scalar_select 0, %s10, %s8
  $region1: #{batchnorm_net_forward.7} parent=0
    #allocation2 [shape = 'u8[1024]{0}', space=vmem, size = 0x400, scoped, tag = 'output window, operand 0, single buffered']
    #allocation3 [shape = 's32[1]{0}', space=sflag, size = 0x4, scoped, tag = 'scoped memory for batchnorm_net_forward.7']
    %12 = vsyncpa [#allocation3], 0
    // Predicated region
    $region2: #{batchnorm_net_forward.7} parent=1 // pred_check
      _
    $region3: #{batchnorm_net_forward.7} parent=1 // pred_check_branch
      %14 = sbr.rel (0) target = $region5
    $region4: #{batchnorm_net_forward.7} parent=1 // pred_region
      _
    $region5: #{batchnorm_net_forward.7} parent=1 // pred_fallthru
      _
    // Predicated region
    $region6: #{batchnorm_net_forward.7} parent=1 // pred_check
      _
    $region7: #{batchnorm_net_forward.7} parent=1 // pred_check_branch
      %16 = sbr.rel (0) target = $region9
    $region8: #{batchnorm_net_forward.7} parent=1 // pred_region
      _
    $region9: #{batchnorm_net_forward.7} parent=1 // pred_fallthru
      _
    // Predicated region
    $region10: #{batchnorm_net_forward.7} parent=1 // pred_check
      _
    $region11: #{batchnorm_net_forward.7} parent=1 // pred_check_branch
      %18 = sbr.rel (0) target = $region13
    $region12: #{batchnorm_net_forward.7} parent=1 // pred_region
      _
    $region13: #{batchnorm_net_forward.7} parent=1 // pred_fallthru
      _
    // Predicated region
    $region14: #{batchnorm_net_forward.7} parent=1 // pred_check
      _
    $region15: #{batchnorm_net_forward.7} parent=1 // pred_check_branch
      %20 = sbr.rel (0) target = $region17
    $region16: #{batchnorm_net_forward.7} parent=1 // pred_region
      _
    $region17: #{batchnorm_net_forward.7} parent=1 // pred_fallthru
      _
    // Predicated region
    $region18: #{batchnorm_net_forward.7} parent=1 // pred_check
      _
    $region19: #{batchnorm_net_forward.7} parent=1 // pred_check_branch
      %22 = sbr.rel (0) target = $region21
    $region20: #{batchnorm_net_forward.7} parent=1 // pred_region
      _
    $region21: #{batchnorm_net_forward.7} parent=1 // pred_fallthru
      _
    // Predicated region
    $region22: #{batchnorm_net_forward.7} parent=1 // pred_check
      _
    $region23: #{batchnorm_net_forward.7} parent=1 // pred_check_branch
      %24 = sbr.rel (0) target = $region25
    $region24: #{batchnorm_net_forward.7} parent=1 // pred_region
      _
    $region25: #{batchnorm_net_forward.7} parent=1 // pred_fallthru
      _
    // Predicated region
    $region26: #{batchnorm_net_forward.7} parent=1 // pred_check
      _
    $region27: #{batchnorm_net_forward.7} parent=1 // pred_check_branch
      %26 = sbr.rel (0) target = $region29
    $region28: #{batchnorm_net_forward.7} parent=1 // pred_region
      _
    $region29: #{batchnorm_net_forward.7} parent=1 // pred_fallthru
      _
    %v27 = vld [vmem:[%s0] sm:$0xff]
    %v28 = vld [vmem:[%s0 + $0x8] sm:$0xff]
    %v29 = vld [vmem:[%s1] sm:$0xff]
    %v30 = vld [vmem:[%s1 + $0x8] sm:$0xff]
    %v31 = vld [vmem:[%s1 + $0x10] sm:$0xff]
    %v32 = vld [vmem:[%s1 + $0x18] sm:$0xff]
    %v33 = vld [vmem:[%s1 + $0x20] sm:$0xff]
    %v34 = vld [vmem:[%s1 + $0x28] sm:$0xff]
    %v35 = vld [vmem:[%s1 + $0x30] sm:$0xff]
    %v36 = vld [vmem:[%s1 + $0x38] sm:$0xff]
    %v37 = vld [vmem:[%s1 + $0x40] sm:$0xff]
    %v38 = vld [vmem:[%s1 + $0x48] sm:$0xff]
    %v39 = vld [vmem:[%s1 + $0x50] sm:$0xff]
    %v40 = vld [vmem:[%s1 + $0x58] sm:$0xff]
    %v41 = vld [vmem:[%s1 + $0x60] sm:$0xff]
    %v42 = vld [vmem:[%s1 + $0x68] sm:$0xff]
    %v43 = vld [vmem:[%s1 + $0x70] sm:$0xff]
    %v44 = vld [vmem:[%s1 + $0x78] sm:$0xff]
    %v45 = vld [vmem:[%s1 + $0x80] sm:$0xff]
    %v46 = vld [vmem:[%s1 + $0x88] sm:$0xff]
    %v47 = vld [vmem:[%s1 + $0x90] sm:$0xff]
    %v48 = vld [vmem:[%s1 + $0x98] sm:$0xff]
    %v49 = vld [vmem:[%s1 + $0xa0] sm:$0xff]
    %v50 = vld [vmem:[%s1 + $0xa8] sm:$0xff]
    %v51 = vld [vmem:[%s1 + $0xb0] sm:$0xff]
    %v52 = vld [vmem:[%s1 + $0xb8] sm:$0xff]
    %v53 = vld [vmem:[%s1 + $0xc0] sm:$0xff]
    %v54 = vld [vmem:[%s1 + $0xc8] sm:$0xff]
    %v55 = vld [vmem:[%s1 + $0xd0] sm:$0xff]
    %v56 = vld [vmem:[%s1 + $0xd8] sm:$0xff]
    %v57 = vld [vmem:[%s1 + $0xe0] sm:$0xff]
    %v58 = vld [vmem:[%s1 + $0xe8] sm:$0xff]
    %v59 = vld [vmem:[%s1 + $0xf0] sm:$0xff]
    %v60 = vld [vmem:[%s1 + $0xf8] sm:$0xff]
    %v61 = vld [vmem:[%s1 + $0x100] sm:$0xff]
    %v62 = vld [vmem:[%s1 + $0x108] sm:$0xff]
    %v63 = vld [vmem:[%s1 + $0x110] sm:$0xff]
    %v64 = vld [vmem:[%s1 + $0x118] sm:$0xff]
    %v65 = vld [vmem:[%s1 + $0x120] sm:$0xff]
    %v66 = vld [vmem:[%s1 + $0x128] sm:$0xff]
    %v67 = vld [vmem:[%s1 + $0x130] sm:$0xff]
    %v68 = vld [vmem:[%s1 + $0x138] sm:$0xff]
    %v69 = vld [vmem:[%s1 + $0x140] sm:$0xff]
    %v70 = vld [vmem:[%s1 + $0x148] sm:$0xff]
    %v71 = vld [vmem:[%s1 + $0x150] sm:$0xff]
    %v72 = vld [vmem:[%s1 + $0x158] sm:$0xff]
    %v73 = vld [vmem:[%s1 + $0x160] sm:$0xff]
    %v74 = vld [vmem:[%s1 + $0x168] sm:$0xff]
    %v75 = vld [vmem:[%s1 + $0x170] sm:$0xff]
    %v76 = vld [vmem:[%s1 + $0x178] sm:$0xff]
    %v77 = vld [vmem:[%s1 + $0x180] sm:$0xff]
    %v78 = vld [vmem:[%s1 + $0x188] sm:$0xff]
    %v79 = vld [vmem:[%s1 + $0x190] sm:$0xff]
    %v80 = vld [vmem:[%s1 + $0x198] sm:$0xff]
    %v81 = vld [vmem:[%s1 + $0x1a0] sm:$0xff]
    %v82 = vld [vmem:[%s1 + $0x1a8] sm:$0xff]
    %v83 = vld [vmem:[%s1 + $0x1b0] sm:$0xff]
    %v84 = vld [vmem:[%s1 + $0x1b8] sm:$0xff]
    %v85 = vld [vmem:[%s1 + $0x1c0] sm:$0xff]
    %v86 = vld [vmem:[%s1 + $0x1c8] sm:$0xff]
    %v87 = vld [vmem:[%s1 + $0x1d0] sm:$0xff]
    %v88 = vld [vmem:[%s1 + $0x1d8] sm:$0xff]
    %v89 = vld [vmem:[%s1 + $0x1e0] sm:$0xff]
    %v90 = vld [vmem:[%s1 + $0x1e8] sm:$0xff]
    %v91 = vld [vmem:[%s1 + $0x1f0] sm:$0xff]
    %v92 = vld [vmem:[%s1 + $0x1f8] sm:$0xff]
    %v93 = vld [vmem:[%s1 + $0x200] sm:$0xff]
    %v94 = vld [vmem:[%s1 + $0x208] sm:$0xff]
    %v95 = vld [vmem:[%s1 + $0x210] sm:$0xff]
    %v96 = vld [vmem:[%s1 + $0x218] sm:$0xff]
    %v97 = vld [vmem:[%s1 + $0x220] sm:$0xff]
    %v98 = vld [vmem:[%s1 + $0x228] sm:$0xff]
    %v99 = vld [vmem:[%s1 + $0x230] sm:$0xff]
    %v100 = vld [vmem:[%s1 + $0x238] sm:$0xff]
    %v101 = vld [vmem:[%s1 + $0x240] sm:$0xff]
    %v102 = vld [vmem:[%s1 + $0x248] sm:$0xff]
    %v103 = vld [vmem:[%s1 + $0x250] sm:$0xff]
    %v104 = vld [vmem:[%s1 + $0x258] sm:$0xff]
    %v105 = vld [vmem:[%s1 + $0x260] sm:$0xff]
    %v106 = vld [vmem:[%s1 + $0x268] sm:$0xff]
    %v107 = vld [vmem:[%s1 + $0x270] sm:$0xff]
    %v108 = vld [vmem:[%s1 + $0x278] sm:$0xff]
    %v109 = vld [vmem:[%s1 + $0x280] sm:$0xff]
    %v110 = vld [vmem:[%s1 + $0x288] sm:$0xff]
    %v111 = vld [vmem:[%s1 + $0x290] sm:$0xff]
    %v112 = vld [vmem:[%s1 + $0x298] sm:$0xff]
    %v113 = vld [vmem:[%s1 + $0x2a0] sm:$0xff]
    %v114 = vld [vmem:[%s1 + $0x2a8] sm:$0xff]
    %v115 = vld [vmem:[%s1 + $0x2b0] sm:$0xff]
    %v116 = vld [vmem:[%s1 + $0x2b8] sm:$0xff]
    %v117 = vld [vmem:[%s1 + $0x2c0] sm:$0xff]
    %v118 = vld [vmem:[%s1 + $0x2c8] sm:$0xff]
    %v119 = vld [vmem:[%s1 + $0x2d0] sm:$0xff]
    %v120 = vld [vmem:[%s1 + $0x2d8] sm:$0xff]
    %v121 = vld [vmem:[%s1 + $0x2e0] sm:$0xff]
    %v122 = vld [vmem:[%s1 + $0x2e8] sm:$0xff]
    %v123 = vld [vmem:[%s1 + $0x2f0] sm:$0xff]
    %v124 = vld [vmem:[%s1 + $0x2f8] sm:$0xff]
    %v125 = vld [vmem:[%s1 + $0x300] sm:$0xff]
    %v126 = vld [vmem:[%s1 + $0x308] sm:$0xff]
    %v127 = vld [vmem:[%s1 + $0x310] sm:$0xff]
    %v128 = vld [vmem:[%s1 + $0x318] sm:$0xff]
    %v129 = vld [vmem:[%s1 + $0x320] sm:$0xff]
    %v130 = vld [vmem:[%s1 + $0x328] sm:$0xff]
    %v131 = vld [vmem:[%s1 + $0x330] sm:$0xff]
    %v132 = vld [vmem:[%s1 + $0x338] sm:$0xff]
    %v133 = vld [vmem:[%s1 + $0x340] sm:$0xff]
    %v134 = vld [vmem:[%s1 + $0x348] sm:$0xff]
    %v135 = vld [vmem:[%s1 + $0x350] sm:$0xff]
    %v136 = vld [vmem:[%s1 + $0x358] sm:$0xff]
    %v137 = vld [vmem:[%s1 + $0x360] sm:$0xff]
    %v138 = vld [vmem:[%s1 + $0x368] sm:$0xff]
    %v139 = vld [vmem:[%s1 + $0x370] sm:$0xff]
    %v140 = vld [vmem:[%s1 + $0x378] sm:$0xff]
    %v141 = vld [vmem:[%s1 + $0x380] sm:$0xff]
    %v142 = vld [vmem:[%s1 + $0x388] sm:$0xff]
    %v143 = vld [vmem:[%s1 + $0x390] sm:$0xff]
    %v144 = vld [vmem:[%s1 + $0x398] sm:$0xff]
    %v145 = vld [vmem:[%s1 + $0x3a0] sm:$0xff]
    %v146 = vld [vmem:[%s1 + $0x3a8] sm:$0xff]
    %v147 = vld [vmem:[%s1 + $0x3b0] sm:$0xff]
    %v148 = vld [vmem:[%s1 + $0x3b8] sm:$0xff]
    %v149 = vld [vmem:[%s1 + $0x3c0] sm:$0xff]
    %v150 = vld [vmem:[%s1 + $0x3c8] sm:$0xff]
    %v151 = vld [vmem:[%s1 + $0x3d0] sm:$0xff]
    %v152 = vld [vmem:[%s1 + $0x3d8] sm:$0xff]
    %v153 = vld [vmem:[%s1 + $0x3e0] sm:$0xff]
    %v154 = vld [vmem:[%s1 + $0x3e8] sm:$0xff]
    %v155 = vld [vmem:[%s1 + $0x3f0] sm:$0xff]
    %v156 = vld [vmem:[%s1 + $0x3f8] sm:$0xff]
    %v157 = vld [vmem:[%s2] sm:$0x1]
    %v159 = vlaneseq
    %v160 = vshrl.u32 %v159, 7
    %v161 = vsub.s32 0, %v160
    %v162 = vrot.slane %v157, %v161
    %v166 = vcombine.high %v27, %v27
    %v168 = vunpack.c.l.s4 1983009808
    %v169 = vunpack.c.0.s8 %v168
    %v170 = vlaneseq
    %v171 = vshrl.u32 %v170, 7
    %v172 = vsub.s32 %v169, %v171
    %v173 = vrot.slane %v27, %v172
    %v175 = vunpack.c.l.s4 1983009808
    %v176 = vunpack.c.0.s8 %v175
    %v177 = vlaneseq
    %v178 = vshrl.u32 %v177, 7
    %v179 = vsub.s32 %v176, %v178
    %v180 = vrot.slane %v166, %v179
    %v181 = vcombine.high %v173, %v173
    %v182 = vcombine.high %v180, %v180
    %v183 = vcombine.high %v28, %v28
    %v185 = vunpack.c.l.s4 1983009808
    %v186 = vunpack.c.0.s8 %v185
    %v187 = vlaneseq
    %v188 = vshrl.u32 %v187, 7
    %v189 = vsub.s32 %v186, %v188
    %v190 = vrot.slane %v28, %v189
    %v192 = vunpack.c.l.s4 1983009808
    %v193 = vunpack.c.0.s8 %v192
    %v194 = vlaneseq
    %v195 = vshrl.u32 %v194, 7
    %v196 = vsub.s32 %v193, %v195
    %v197 = vrot.slane %v183, %v196
    %v198 = vcombine.high %v190, %v190
    %v199 = vcombine.high %v197, %v197
    %208 = vmatprep.subr.mxu0 0.0
    %209 = vmatpush1.msra.mxu0 %v29
    %210 = vmatprep.subr.mxu0 0.0
    %211 = vmatpush1.msra.mxu0 %v30
    %212 = vmatprep.subr.mxu0 0.0
    %213 = vmatpush1.msra.mxu0 %v31
    %214 = vmatprep.subr.mxu0 0.0
    %215 = vmatpush1.msra.mxu0 %v32
    %216 = vmatprep.subr.mxu0 0.0
    %217 = vmatpush1.msra.mxu0 %v33
    %218 = vmatprep.subr.mxu0 0.0
    %219 = vmatpush1.msra.mxu0 %v34
    %220 = vmatprep.subr.mxu0 0.0
    %221 = vmatpush1.msra.mxu0 %v35
    %222 = vmatprep.subr.mxu0 0.0
    %223 = vmatpush1.msra.mxu0 %v36
    %224 = vmatprep.subr.mxu0 0.0
    %225 = vmatpush1.msra.mxu0 %v37
    %226 = vmatprep.subr.mxu0 0.0
    %227 = vmatpush1.msra.mxu0 %v38
    %228 = vmatprep.subr.mxu0 0.0
    %229 = vmatpush1.msra.mxu0 %v39
    %230 = vmatprep.subr.mxu0 0.0
    %231 = vmatpush1.msra.mxu0 %v40
    %232 = vmatprep.subr.mxu0 0.0
    %233 = vmatpush1.msra.mxu0 %v41
    %234 = vmatprep.subr.mxu0 0.0
    %235 = vmatpush1.msra.mxu0 %v42
    %236 = vmatprep.subr.mxu0 0.0
    %237 = vmatpush1.msra.mxu0 %v43
    %238 = vmatprep.subr.mxu0 0.0
    %239 = vmatpush1.msra.mxu0 %v44
    %240 = vmatprep.subr.mxu0 0.0
    %241 = vmatpush1.msra.mxu0 %v45
    %242 = vmatprep.subr.mxu0 0.0
    %243 = vmatpush1.msra.mxu0 %v46
    %244 = vmatprep.subr.mxu0 0.0
    %245 = vmatpush1.msra.mxu0 %v47
    %246 = vmatprep.subr.mxu0 0.0
    %247 = vmatpush1.msra.mxu0 %v48
    %248 = vmatprep.subr.mxu0 0.0
    %249 = vmatpush1.msra.mxu0 %v49
    %250 = vmatprep.subr.mxu0 0.0
    %251 = vmatpush1.msra.mxu0 %v50
    %252 = vmatprep.subr.mxu0 0.0
    %253 = vmatpush1.msra.mxu0 %v51
    %254 = vmatprep.subr.mxu0 0.0
    %255 = vmatpush1.msra.mxu0 %v52
    %256 = vmatprep.subr.mxu0 0.0
    %257 = vmatpush1.msra.mxu0 %v53
    %258 = vmatprep.subr.mxu0 0.0
    %259 = vmatpush1.msra.mxu0 %v54
    %260 = vmatprep.subr.mxu0 0.0
    %261 = vmatpush1.msra.mxu0 %v55
    %262 = vmatprep.subr.mxu0 0.0
    %263 = vmatpush1.msra.mxu0 %v56
    %264 = vmatprep.subr.mxu0 0.0
    %265 = vmatpush1.msra.mxu0 %v57
    %266 = vmatprep.subr.mxu0 0.0
    %267 = vmatpush1.msra.mxu0 %v58
    %268 = vmatprep.subr.mxu0 0.0
    %269 = vmatpush1.msra.mxu0 %v59
    %270 = vmatprep.subr.mxu0 0.0
    %271 = vmatpush1.msra.mxu0 %v60
    %272 = vmatprep.mubr.f32.mxu0 %v181
    %273 = vmatmul.mubr.f32.gmra.mrb[0].mxu0 %v173
    %v274 = vpop.f32.mrb[0].mxu0
    %v275 = vadd.f32 %v162, %v274
    %v276 = vpop.f32.mrb[0].mxu0
    %277 = vdwg.mxu0
    %278 = vmatprep.subr.mxu0 0.0
    %279 = vmatpush1.msra.mxu0 %v61
    %280 = vmatprep.subr.mxu0 0.0
    %281 = vmatpush1.msra.mxu0 %v62
    %282 = vmatprep.subr.mxu0 0.0
    %283 = vmatpush1.msra.mxu0 %v63
    %284 = vmatprep.subr.mxu0 0.0
    %285 = vmatpush1.msra.mxu0 %v64
    %286 = vmatprep.subr.mxu0 0.0
    %287 = vmatpush1.msra.mxu0 %v65
    %288 = vmatprep.subr.mxu0 0.0
    %289 = vmatpush1.msra.mxu0 %v66
    %290 = vmatprep.subr.mxu0 0.0
    %291 = vmatpush1.msra.mxu0 %v67
    %292 = vmatprep.subr.mxu0 0.0
    %293 = vmatpush1.msra.mxu0 %v68
    %294 = vmatprep.subr.mxu0 0.0
    %295 = vmatpush1.msra.mxu0 %v69
    %296 = vmatprep.subr.mxu0 0.0
    %297 = vmatpush1.msra.mxu0 %v70
    %298 = vmatprep.subr.mxu0 0.0
    %299 = vmatpush1.msra.mxu0 %v71
    %300 = vmatprep.subr.mxu0 0.0
    %301 = vmatpush1.msra.mxu0 %v72
    %302 = vmatprep.subr.mxu0 0.0
    %303 = vmatpush1.msra.mxu0 %v73
    %304 = vmatprep.subr.mxu0 0.0
    %305 = vmatpush1.msra.mxu0 %v74
    %306 = vmatprep.subr.mxu0 0.0
    %307 = vmatpush1.msra.mxu0 %v75
    %308 = vmatprep.subr.mxu0 0.0
    %309 = vmatpush1.msra.mxu0 %v76
    %310 = vmatprep.subr.mxu0 0.0
    %311 = vmatpush1.msra.mxu0 %v77
    %312 = vmatprep.subr.mxu0 0.0
    %313 = vmatpush1.msra.mxu0 %v78
    %314 = vmatprep.subr.mxu0 0.0
    %315 = vmatpush1.msra.mxu0 %v79
    %316 = vmatprep.subr.mxu0 0.0
    %317 = vmatpush1.msra.mxu0 %v80
    %318 = vmatprep.subr.mxu0 0.0
    %319 = vmatpush1.msra.mxu0 %v81
    %320 = vmatprep.subr.mxu0 0.0
    %321 = vmatpush1.msra.mxu0 %v82
    %322 = vmatprep.subr.mxu0 0.0
    %323 = vmatpush1.msra.mxu0 %v83
    %324 = vmatprep.subr.mxu0 0.0
    %325 = vmatpush1.msra.mxu0 %v84
    %326 = vmatprep.subr.mxu0 0.0
    %327 = vmatpush1.msra.mxu0 %v85
    %328 = vmatprep.subr.mxu0 0.0
    %329 = vmatpush1.msra.mxu0 %v86
    %330 = vmatprep.subr.mxu0 0.0
    %331 = vmatpush1.msra.mxu0 %v87
    %332 = vmatprep.subr.mxu0 0.0
    %333 = vmatpush1.msra.mxu0 %v88
    %334 = vmatprep.subr.mxu0 0.0
    %335 = vmatpush1.msra.mxu0 %v89
    %336 = vmatprep.subr.mxu0 0.0
    %337 = vmatpush1.msra.mxu0 %v90
    %338 = vmatprep.subr.mxu0 0.0
    %339 = vmatpush1.msra.mxu0 %v91
    %340 = vmatprep.subr.mxu0 0.0
    %341 = vmatpush1.msra.mxu0 %v92
    %342 = vmatprep.mubr.f32.mxu0 %v182
    %343 = vmatmul.mubr.f32.gmra.mrb[0].mxu0 %v180
    %v344 = vpop.f32.mrb[0].mxu0
    %v345 = vadd.f32 %v275, %v344
    %v346 = vpop.f32.mrb[0].mxu0
    %347 = vdwg.mxu0
    %348 = vmatprep.subr.mxu0 0.0
    %349 = vmatpush1.msra.mxu0 %v93
    %350 = vmatprep.subr.mxu0 0.0
    %351 = vmatpush1.msra.mxu0 %v94
    %352 = vmatprep.subr.mxu0 0.0
    %353 = vmatpush1.msra.mxu0 %v95
    %354 = vmatprep.subr.mxu0 0.0
    %355 = vmatpush1.msra.mxu0 %v96
    %356 = vmatprep.subr.mxu0 0.0
    %357 = vmatpush1.msra.mxu0 %v97
    %358 = vmatprep.subr.mxu0 0.0
    %359 = vmatpush1.msra.mxu0 %v98
    %360 = vmatprep.subr.mxu0 0.0
    %361 = vmatpush1.msra.mxu0 %v99
    %362 = vmatprep.subr.mxu0 0.0
    %363 = vmatpush1.msra.mxu0 %v100
    %364 = vmatprep.subr.mxu0 0.0
    %365 = vmatpush1.msra.mxu0 %v101
    %366 = vmatprep.subr.mxu0 0.0
    %367 = vmatpush1.msra.mxu0 %v102
    %368 = vmatprep.subr.mxu0 0.0
    %369 = vmatpush1.msra.mxu0 %v103
    %370 = vmatprep.subr.mxu0 0.0
    %371 = vmatpush1.msra.mxu0 %v104
    %372 = vmatprep.subr.mxu0 0.0
    %373 = vmatpush1.msra.mxu0 %v105
    %374 = vmatprep.subr.mxu0 0.0
    %375 = vmatpush1.msra.mxu0 %v106
    %376 = vmatprep.subr.mxu0 0.0
    %377 = vmatpush1.msra.mxu0 %v107
    %378 = vmatprep.subr.mxu0 0.0
    %379 = vmatpush1.msra.mxu0 %v108
    %380 = vmatprep.subr.mxu0 0.0
    %381 = vmatpush1.msra.mxu0 %v109
    %382 = vmatprep.subr.mxu0 0.0
    %383 = vmatpush1.msra.mxu0 %v110
    %384 = vmatprep.subr.mxu0 0.0
    %385 = vmatpush1.msra.mxu0 %v111
    %386 = vmatprep.subr.mxu0 0.0
    %387 = vmatpush1.msra.mxu0 %v112
    %388 = vmatprep.subr.mxu0 0.0
    %389 = vmatpush1.msra.mxu0 %v113
    %390 = vmatprep.subr.mxu0 0.0
    %391 = vmatpush1.msra.mxu0 %v114
    %392 = vmatprep.subr.mxu0 0.0
    %393 = vmatpush1.msra.mxu0 %v115
    %394 = vmatprep.subr.mxu0 0.0
    %395 = vmatpush1.msra.mxu0 %v116
    %396 = vmatprep.subr.mxu0 0.0
    %397 = vmatpush1.msra.mxu0 %v117
    %398 = vmatprep.subr.mxu0 0.0
    %399 = vmatpush1.msra.mxu0 %v118
    %400 = vmatprep.subr.mxu0 0.0
    %401 = vmatpush1.msra.mxu0 %v119
    %402 = vmatprep.subr.mxu0 0.0
    %403 = vmatpush1.msra.mxu0 %v120
    %404 = vmatprep.subr.mxu0 0.0
    %405 = vmatpush1.msra.mxu0 %v121
    %406 = vmatprep.subr.mxu0 0.0
    %407 = vmatpush1.msra.mxu0 %v122
    %408 = vmatprep.subr.mxu0 0.0
    %409 = vmatpush1.msra.mxu0 %v123
    %410 = vmatprep.subr.mxu0 0.0
    %411 = vmatpush1.msra.mxu0 %v124
    %412 = vmatprep.mubr.f32.mxu0 %v198
    %413 = vmatmul.mubr.f32.gmra.mrb[0].mxu0 %v190
    %v414 = vpop.f32.mrb[0].mxu0
    %v415 = vadd.f32 %v345, %v414
    %v416 = vpop.f32.mrb[0].mxu0
    %417 = vdwg.mxu0
    %418 = vmatprep.subr.mxu0 0.0
    %419 = vmatpush1.msra.mxu0 %v125
    %420 = vmatprep.subr.mxu0 0.0
    %421 = vmatpush1.msra.mxu0 %v126
    %422 = vmatprep.subr.mxu0 0.0
    %423 = vmatpush1.msra.mxu0 %v127
    %424 = vmatprep.subr.mxu0 0.0
    %425 = vmatpush1.msra.mxu0 %v128
    %426 = vmatprep.subr.mxu0 0.0
    %427 = vmatpush1.msra.mxu0 %v129
    %428 = vmatprep.subr.mxu0 0.0
    %429 = vmatpush1.msra.mxu0 %v130
    %430 = vmatprep.subr.mxu0 0.0
    %431 = vmatpush1.msra.mxu0 %v131
    %432 = vmatprep.subr.mxu0 0.0
    %433 = vmatpush1.msra.mxu0 %v132
    %434 = vmatprep.subr.mxu0 0.0
    %435 = vmatpush1.msra.mxu0 %v133
    %436 = vmatprep.subr.mxu0 0.0
    %437 = vmatpush1.msra.mxu0 %v134
    %438 = vmatprep.subr.mxu0 0.0
    %439 = vmatpush1.msra.mxu0 %v135
    %440 = vmatprep.subr.mxu0 0.0
    %441 = vmatpush1.msra.mxu0 %v136
    %442 = vmatprep.subr.mxu0 0.0
    %443 = vmatpush1.msra.mxu0 %v137
    %444 = vmatprep.subr.mxu0 0.0
    %445 = vmatpush1.msra.mxu0 %v138
    %446 = vmatprep.subr.mxu0 0.0
    %447 = vmatpush1.msra.mxu0 %v139
    %448 = vmatprep.subr.mxu0 0.0
    %449 = vmatpush1.msra.mxu0 %v140
    %450 = vmatprep.subr.mxu0 0.0
    %451 = vmatpush1.msra.mxu0 %v141
    %452 = vmatprep.subr.mxu0 0.0
    %453 = vmatpush1.msra.mxu0 %v142
    %454 = vmatprep.subr.mxu0 0.0
    %455 = vmatpush1.msra.mxu0 %v143
    %456 = vmatprep.subr.mxu0 0.0
    %457 = vmatpush1.msra.mxu0 %v144
    %458 = vmatprep.subr.mxu0 0.0
    %459 = vmatpush1.msra.mxu0 %v145
    %460 = vmatprep.subr.mxu0 0.0
    %461 = vmatpush1.msra.mxu0 %v146
    %462 = vmatprep.subr.mxu0 0.0
    %463 = vmatpush1.msra.mxu0 %v147
    %464 = vmatprep.subr.mxu0 0.0
    %465 = vmatpush1.msra.mxu0 %v148
    %466 = vmatprep.subr.mxu0 0.0
    %467 = vmatpush1.msra.mxu0 %v149
    %468 = vmatprep.subr.mxu0 0.0
    %469 = vmatpush1.msra.mxu0 %v150
    %470 = vmatprep.subr.mxu0 0.0
    %471 = vmatpush1.msra.mxu0 %v151
    %472 = vmatprep.subr.mxu0 0.0
    %473 = vmatpush1.msra.mxu0 %v152
    %474 = vmatprep.subr.mxu0 0.0
    %475 = vmatpush1.msra.mxu0 %v153
    %476 = vmatprep.subr.mxu0 0.0
    %477 = vmatpush1.msra.mxu0 %v154
    %478 = vmatprep.subr.mxu0 0.0
    %479 = vmatpush1.msra.mxu0 %v155
    %480 = vmatprep.subr.mxu0 0.0
    %481 = vmatpush1.msra.mxu0 %v156
    %482 = vmatprep.mubr.f32.mxu0 %v199
    %483 = vmatmul.mubr.f32.gmra.mrb[0].mxu0 %v197
    %v484 = vpop.f32.mrb[0].mxu0
    %v485 = vadd.f32 %v415, %v484
    %v486 = vpop.f32.mrb[0].mxu0
    %487 = vdwg.mxu0
    %v488 = vmax.f32 %v485, 0.0
    %v489 = vld [vmem:[%s3] sm:$0xff]
    %v490 = vld [vmem:[%s3 + $0x8] sm:$0xff]
    %v491 = vld [vmem:[%s3 + $0x10] sm:$0xff]
    %v492 = vld [vmem:[%s3 + $0x18] sm:$0xff]
    %v493 = vld [vmem:[%s3 + $0x20] sm:$0xff]
    %v494 = vld [vmem:[%s3 + $0x28] sm:$0xff]
    %v495 = vld [vmem:[%s3 + $0x30] sm:$0xff]
    %v496 = vld [vmem:[%s3 + $0x38] sm:$0xff]
    %v497 = vld [vmem:[%s3 + $0x40] sm:$0xff]
    %v498 = vld [vmem:[%s3 + $0x48] sm:$0xff]
    %v499 = vld [vmem:[%s3 + $0x50] sm:$0xff]
    %v500 = vld [vmem:[%s3 + $0x58] sm:$0xff]
    %v501 = vld [vmem:[%s3 + $0x60] sm:$0xff]
    %v502 = vld [vmem:[%s3 + $0x68] sm:$0xff]
    %v503 = vld [vmem:[%s3 + $0x70] sm:$0xff]
    %v504 = vld [vmem:[%s4] sm:$0x1]
    %v506 = vlaneseq
    %v507 = vshrl.u32 %v506, 7
    %v508 = vsub.s32 0, %v507
    %v509 = vrot.slane %v504, %v508
    %vm511 = vcmask 982016
    %v513 = vsel %vm511, %v488, 0
    %515 = vmatprep.subr.mxu0 0.0
    %516 = vmatpush1.msra.mxu0 %v489
    %517 = vmatprep.subr.mxu0 0.0
    %518 = vmatpush1.msra.mxu0 %v490
    %519 = vmatprep.subr.mxu0 0.0
    %520 = vmatpush1.msra.mxu0 %v491
    %521 = vmatprep.subr.mxu0 0.0
    %522 = vmatpush1.msra.mxu0 %v492
    %523 = vmatprep.subr.mxu0 0.0
    %524 = vmatpush1.msra.mxu0 %v493
    %525 = vmatprep.subr.mxu0 0.0
    %526 = vmatpush1.msra.mxu0 %v494
    %527 = vmatprep.subr.mxu0 0.0
    %528 = vmatpush1.msra.mxu0 %v495
    %529 = vmatprep.subr.mxu0 0.0
    %530 = vmatpush1.msra.mxu0 %v496
    %531 = vmatprep.subr.mxu0 0.0
    %532 = vmatpush1.msra.mxu0 %v497
    %533 = vmatprep.subr.mxu0 0.0
    %534 = vmatpush1.msra.mxu0 %v498
    %535 = vmatprep.subr.mxu0 0.0
    %536 = vmatpush1.msra.mxu0 %v499
    %537 = vmatprep.subr.mxu0 0.0
    %538 = vmatpush1.msra.mxu0 %v500
    %539 = vmatprep.subr.mxu0 0.0
    %540 = vmatpush1.msra.mxu0 %v501
    %541 = vmatprep.subr.mxu0 0.0
    %542 = vmatpush1.msra.mxu0 %v502
    %543 = vmatprep.subr.mxu0 0.0
    %544 = vmatpush1.msra.mxu0 %v503
    %545 = vmatprep.subr.mxu0 0.0
    %546 = vmatpush1.msra.mxu0 0.0
    %547 = vmatprep.subr.mxu0 0.0
    %548 = vmatpush1.msra.mxu0 0.0
    %549 = vmatprep.subr.mxu0 0.0
    %550 = vmatpush1.msra.mxu0 0.0
    %551 = vmatprep.subr.mxu0 0.0
    %552 = vmatpush1.msra.mxu0 0.0
    %553 = vmatprep.subr.mxu0 0.0
    %554 = vmatpush1.msra.mxu0 0.0
    %555 = vmatprep.subr.mxu0 0.0
    %556 = vmatpush1.msra.mxu0 0.0
    %557 = vmatprep.subr.mxu0 0.0
    %558 = vmatpush1.msra.mxu0 0.0
    %559 = vmatprep.subr.mxu0 0.0
    %560 = vmatpush1.msra.mxu0 0.0
    %561 = vmatprep.subr.mxu0 0.0
    %562 = vmatpush1.msra.mxu0 0.0
    %563 = vmatprep.subr.mxu0 0.0
    %564 = vmatpush1.msra.mxu0 0.0
    %565 = vmatprep.subr.mxu0 0.0
    %566 = vmatpush1.msra.mxu0 0.0
    %567 = vmatprep.subr.mxu0 0.0
    %568 = vmatpush1.msra.mxu0 0.0
    %569 = vmatprep.subr.mxu0 0.0
    %570 = vmatpush1.msra.mxu0 0.0
    %571 = vmatprep.subr.mxu0 0.0
    %572 = vmatpush1.msra.mxu0 0.0
    %573 = vmatprep.subr.mxu0 0.0
    %574 = vmatpush1.msra.mxu0 0.0
    %575 = vmatprep.subr.mxu0 0.0
    %576 = vmatpush1.msra.mxu0 0.0
    %577 = vmatprep.subr.mxu0 0.0
    %578 = vmatpush1.msra.mxu0 0.0
    %579 = vmatprep.mubr.f32.mxu0 0.0
    %580 = vmatmul.mubr.f32.gmra.mrb[0].mxu0 %v513
    %v581 = vpop.f32.mrb[0].mxu0
    %v582 = vadd.f32 %v509, %v581
    %v583 = vpop.f32.mrb[0].mxu0
    %584 = vdwg.mxu0
    %v585 = vmax.f32 %v582, 0.0
    %v586 = vld [vmem:[%s5] sm:$0xff]
    %v587 = vld [vmem:[%s5 + $0x8] sm:$0xff]
    %v588 = vld [vmem:[%s5 + $0x10] sm:$0xff]
    %v589 = vld [vmem:[%s5 + $0x18] sm:$0xff]
    %v590 = vld [vmem:[%s5 + $0x20] sm:$0xff]
    %v591 = vld [vmem:[%s5 + $0x28] sm:$0xff]
    %v592 = vld [vmem:[%s5 + $0x30] sm:$0xff]
    %v593 = vld [vmem:[%s5 + $0x38] sm:$0xff]
    %v594 = vld [vmem:[%s5 + $0x40] sm:$0xff]
    %v595 = vld [vmem:[%s5 + $0x48] sm:$0xff]
    %v596 = vld [vmem:[%s5 + $0x50] sm:$0xf]
    %v597 = vld [vmem:[%s6] sm:$0x1]
    %v599 = vlaneseq
    %v600 = vshrl.u32 %v599, 7
    %v601 = vsub.s32 0, %v600
    %v602 = vrot.slane %v597, %v601
    %vm604 = vcmask 687104
    %v606 = vsel %vm604, %v585, 0
    %vm608 = vcmask 1043456
    %v610 = vsel %vm608, %v596, 0
    %612 = vmatprep.subr.mxu0 0.0
    %613 = vmatpush1.msra.mxu0 %v586
    %614 = vmatprep.subr.mxu0 0.0
    %615 = vmatpush1.msra.mxu0 %v587
    %616 = vmatprep.subr.mxu0 0.0
    %617 = vmatpush1.msra.mxu0 %v588
    %618 = vmatprep.subr.mxu0 0.0
    %619 = vmatpush1.msra.mxu0 %v589
    %620 = vmatprep.subr.mxu0 0.0
    %621 = vmatpush1.msra.mxu0 %v590
    %622 = vmatprep.subr.mxu0 0.0
    %623 = vmatpush1.msra.mxu0 %v591
    %624 = vmatprep.subr.mxu0 0.0
    %625 = vmatpush1.msra.mxu0 %v592
    %626 = vmatprep.subr.mxu0 0.0
    %627 = vmatpush1.msra.mxu0 %v593
    %628 = vmatprep.subr.mxu0 0.0
    %629 = vmatpush1.msra.mxu0 %v594
    %630 = vmatprep.subr.mxu0 0.0
    %631 = vmatpush1.msra.mxu0 %v595
    %632 = vmatprep.subr.mxu0 0.0
    %633 = vmatpush1.msra.mxu0 %v610
    %634 = vmatprep.subr.mxu0 0.0
    %635 = vmatpush1.msra.mxu0 0.0
    %636 = vmatprep.subr.mxu0 0.0
    %637 = vmatpush1.msra.mxu0 0.0
    %638 = vmatprep.subr.mxu0 0.0
    %639 = vmatpush1.msra.mxu0 0.0
    %640 = vmatprep.subr.mxu0 0.0
    %641 = vmatpush1.msra.mxu0 0.0
    %642 = vmatprep.subr.mxu0 0.0
    %643 = vmatpush1.msra.mxu0 0.0
    %644 = vmatprep.subr.mxu0 0.0
    %645 = vmatpush1.msra.mxu0 0.0
    %646 = vmatprep.subr.mxu0 0.0
    %647 = vmatpush1.msra.mxu0 0.0
    %648 = vmatprep.subr.mxu0 0.0
    %649 = vmatpush1.msra.mxu0 0.0
    %650 = vmatprep.subr.mxu0 0.0
    %651 = vmatpush1.msra.mxu0 0.0
    %652 = vmatprep.subr.mxu0 0.0
    %653 = vmatpush1.msra.mxu0 0.0
    %654 = vmatprep.subr.mxu0 0.0
    %655 = vmatpush1.msra.mxu0 0.0
    %656 = vmatprep.subr.mxu0 0.0
    %657 = vmatpush1.msra.mxu0 0.0
    %658 = vmatprep.subr.mxu0 0.0
    %659 = vmatpush1.msra.mxu0 0.0
    %660 = vmatprep.subr.mxu0 0.0
    %661 = vmatpush1.msra.mxu0 0.0
    %662 = vmatprep.subr.mxu0 0.0
    %663 = vmatpush1.msra.mxu0 0.0
    %664 = vmatprep.subr.mxu0 0.0
    %665 = vmatpush1.msra.mxu0 0.0
    %666 = vmatprep.subr.mxu0 0.0
    %667 = vmatpush1.msra.mxu0 0.0
    %668 = vmatprep.subr.mxu0 0.0
    %669 = vmatpush1.msra.mxu0 0.0
    %670 = vmatprep.subr.mxu0 0.0
    %671 = vmatpush1.msra.mxu0 0.0
    %672 = vmatprep.subr.mxu0 0.0
    %673 = vmatpush1.msra.mxu0 0.0
    %674 = vmatprep.subr.mxu0 0.0
    %675 = vmatpush1.msra.mxu0 0.0
    %676 = vmatprep.mubr.f32.mxu0 0.0
    %677 = vmatmul.mubr.f32.gmra.mrb[0].mxu0 %v606
    %v678 = vpop.f32.mrb[0].mxu0
    %v679 = vadd.f32 %v602, %v678
    %v680 = vpop.f32.mrb[0].mxu0
    %681 = vdwg.mxu0
    %vm682 = vcmask 74752
    %683 = vst.msk [vmem:[#allocation2] sm:$0x3] %vm682, %v679
    // Predicated region
    $region30: #{batchnorm_net_forward.7} parent=1 // pred_check
      _
    $region31: #{batchnorm_net_forward.7} parent=1 // pred_check_branch
      %685 = sbr.rel (0) target = $region33
    $region32: #{batchnorm_net_forward.7} parent=1 // pred_region
      %s687 = ssub.s32 32, 32
      %688 = vsyncadd [#allocation3], %s687
      %s690 = sshll.u32 [#allocation2], 4
      %s691 = int_to_ptr.vmem [resolvable:$true] %s690
      %693 = dma.vmem_to_hbm [thread:$0]  %s691, 32, %s7, [#allocation3]
    $region33: #{batchnorm_net_forward.7} parent=1 // pred_fallthru
      _
    // Predicated region
    $region34: #{batchnorm_net_forward.7} parent=1 // pred_check
      _
    $region35: #{batchnorm_net_forward.7} parent=1 // pred_check_branch
      %695 = sbr.rel (0) target = $region37
    $region36: #{batchnorm_net_forward.7} parent=1 // pred_region
      %696 = dma.done [#allocation3], 32
    $region37: #{batchnorm_net_forward.7} parent=1 // pred_fallthru
      _
    %697 = vsyncpa [#allocation3], 1

</llo_original>
